<compile_context>
chip_gen: v7x
topology: tpu7x:2x2x1
jax: 0.10.0
libtpu: 0.0.40
codegen_flags: <defaults>
</compile_context>

<pallas_src>
import functools

import jax
import jax.numpy as jnp
from jax.experimental import pallas as pl
from jax.experimental.pallas import tpu as pltpu


def _round_up(x, m):
    return ((x + m - 1) // m) * m


# ---------------------------------------------------------------------------
# Fused Pallas kernel: embedding -> utterance bi-GRU -> regroup -> context
# bi-GRU -> MLP classifier -> sigmoid.  Single grid point, everything in VMEM.
# ---------------------------------------------------------------------------
def craft_predictor_kernel(tok_ref, ulen_ref, dlen_ref, trow_ref, emb_ref,
                           u_wih_ref, u_whh_ref, u_bx_ref, u_bhn_ref,
                           c_wih_ref, c_whh_ref, c_bx_ref, c_bhn_ref,
                           w1_ref, b1_ref, w2_ref, b2_ref, w3_ref, b3_ref,
                           out_ref, gx_utt_ref, gx_ctx_ref,
                           *, t_utt, n_pad, t_dlg, b_pad, hidden, vocab):
    f32 = jnp.float32
    bf16 = jnp.bfloat16
    H = hidden

    def bigru(x_all, lengths, n_steps, batch,
              wih_ref, whh_ref, bx_ref, bhn_ref, gx_ref, capture_bwd_first):
        """Fused fwd+bwd single-layer GRU over a padded, time-major-flat
        (n_steps*batch, H) input with per-row lengths (batch, 1).

        Packed-sequence semantics: a row's state only updates while t < length,
        so the final states equal PyTorch's h_n, and the captured backward state
        at t == length-1 equals the backward half of output[length-1].
        Gate/weight layout (lane axis): [r_f | z_f | n_f | r_b | z_b | n_b], H each.
        Returns (h_fwd_final, h_bwd_final, bwd_out_at_last_valid_step)."""
        # Hoisted input projections: ONE tall bf16 matmul for 2 dirs x 3 gates,
        # b_ih (+ b_hh for r/z) folded in; staged in VMEM scratch so the unrolled
        # recurrence reads small per-step slabs instead of spilling vregs.
        gx_ref[...] = (jnp.dot(x_all.astype(bf16), wih_ref[...],
                               preferred_element_type=f32) + bx_ref[...])
        whh = whh_ref[...]                               # (2H, 6H) bf16, block-diag
        bhn = bhn_ref[...]                               # (1, 6H) f32: 0|0|b_hn per dir
        masks = [lengths > t for t in range(n_steps)]    # (batch, 1) bool each

        h = jnp.zeros((batch, 2 * H), f32)               # [h_fwd | h_bwd]
        b_first = jnp.zeros((batch, H), f32)
        for s in range(n_steps):                         # fully unrolled (small static T)
            t_b = n_steps - 1 - s                        # backward-direction timestep
            # ONE recurrent matmul per step: both directions, all 3 gates.
            gh = jnp.dot(h.astype(bf16), whh, preferred_element_type=f32) + bhn
            gxf = gx_ref[s * batch:(s + 1) * batch, :]           # (batch, 6H)
            gxb = gx_ref[t_b * batch:(t_b + 1) * batch, :]
            r_f = jax.nn.sigmoid(gxf[:, 0:H] + gh[:, 0:H])
            z_f = jax.nn.sigmoid(gxf[:, H:2 * H] + gh[:, H:2 * H])
            n_f = jnp.tanh(gxf[:, 2 * H:3 * H] + r_f * gh[:, 2 * H:3 * H])
            r_b = jax.nn.sigmoid(gxb[:, 3 * H:4 * H] + gh[:, 3 * H:4 * H])
            z_b = jax.nn.sigmoid(gxb[:, 4 * H:5 * H] + gh[:, 4 * H:5 * H])
            n_b = jnp.tanh(gxb[:, 5 * H:6 * H] + r_b * gh[:, 5 * H:6 * H])
            h_f = jnp.where(masks[s],
                            (1.0 - z_f) * n_f + z_f * h[:, 0:H], h[:, 0:H])
            h_b = jnp.where(masks[t_b],
                            (1.0 - z_b) * n_b + z_b * h[:, H:2 * H], h[:, H:2 * H])
            h = jnp.concatenate([h_f, h_b], axis=1)
            if capture_bwd_first:
                # first active backward step for a row is t == length - 1
                cap = lengths == (t_b + 1)
                b_first = jnp.where(cap, h_b, b_first)
        return h[:, 0:H], h[:, H:2 * H], b_first

    # ---- embedding lookup as an exact one-hot matmul (no gather) ----------------
    tok = tok_ref[...]                                                   # (T*NP, 1)
    vocab_iota = jax.lax.broadcasted_iota(jnp.int32, (t_utt * n_pad, vocab), 1)
    onehot = (vocab_iota == tok).astype(bf16)                            # (T*NP, V)
    embedded = jnp.dot(onehot, emb_ref[...], preferred_element_type=f32)  # (T*NP, H)

    # ---- utterance bi-GRU: only the final hidden states are consumed ------------
    ulen = ulen_ref[...]                                                 # (NP, 1)
    h_uf, h_ub, _ = bigru(embedded, ulen, t_utt, n_pad,
                          u_wih_ref, u_whh_ref, u_bx_ref, u_bhn_ref,
                          gx_utt_ref, capture_bwd_first=False)
    summed = h_uf + h_ub               # == utt_encoder_hidden[-2] + [-1]   (NP, H)

    # ---- regroup into conversational order (makeContextEncoderInput +
    #      pad_sequence) as a one-hot scatter matmul ------------------------------
    trow = trow_ref[...]                                                 # (1, NP)
    row_iota = jax.lax.broadcasted_iota(jnp.int32, (t_dlg * b_pad, n_pad), 0)
    scatter = (row_iota == trow).astype(bf16)                            # (D*BP, NP)
    ctx_in = jnp.dot(scatter, summed.astype(bf16),
                     preferred_element_type=f32)                         # (D*BP, H)

    # ---- context bi-GRU: only the summed output at the last valid step is used --
    dlen = dlen_ref[...]                                                 # (BP, 1)
    h_cf, _, cb_first = bigru(ctx_in, dlen, t_dlg, b_pad,
                              c_wih_ref, c_whh_ref, c_bx_ref, c_bhn_ref,
                              gx_ctx_ref, capture_bwd_first=True)
    last = h_cf + cb_first        # == (out_fwd + out_bwd)[dialog_len - 1]  (BP, H)

    # ---- SingleTargetClf MLP + sigmoid (eval mode, dropout = identity) ----------
    h1 = jnp.dot(last.astype(bf16), w1_ref[...],
                 preferred_element_type=f32) + b1_ref[...]
    h1 = jnp.where(h1 > 0, h1, 0.01 * h1)                                # LeakyReLU
    h2 = jnp.dot(h1.astype(bf16), w2_ref[...],
                 preferred_element_type=f32) + b2_ref[...]
    h2 = jnp.where(h2 > 0, h2, 0.01 * h2)
    logits = jnp.dot(h2.astype(bf16), w3_ref[...],
                     preferred_element_type=f32) + b3_ref[...]
    out_ref[...] = jax.nn.sigmoid(logits)


# ---------------------------------------------------------------------------
# Weight packing (done once per call inside jit, cheap XLA concats):
#   W_ih packed:   (in, 6H)  bf16, cols = [r_f|z_f|n_f|r_b|z_b|n_b]
#   W_hh blockdiag:(2H, 6H)  bf16, rows [h_f|h_b] -> same column layout
#   bx:            (1, 6H)   f32,  b_ih (+ b_hh for r/z gates) folded
#   bhn:           (1, 6H)   f32,  zeros except b_hn per direction
# ---------------------------------------------------------------------------
def pack_bigru(p):
    hid = p["w_hh"].shape[-1]
    wih = jnp.concatenate(
        [jnp.concatenate([p["w_ih"][d, g] for g in range(3)], axis=1)
         for d in range(2)], axis=1)                                    # (in, 6H)
    whh_f = jnp.concatenate([p["w_hh"][0, g] for g in range(3)], axis=1)  # (H, 3H)
    whh_b = jnp.concatenate([p["w_hh"][1, g] for g in range(3)], axis=1)
    zblk = jnp.zeros((hid, 3 * hid), jnp.float32)
    whh_bd = jnp.concatenate(
        [jnp.concatenate([whh_f, zblk], axis=1),
         jnp.concatenate([zblk, whh_b], axis=1)], axis=0)               # (2H, 6H)
    bx = jnp.concatenate(
        [jnp.concatenate([p["b_ih"][d, 0] + p["b_hh"][d, 0],
                          p["b_ih"][d, 1] + p["b_hh"][d, 1],
                          p["b_ih"][d, 2]], axis=1) for d in range(2)], axis=1)
    zb = jnp.zeros((1, hid), jnp.float32)
    bhn = jnp.concatenate(
        [jnp.concatenate([zb, zb, p["b_hh"][d, 2]], axis=1) for d in range(2)], axis=1)
    return (wih.astype(jnp.bfloat16), whh_bd.astype(jnp.bfloat16), bx, bhn)


# ---------------------------------------------------------------------------
# Wrapper: pad/flatten inputs, pack weights, launch the single fused kernel.
# ---------------------------------------------------------------------------
@functools.partial(jax.jit, static_argnames=("batch_size", "max_dialog_len"))
def predictor_forward(params, input_batch, dialog_lengths, utt_lengths,
                      batch_indices, dialog_indices, batch_size, max_dialog_len):
    t_utt, n_utt = input_batch.shape
    vocab, hidden = params["embedding"].shape
    n_pad = max(8, _round_up(n_utt, 8))          # utterance batch padded to sublane mult
    b_pad = max(8, _round_up(batch_size, 8))     # dialog batch padded to sublane mult
    t_dlg = max_dialog_len

    # tokens, time-major flat (T*NP, 1); padded utterances get length 0 below
    tok = jnp.zeros((t_utt, n_pad), jnp.int32).at[:, :n_utt].set(
        input_batch.astype(jnp.int32))
    tok_flat = tok.reshape(t_utt * n_pad, 1)
    ulen = jnp.zeros((n_pad, 1), jnp.int32).at[:n_utt, 0].set(
        utt_lengths.astype(jnp.int32))
    dlen = jnp.zeros((b_pad, 1), jnp.int32).at[:batch_size, 0].set(
        dialog_lengths.astype(jnp.int32))
    # target row (in the flat (D*BP, H) context tensor) for each utterance;
    # padded utterances get an out-of-range sentinel so the scatter ignores them.
    sentinel = t_dlg * b_pad
    trow = jnp.full((1, n_pad), sentinel, jnp.int32).at[0, :n_utt].set(
        dialog_indices.astype(jnp.int32) * b_pad + batch_indices.astype(jnp.int32))

    u_wih, u_whh, u_bx, u_bhn = pack_bigru(params["enc"])
    c_wih, c_whh, c_bx, c_bhn = pack_bigru(params["ctx"])

    kernel = functools.partial(
        craft_predictor_kernel, t_utt=t_utt, n_pad=n_pad,
        t_dlg=t_dlg, b_pad=b_pad, hidden=hidden, vocab=vocab)

    vmem_spec = pl.BlockSpec(memory_space=pltpu.MemorySpace.VMEM)
    probs = pl.pallas_call(
        kernel,
        out_shape=jax.ShapeDtypeStruct((b_pad, 1), jnp.float32),
        in_specs=[vmem_spec] * 19,
        out_specs=vmem_spec,
        scratch_shapes=[pltpu.VMEM((t_utt * n_pad, 6 * hidden), jnp.float32),
                        pltpu.VMEM((t_dlg * b_pad, 6 * hidden), jnp.float32)],
    )(tok_flat, ulen, dlen, trow, params["embedding"].astype(jnp.bfloat16),
      u_wih, u_whh, u_bx, u_bhn,
      c_wih, c_whh, c_bx, c_bhn,
      params["w1"].astype(jnp.bfloat16), params["b1"],
      params["w2"].astype(jnp.bfloat16), params["b2"],
      params["w3"].astype(jnp.bfloat16), params["b3"])
    return probs[:batch_size, 0]                                         # (B,)


# ---------------------------------------------------------------------------
# Deterministic parameter initialization (synthetic weights, no checkpoint load)
# Gate order is r | z | n (PyTorch GRU order), stacked on (direction, gate) dims.
# ---------------------------------------------------------------------------
def init_bigru(key, in_dim, hid):
    k = 1.0 / jnp.sqrt(jnp.float32(hid))
    ks = jax.random.split(key, 4)
    return dict(
        w_ih=jax.random.uniform(ks[0], (2, 3, in_dim, hid), jnp.float32, -k, k),
        w_hh=jax.random.uniform(ks[1], (2, 3, hid, hid), jnp.float32, -k, k),
        b_ih=jax.random.uniform(ks[2], (2, 3, 1, hid), jnp.float32, -k, k),
        b_hh=jax.random.uniform(ks[3], (2, 3, 1, hid), jnp.float32, -k, k),
    )


def init_params(key, vocab_size, hidden):
    ks = jax.random.split(key, 9)
    k1 = 1.0 / jnp.sqrt(jnp.float32(hidden))
    k2 = 1.0 / jnp.sqrt(jnp.float32(hidden // 2))
    return dict(
        embedding=jax.random.normal(ks[0], (vocab_size, hidden), jnp.float32) * 0.1,
        enc=init_bigru(ks[1], hidden, hidden),
        ctx=init_bigru(ks[2], hidden, hidden),
        w1=jax.random.uniform(ks[3], (hidden, hidden), jnp.float32, -k1, k1),
        b1=jax.random.uniform(ks[4], (1, hidden), jnp.float32, -k1, k1),
        w2=jax.random.uniform(ks[5], (hidden, hidden // 2), jnp.float32, -k1, k1),
        b2=jax.random.uniform(ks[6], (1, hidden // 2), jnp.float32, -k1, k1),
        w3=jax.random.uniform(ks[7], (hidden // 2, 1), jnp.float32, -k2, k2),
        b3=jax.random.uniform(ks[8], (1, 1), jnp.float32, -k2, k2),
    )


# ---------------------------------------------------------------------------
if __name__ == "__main__":
    key = jax.random.PRNGKey(0)

    HIDDEN = 32
    VOCAB = 50
    MAX_LENGTH = 8                           # max tokens per utterance
    BATCH_SIZE = 3                           # number of dialogs
    dialog_lengths_list = [4, 3, 2]          # utterances per dialog (sorted desc)
    NUM_UTTS = sum(dialog_lengths_list)      # 9 utterances in the combined batch
    MAX_DIALOG_LEN = max(dialog_lengths_list)

    params = init_params(key, VOCAB, HIDDEN)

    k_tok, _ = jax.random.split(jax.random.PRNGKey(0), 2)
    input_batch = jax.random.randint(k_tok, (MAX_LENGTH, NUM_UTTS), 0, VOCAB,
                                     dtype=jnp.int32)
    utt_lengths = jnp.array([8, 8, 7, 6, 5, 5, 4, 3, 2], dtype=jnp.int32)
    dialog_lengths = jnp.array(dialog_lengths_list, dtype=jnp.int32)
    # which dialog / which slot each utterance in the combined batch belongs to
    batch_indices = jnp.array([0, 1, 2, 0, 1, 0, 2, 1, 0], dtype=jnp.int32)
    dialog_indices = jnp.array([0, 0, 0, 1, 1, 2, 1, 2, 3], dtype=jnp.int32)

    predictions = predictor_forward(params, input_batch, dialog_lengths, utt_lengths,
                                    batch_indices, dialog_indices,
                                    batch_size=BATCH_SIZE,
                                    max_dialog_len=MAX_DIALOG_LEN)
    predictions = jax.block_until_ready(predictions)
    assert predictions.shape == (BATCH_SIZE,)
    assert bool(jnp.all((predictions >= 0.0) & (predictions <= 1.0)))
    assert bool(jnp.all(jnp.isfinite(predictions)))
    print("KERNEL_OK")
</pallas_src>

<mosaic_0001>
module attributes {stable_mosaic.version = 11 : i64} {
  func.func @craft_predictor_kernel(%arg0: memref<128x1xi32, #tpu.memory_space<vmem>>, %arg1: memref<16x1xi32, #tpu.memory_space<vmem>>, %arg2: memref<8x1xi32, #tpu.memory_space<vmem>>, %arg3: memref<1x16xi32, #tpu.memory_space<vmem>>, %arg4: memref<50x32xbf16, #tpu.memory_space<vmem>>, %arg5: memref<32x192xbf16, #tpu.memory_space<vmem>>, %arg6: memref<64x192xbf16, #tpu.memory_space<vmem>>, %arg7: memref<1x192xf32, #tpu.memory_space<vmem>>, %arg8: memref<1x192xf32, #tpu.memory_space<vmem>>, %arg9: memref<32x192xbf16, #tpu.memory_space<vmem>>, %arg10: memref<64x192xbf16, #tpu.memory_space<vmem>>, %arg11: memref<1x192xf32, #tpu.memory_space<vmem>>, %arg12: memref<1x192xf32, #tpu.memory_space<vmem>>, %arg13: memref<32x32xbf16, #tpu.memory_space<vmem>>, %arg14: memref<1x32xf32, #tpu.memory_space<vmem>>, %arg15: memref<32x16xbf16, #tpu.memory_space<vmem>>, %arg16: memref<1x16xf32, #tpu.memory_space<vmem>>, %arg17: memref<16x1xbf16, #tpu.memory_space<vmem>>, %arg18: memref<1x1xf32, #tpu.memory_space<vmem>>, %arg19: memref<8x1xf32, #tpu.memory_space<vmem>>, %arg20: memref<128x192xf32, #tpu.memory_space<vmem>>, %arg21: memref<32x192xf32, #tpu.memory_space<vmem>>) attributes {dimension_semantics = [], scalar_prefetch = 0 : i64, scratch_operands = 2 : i64, tpu.core_type = #tpu.core_type<tc>} {
    %c0 = arith.constant 0 : index
    %c0_0 = arith.constant 0 : index
    %0 = vector.load %arg0[%c0, %c0_0] : memref<128x1xi32, #tpu.memory_space<vmem>>, vector<128x1xi32>
    %1 = tpu.iota {dimensions = array<i32: 1>} : vector<128x50xi32>
    %2 = vector.broadcast %0 : vector<128x1xi32> to vector<128x50xi32>
    %3 = arith.cmpi eq, %1, %2 : vector<128x50xi32>
    %4 = arith.extui %3 : vector<128x50xi1> to vector<128x50xi32>
    %5 = arith.sitofp %4 : vector<128x50xi32> to vector<128x50xf32>
    %6 = arith.truncf %5 : vector<128x50xf32> to vector<128x50xbf16>
    %c0_1 = arith.constant 0 : index
    %c0_2 = arith.constant 0 : index
    %7 = vector.load %arg4[%c0_1, %c0_2] : memref<50x32xbf16, #tpu.memory_space<vmem>>, vector<50x32xbf16>
    %cst = arith.constant dense<0.000000e+00> : vector<128x32xf32>
    %8 = tpu.matmul %6, %7, %cst {dimension_numbers = #tpu.dot_dimension_numbers<[1], [0], [0], [1], [0, 0, 1, 1], [], []>} : vector<128x50xbf16>, vector<50x32xbf16>, vector<128x32xf32> -> vector<128x32xf32>
    %c0_3 = arith.constant 0 : index
    %c0_4 = arith.constant 0 : index
    %9 = vector.load %arg1[%c0_3, %c0_4] : memref<16x1xi32, #tpu.memory_space<vmem>>, vector<16x1xi32>
    %10 = arith.truncf %8 : vector<128x32xf32> to vector<128x32xbf16>
    %c0_5 = arith.constant 0 : index
    %c0_6 = arith.constant 0 : index
    %11 = vector.load %arg5[%c0_5, %c0_6] : memref<32x192xbf16, #tpu.memory_space<vmem>>, vector<32x192xbf16>
    %cst_7 = arith.constant dense<0.000000e+00> : vector<128x192xf32>
    %12 = tpu.matmul %10, %11, %cst_7 {dimension_numbers = #tpu.dot_dimension_numbers<[1], [0], [0], [1], [0, 0, 1, 1], [], []>} : vector<128x32xbf16>, vector<32x192xbf16>, vector<128x192xf32> -> vector<128x192xf32>
    %c0_8 = arith.constant 0 : index
    %c0_9 = arith.constant 0 : index
    %13 = vector.load %arg7[%c0_8, %c0_9] : memref<1x192xf32, #tpu.memory_space<vmem>>, vector<1x192xf32>
    %14 = vector.broadcast %13 : vector<1x192xf32> to vector<128x192xf32>
    %15 = arith.addf %12, %14 : vector<128x192xf32>
    %c0_10 = arith.constant 0 : index
    %c0_11 = arith.constant 0 : index
    %16 = vector.load %arg20[%c0_10, %c0_11] : memref<128x192xf32, #tpu.memory_space<vmem>>, vector<128x192xf32>
    tpu.vector_store %arg20[%c0_10, %c0_11], %15 {strides = array<i32>} : memref<128x192xf32, #tpu.memory_space<vmem>>, vector<128x192xf32>,
    %c0_12 = arith.constant 0 : index
    %c0_13 = arith.constant 0 : index
    %17 = vector.load %arg6[%c0_12, %c0_13] : memref<64x192xbf16, #tpu.memory_space<vmem>>, vector<64x192xbf16>
    %c0_14 = arith.constant 0 : index
    %c0_15 = arith.constant 0 : index
    %18 = vector.load %arg8[%c0_14, %c0_15] : memref<1x192xf32, #tpu.memory_space<vmem>>, vector<1x192xf32>
    %c0_i32 = arith.constant 0 : i32
    %19 = vector.broadcast %c0_i32 : i32 to vector<16x1xi32>
    %20 = arith.cmpi sgt, %9, %19 : vector<16x1xi32>
    %c1_i32 = arith.constant 1 : i32
    %21 = vector.broadcast %c1_i32 : i32 to vector<16x1xi32>
    %22 = arith.cmpi sgt, %9, %21 : vector<16x1xi32>
    %c2_i32 = arith.constant 2 : i32
    %23 = vector.broadcast %c2_i32 : i32 to vector<16x1xi32>
    %24 = arith.cmpi sgt, %9, %23 : vector<16x1xi32>
    %c3_i32 = arith.constant 3 : i32
    %25 = vector.broadcast %c3_i32 : i32 to vector<16x1xi32>
    %26 = arith.cmpi sgt, %9, %25 : vector<16x1xi32>
    %c4_i32 = arith.constant 4 : i32
    %27 = vector.broadcast %c4_i32 : i32 to vector<16x1xi32>
    %28 = arith.cmpi sgt, %9, %27 : vector<16x1xi32>
    %c5_i32 = arith.constant 5 : i32
    %29 = vector.broadcast %c5_i32 : i32 to vector<16x1xi32>
    %30 = arith.cmpi sgt, %9, %29 : vector<16x1xi32>
    %c6_i32 = arith.constant 6 : i32
    %31 = vector.broadcast %c6_i32 : i32 to vector<16x1xi32>
    %32 = arith.cmpi sgt, %9, %31 : vector<16x1xi32>
    %c7_i32 = arith.constant 7 : i32
    %33 = vector.broadcast %c7_i32 : i32 to vector<16x1xi32>
    %34 = arith.cmpi sgt, %9, %33 : vector<16x1xi32>
    %cst_16 = arith.constant 0.000000e+00 : f32
    %35 = vector.broadcast %cst_16 : f32 to vector<16x64xf32>
    %36 = arith.truncf %35 : vector<16x64xf32> to vector<16x64xbf16>
    %cst_17 = arith.constant dense<0.000000e+00> : vector<16x192xf32>
    %37 = tpu.matmul %36, %17, %cst_17 {dimension_numbers = #tpu.dot_dimension_numbers<[1], [0], [0], [1], [0, 0, 1, 1], [], []>} : vector<16x64xbf16>, vector<64x192xbf16>, vector<16x192xf32> -> vector<16x192xf32>
    %38 = vector.broadcast %18 : vector<1x192xf32> to vector<16x192xf32>
    %39 = arith.addf %37, %38 : vector<16x192xf32>
    %c0_18 = arith.constant 0 : index
    %c0_19 = arith.constant 0 : index
    %40 = vector.load %arg20[%c0_18, %c0_19] : memref<128x192xf32, #tpu.memory_space<vmem>>, vector<16x192xf32>
    %c112 = arith.constant 112 : index
    %c0_20 = arith.constant 0 : index
    %41 = vector.load %arg20[%c112, %c0_20] : memref<128x192xf32, #tpu.memory_space<vmem>>, vector<16x192xf32>
    %42 = vector.extract_strided_slice %40 {offsets = [0, 0], sizes = [16, 32], strides = [1, 1]} : vector<16x192xf32> to vector<16x32xf32>
    %43 = vector.extract_strided_slice %39 {offsets = [0, 0], sizes = [16, 32], strides = [1, 1]} : vector<16x192xf32> to vector<16x32xf32>
    %44 = arith.addf %42, %43 : vector<16x32xf32>
    %45 = arith.negf %44 : vector<16x32xf32>
    %46 = math.exp %45 : vector<16x32xf32>
    %cst_21 = arith.constant 1.000000e+00 : f32
    %47 = vector.broadcast %cst_21 : f32 to vector<16x32xf32>
    %48 = arith.addf %47, %46 : vector<16x32xf32>
    %49 = arith.divf %47, %48 : vector<16x32xf32>
    %50 = vector.extract_strided_slice %40 {offsets = [0, 32], sizes = [16, 32], strides = [1, 1]} : vector<16x192xf32> to vector<16x32xf32>
    %51 = vector.extract_strided_slice %39 {offsets = [0, 32], sizes = [16, 32], strides = [1, 1]} : vector<16x192xf32> to vector<16x32xf32>
    %52 = arith.addf %50, %51 : vector<16x32xf32>
    %53 = arith.negf %52 : vector<16x32xf32>
    %54 = math.exp %53 : vector<16x32xf32>
    %cst_22 = arith.constant 1.000000e+00 : f32
    %55 = vector.broadcast %cst_22 : f32 to vector<16x32xf32>
    %56 = arith.addf %55, %54 : vector<16x32xf32>
    %57 = arith.divf %55, %56 : vector<16x32xf32>
    %58 = vector.extract_strided_slice %40 {offsets = [0, 64], sizes = [16, 32], strides = [1, 1]} : vector<16x192xf32> to vector<16x32xf32>
    %59 = vector.extract_strided_slice %39 {offsets = [0, 64], sizes = [16, 32], strides = [1, 1]} : vector<16x192xf32> to vector<16x32xf32>
    %60 = arith.mulf %49, %59 : vector<16x32xf32>
    %61 = arith.addf %58, %60 : vector<16x32xf32>
    %62 = math.tanh %61 : vector<16x32xf32>
    %63 = vector.extract_strided_slice %41 {offsets = [0, 96], sizes = [16, 32], strides = [1, 1]} : vector<16x192xf32> to vector<16x32xf32>
    %64 = vector.extract_strided_slice %39 {offsets = [0, 96], sizes = [16, 32], strides = [1, 1]} : vector<16x192xf32> to vector<16x32xf32>
    %65 = arith.addf %63, %64 : vector<16x32xf32>
    %66 = arith.negf %65 : vector<16x32xf32>
    %67 = math.exp %66 : vector<16x32xf32>
    %cst_23 = arith.constant 1.000000e+00 : f32
    %68 = vector.broadcast %cst_23 : f32 to vector<16x32xf32>
    %69 = arith.addf %68, %67 : vector<16x32xf32>
    %70 = arith.divf %68, %69 : vector<16x32xf32>
    %71 = vector.extract_strided_slice %41 {offsets = [0, 128], sizes = [16, 32], strides = [1, 1]} : vector<16x192xf32> to vector<16x32xf32>
    %72 = vector.extract_strided_slice %39 {offsets = [0, 128], sizes = [16, 32], strides = [1, 1]} : vector<16x192xf32> to vector<16x32xf32>
    %73 = arith.addf %71, %72 : vector<16x32xf32>
    %74 = arith.negf %73 : vector<16x32xf32>
    %75 = math.exp %74 : vector<16x32xf32>
    %cst_24 = arith.constant 1.000000e+00 : f32
    %76 = vector.broadcast %cst_24 : f32 to vector<16x32xf32>
    %77 = arith.addf %76, %75 : vector<16x32xf32>
    %78 = arith.divf %76, %77 : vector<16x32xf32>
    %79 = vector.extract_strided_slice %41 {offsets = [0, 160], sizes = [16, 32], strides = [1, 1]} : vector<16x192xf32> to vector<16x32xf32>
    %80 = vector.extract_strided_slice %39 {offsets = [0, 160], sizes = [16, 32], strides = [1, 1]} : vector<16x192xf32> to vector<16x32xf32>
    %81 = arith.mulf %70, %80 : vector<16x32xf32>
    %82 = arith.addf %79, %81 : vector<16x32xf32>
    %83 = math.tanh %82 : vector<16x32xf32>
    %cst_25 = arith.constant 1.000000e+00 : f32
    %84 = vector.broadcast %cst_25 : f32 to vector<16x32xf32>
    %85 = arith.subf %84, %57 : vector<16x32xf32>
    %86 = arith.mulf %85, %62 : vector<16x32xf32>
    %87 = vector.extract_strided_slice %35 {offsets = [0, 0], sizes = [16, 32], strides = [1, 1]} : vector<16x64xf32> to vector<16x32xf32>
    %88 = arith.mulf %57, %87 : vector<16x32xf32>
    %89 = arith.addf %86, %88 : vector<16x32xf32>
    %90 = vector.extract_strided_slice %35 {offsets = [0, 0], sizes = [16, 32], strides = [1, 1]} : vector<16x64xf32> to vector<16x32xf32>
    %91 = vector.shape_cast %20 : vector<16x1xi1> to vector<16x1xi1>
    %92 = vector.broadcast %91 : vector<16x1xi1> to vector<16x32xi1>
    %93 = arith.select %92, %89, %90 : vector<16x32xi1>, vector<16x32xf32>
    %cst_26 = arith.constant 1.000000e+00 : f32
    %94 = vector.broadcast %cst_26 : f32 to vector<16x32xf32>
    %95 = arith.subf %94, %78 : vector<16x32xf32>
    %96 = arith.mulf %95, %83 : vector<16x32xf32>
    %97 = vector.extract_strided_slice %35 {offsets = [0, 32], sizes = [16, 32], strides = [1, 1]} : vector<16x64xf32> to vector<16x32xf32>
    %98 = arith.mulf %78, %97 : vector<16x32xf32>
    %99 = arith.addf %96, %98 : vector<16x32xf32>
    %100 = vector.extract_strided_slice %35 {offsets = [0, 32], sizes = [16, 32], strides = [1, 1]} : vector<16x64xf32> to vector<16x32xf32>
    %101 = vector.shape_cast %34 : vector<16x1xi1> to vector<16x1xi1>
    %102 = vector.broadcast %101 : vector<16x1xi1> to vector<16x32xi1>
    %103 = arith.select %102, %99, %100 : vector<16x32xi1>, vector<16x32xf32>
    %104 = tpu.concatenate %93, %103 in 1 : vector<16x32xf32>, vector<16x32xf32> -> vector<16x64xf32>
    %105 = arith.truncf %104 : vector<16x64xf32> to vector<16x64xbf16>
    %cst_27 = arith.constant dense<0.000000e+00> : vector<16x192xf32>
    %106 = tpu.matmul %105, %17, %cst_27 {dimension_numbers = #tpu.dot_dimension_numbers<[1], [0], [0], [1], [0, 0, 1, 1], [], []>} : vector<16x64xbf16>, vector<64x192xbf16>, vector<16x192xf32> -> vector<16x192xf32>
    %107 = vector.broadcast %18 : vector<1x192xf32> to vector<16x192xf32>
    %108 = arith.addf %106, %107 : vector<16x192xf32>
    %c16 = arith.constant 16 : index
    %c0_28 = arith.constant 0 : index
    %109 = vector.load %arg20[%c16, %c0_28] : memref<128x192xf32, #tpu.memory_space<vmem>>, vector<16x192xf32>
    %c96 = arith.constant 96 : index
    %c0_29 = arith.constant 0 : index
    %110 = vector.load %arg20[%c96, %c0_29] : memref<128x192xf32, #tpu.memory_space<vmem>>, vector<16x192xf32>
    %111 = vector.extract_strided_slice %109 {offsets = [0, 0], sizes = [16, 32], strides = [1, 1]} : vector<16x192xf32> to vector<16x32xf32>
    %112 = vector.extract_strided_slice %108 {offsets = [0, 0], sizes = [16, 32], strides = [1, 1]} : vector<16x192xf32> to vector<16x32xf32>
    %113 = arith.addf %111, %112 : vector<16x32xf32>
    %114 = arith.negf %113 : vector<16x32xf32>
    %115 = math.exp %114 : vector<16x32xf32>
    %cst_30 = arith.constant 1.000000e+00 : f32
    %116 = vector.broadcast %cst_30 : f32 to vector<16x32xf32>
    %117 = arith.addf %116, %115 : vector<16x32xf32>
    %118 = arith.divf %116, %117 : vector<16x32xf32>
    %119 = vector.extract_strided_slice %109 {offsets = [0, 32], sizes = [16, 32], strides = [1, 1]} : vector<16x192xf32> to vector<16x32xf32>
    %120 = vector.extract_strided_slice %108 {offsets = [0, 32], sizes = [16, 32], strides = [1, 1]} : vector<16x192xf32> to vector<16x32xf32>
    %121 = arith.addf %119, %120 : vector<16x32xf32>
    %122 = arith.negf %121 : vector<16x32xf32>
    %123 = math.exp %122 : vector<16x32xf32>
    %cst_31 = arith.constant 1.000000e+00 : f32
    %124 = vector.broadcast %cst_31 : f32 to vector<16x32xf32>
    %125 = arith.addf %124, %123 : vector<16x32xf32>
    %126 = arith.divf %124, %125 : vector<16x32xf32>
    %127 = vector.extract_strided_slice %109 {offsets = [0, 64], sizes = [16, 32], strides = [1, 1]} : vector<16x192xf32> to vector<16x32xf32>
    %128 = vector.extract_strided_slice %108 {offsets = [0, 64], sizes = [16, 32], strides = [1, 1]} : vector<16x192xf32> to vector<16x32xf32>
    %129 = arith.mulf %118, %128 : vector<16x32xf32>
    %130 = arith.addf %127, %129 : vector<16x32xf32>
    %131 = math.tanh %130 : vector<16x32xf32>
    %132 = vector.extract_strided_slice %110 {offsets = [0, 96], sizes = [16, 32], strides = [1, 1]} : vector<16x192xf32> to vector<16x32xf32>
    %133 = vector.extract_strided_slice %108 {offsets = [0, 96], sizes = [16, 32], strides = [1, 1]} : vector<16x192xf32> to vector<16x32xf32>
    %134 = arith.addf %132, %133 : vector<16x32xf32>
    %135 = arith.negf %134 : vector<16x32xf32>
    %136 = math.exp %135 : vector<16x32xf32>
    %cst_32 = arith.constant 1.000000e+00 : f32
    %137 = vector.broadcast %cst_32 : f32 to vector<16x32xf32>
    %138 = arith.addf %137, %136 : vector<16x32xf32>
    %139 = arith.divf %137, %138 : vector<16x32xf32>
    %140 = vector.extract_strided_slice %110 {offsets = [0, 128], sizes = [16, 32], strides = [1, 1]} : vector<16x192xf32> to vector<16x32xf32>
    %141 = vector.extract_strided_slice %108 {offsets = [0, 128], sizes = [16, 32], strides = [1, 1]} : vector<16x192xf32> to vector<16x32xf32>
    %142 = arith.addf %140, %141 : vector<16x32xf32>
    %143 = arith.negf %142 : vector<16x32xf32>
    %144 = math.exp %143 : vector<16x32xf32>
    %cst_33 = arith.constant 1.000000e+00 : f32
    %145 = vector.broadcast %cst_33 : f32 to vector<16x32xf32>
    %146 = arith.addf %145, %144 : vector<16x32xf32>
    %147 = arith.divf %145, %146 : vector<16x32xf32>
    %148 = vector.extract_strided_slice %110 {offsets = [0, 160], sizes = [16, 32], strides = [1, 1]} : vector<16x192xf32> to vector<16x32xf32>
    %149 = vector.extract_strided_slice %108 {offsets = [0, 160], sizes = [16, 32], strides = [1, 1]} : vector<16x192xf32> to vector<16x32xf32>
    %150 = arith.mulf %139, %149 : vector<16x32xf32>
    %151 = arith.addf %148, %150 : vector<16x32xf32>
    %152 = math.tanh %151 : vector<16x32xf32>
    %cst_34 = arith.constant 1.000000e+00 : f32
    %153 = vector.broadcast %cst_34 : f32 to vector<16x32xf32>
    %154 = arith.subf %153, %126 : vector<16x32xf32>
    %155 = arith.mulf %154, %131 : vector<16x32xf32>
    %156 = vector.extract_strided_slice %104 {offsets = [0, 0], sizes = [16, 32], strides = [1, 1]} : vector<16x64xf32> to vector<16x32xf32>
    %157 = arith.mulf %126, %156 : vector<16x32xf32>
    %158 = arith.addf %155, %157 : vector<16x32xf32>
    %159 = vector.extract_strided_slice %104 {offsets = [0, 0], sizes = [16, 32], strides = [1, 1]} : vector<16x64xf32> to vector<16x32xf32>
    %160 = vector.shape_cast %22 : vector<16x1xi1> to vector<16x1xi1>
    %161 = vector.broadcast %160 : vector<16x1xi1> to vector<16x32xi1>
    %162 = arith.select %161, %158, %159 : vector<16x32xi1>, vector<16x32xf32>
    %cst_35 = arith.constant 1.000000e+00 : f32
    %163 = vector.broadcast %cst_35 : f32 to vector<16x32xf32>
    %164 = arith.subf %163, %147 : vector<16x32xf32>
    %165 = arith.mulf %164, %152 : vector<16x32xf32>
    %166 = vector.extract_strided_slice %104 {offsets = [0, 32], sizes = [16, 32], strides = [1, 1]} : vector<16x64xf32> to vector<16x32xf32>
    %167 = arith.mulf %147, %166 : vector<16x32xf32>
    %168 = arith.addf %165, %167 : vector<16x32xf32>
    %169 = vector.extract_strided_slice %104 {offsets = [0, 32], sizes = [16, 32], strides = [1, 1]} : vector<16x64xf32> to vector<16x32xf32>
    %170 = vector.shape_cast %32 : vector<16x1xi1> to vector<16x1xi1>
    %171 = vector.broadcast %170 : vector<16x1xi1> to vector<16x32xi1>
    %172 = arith.select %171, %168, %169 : vector<16x32xi1>, vector<16x32xf32>
    %173 = tpu.concatenate %162, %172 in 1 : vector<16x32xf32>, vector<16x32xf32> -> vector<16x64xf32>
    %174 = arith.truncf %173 : vector<16x64xf32> to vector<16x64xbf16>
    %cst_36 = arith.constant dense<0.000000e+00> : vector<16x192xf32>
    %175 = tpu.matmul %174, %17, %cst_36 {dimension_numbers = #tpu.dot_dimension_numbers<[1], [0], [0], [1], [0, 0, 1, 1], [], []>} : vector<16x64xbf16>, vector<64x192xbf16>, vector<16x192xf32> -> vector<16x192xf32>
    %176 = vector.broadcast %18 : vector<1x192xf32> to vector<16x192xf32>
    %177 = arith.addf %175, %176 : vector<16x192xf32>
    %c32 = arith.constant 32 : index
    %c0_37 = arith.constant 0 : index
    %178 = vector.load %arg20[%c32, %c0_37] : memref<128x192xf32, #tpu.memory_space<vmem>>, vector<16x192xf32>
    %c80 = arith.constant 80 : index
    %c0_38 = arith.constant 0 : index
    %179 = vector.load %arg20[%c80, %c0_38] : memref<128x192xf32, #tpu.memory_space<vmem>>, vector<16x192xf32>
    %180 = vector.extract_strided_slice %178 {offsets = [0, 0], sizes = [16, 32], strides = [1, 1]} : vector<16x192xf32> to vector<16x32xf32>
    %181 = vector.extract_strided_slice %177 {offsets = [0, 0], sizes = [16, 32], strides = [1, 1]} : vector<16x192xf32> to vector<16x32xf32>
    %182 = arith.addf %180, %181 : vector<16x32xf32>
    %183 = arith.negf %182 : vector<16x32xf32>
    %184 = math.exp %183 : vector<16x32xf32>
    %cst_39 = arith.constant 1.000000e+00 : f32
    %185 = vector.broadcast %cst_39 : f32 to vector<16x32xf32>
    %186 = arith.addf %185, %184 : vector<16x32xf32>
    %187 = arith.divf %185, %186 : vector<16x32xf32>
    %188 = vector.extract_strided_slice %178 {offsets = [0, 32], sizes = [16, 32], strides = [1, 1]} : vector<16x192xf32> to vector<16x32xf32>
    %189 = vector.extract_strided_slice %177 {offsets = [0, 32], sizes = [16, 32], strides = [1, 1]} : vector<16x192xf32> to vector<16x32xf32>
    %190 = arith.addf %188, %189 : vector<16x32xf32>
    %191 = arith.negf %190 : vector<16x32xf32>
    %192 = math.exp %191 : vector<16x32xf32>
    %cst_40 = arith.constant 1.000000e+00 : f32
    %193 = vector.broadcast %cst_40 : f32 to vector<16x32xf32>
    %194 = arith.addf %193, %192 : vector<16x32xf32>
    %195 = arith.divf %193, %194 : vector<16x32xf32>
    %196 = vector.extract_strided_slice %178 {offsets = [0, 64], sizes = [16, 32], strides = [1, 1]} : vector<16x192xf32> to vector<16x32xf32>
    %197 = vector.extract_strided_slice %177 {offsets = [0, 64], sizes = [16, 32], strides = [1, 1]} : vector<16x192xf32> to vector<16x32xf32>
    %198 = arith.mulf %187, %197 : vector<16x32xf32>
    %199 = arith.addf %196, %198 : vector<16x32xf32>
    %200 = math.tanh %199 : vector<16x32xf32>
    %201 = vector.extract_strided_slice %179 {offsets = [0, 96], sizes = [16, 32], strides = [1, 1]} : vector<16x192xf32> to vector<16x32xf32>
    %202 = vector.extract_strided_slice %177 {offsets = [0, 96], sizes = [16, 32], strides = [1, 1]} : vector<16x192xf32> to vector<16x32xf32>
    %203 = arith.addf %201, %202 : vector<16x32xf32>
    %204 = arith.negf %203 : vector<16x32xf32>
    %205 = math.exp %204 : vector<16x32xf32>
    %cst_41 = arith.constant 1.000000e+00 : f32
    %206 = vector.broadcast %cst_41 : f32 to vector<16x32xf32>
    %207 = arith.addf %206, %205 : vector<16x32xf32>
    %208 = arith.divf %206, %207 : vector<16x32xf32>
    %209 = vector.extract_strided_slice %179 {offsets = [0, 128], sizes = [16, 32], strides = [1, 1]} : vector<16x192xf32> to vector<16x32xf32>
    %210 = vector.extract_strided_slice %177 {offsets = [0, 128], sizes = [16, 32], strides = [1, 1]} : vector<16x192xf32> to vector<16x32xf32>
    %211 = arith.addf %209, %210 : vector<16x32xf32>
    %212 = arith.negf %211 : vector<16x32xf32>
    %213 = math.exp %212 : vector<16x32xf32>
    %cst_42 = arith.constant 1.000000e+00 : f32
    %214 = vector.broadcast %cst_42 : f32 to vector<16x32xf32>
    %215 = arith.addf %214, %213 : vector<16x32xf32>
    %216 = arith.divf %214, %215 : vector<16x32xf32>
    %217 = vector.extract_strided_slice %179 {offsets = [0, 160], sizes = [16, 32], strides = [1, 1]} : vector<16x192xf32> to vector<16x32xf32>
    %218 = vector.extract_strided_slice %177 {offsets = [0, 160], sizes = [16, 32], strides = [1, 1]} : vector<16x192xf32> to vector<16x32xf32>
    %219 = arith.mulf %208, %218 : vector<16x32xf32>
    %220 = arith.addf %217, %219 : vector<16x32xf32>
    %221 = math.tanh %220 : vector<16x32xf32>
    %cst_43 = arith.constant 1.000000e+00 : f32
    %222 = vector.broadcast %cst_43 : f32 to vector<16x32xf32>
    %223 = arith.subf %222, %195 : vector<16x32xf32>
    %224 = arith.mulf %223, %200 : vector<16x32xf32>
    %225 = vector.extract_strided_slice %173 {offsets = [0, 0], sizes = [16, 32], strides = [1, 1]} : vector<16x64xf32> to vector<16x32xf32>
    %226 = arith.mulf %195, %225 : vector<16x32xf32>
    %227 = arith.addf %224, %226 : vector<16x32xf32>
    %228 = vector.extract_strided_slice %173 {offsets = [0, 0], sizes = [16, 32], strides = [1, 1]} : vector<16x64xf32> to vector<16x32xf32>
    %229 = vector.shape_cast %24 : vector<16x1xi1> to vector<16x1xi1>
    %230 = vector.broadcast %229 : vector<16x1xi1> to vector<16x32xi1>
    %231 = arith.select %230, %227, %228 : vector<16x32xi1>, vector<16x32xf32>
    %cst_44 = arith.constant 1.000000e+00 : f32
    %232 = vector.broadcast %cst_44 : f32 to vector<16x32xf32>
    %233 = arith.subf %232, %216 : vector<16x32xf32>
    %234 = arith.mulf %233, %221 : vector<16x32xf32>
    %235 = vector.extract_strided_slice %173 {offsets = [0, 32], sizes = [16, 32], strides = [1, 1]} : vector<16x64xf32> to vector<16x32xf32>
    %236 = arith.mulf %216, %235 : vector<16x32xf32>
    %237 = arith.addf %234, %236 : vector<16x32xf32>
    %238 = vector.extract_strided_slice %173 {offsets = [0, 32], sizes = [16, 32], strides = [1, 1]} : vector<16x64xf32> to vector<16x32xf32>
    %239 = vector.shape_cast %30 : vector<16x1xi1> to vector<16x1xi1>
    %240 = vector.broadcast %239 : vector<16x1xi1> to vector<16x32xi1>
    %241 = arith.select %240, %237, %238 : vector<16x32xi1>, vector<16x32xf32>
    %242 = tpu.concatenate %231, %241 in 1 : vector<16x32xf32>, vector<16x32xf32> -> vector<16x64xf32>
    %243 = arith.truncf %242 : vector<16x64xf32> to vector<16x64xbf16>
    %cst_45 = arith.constant dense<0.000000e+00> : vector<16x192xf32>
    %244 = tpu.matmul %243, %17, %cst_45 {dimension_numbers = #tpu.dot_dimension_numbers<[1], [0], [0], [1], [0, 0, 1, 1], [], []>} : vector<16x64xbf16>, vector<64x192xbf16>, vector<16x192xf32> -> vector<16x192xf32>
    %245 = vector.broadcast %18 : vector<1x192xf32> to vector<16x192xf32>
    %246 = arith.addf %244, %245 : vector<16x192xf32>
    %c48 = arith.constant 48 : index
    %c0_46 = arith.constant 0 : index
    %247 = vector.load %arg20[%c48, %c0_46] : memref<128x192xf32, #tpu.memory_space<vmem>>, vector<16x192xf32>
    %c64 = arith.constant 64 : index
    %c0_47 = arith.constant 0 : index
    %248 = vector.load %arg20[%c64, %c0_47] : memref<128x192xf32, #tpu.memory_space<vmem>>, vector<16x192xf32>
    %249 = vector.extract_strided_slice %247 {offsets = [0, 0], sizes = [16, 32], strides = [1, 1]} : vector<16x192xf32> to vector<16x32xf32>
    %250 = vector.extract_strided_slice %246 {offsets = [0, 0], sizes = [16, 32], strides = [1, 1]} : vector<16x192xf32> to vector<16x32xf32>
    %251 = arith.addf %249, %250 : vector<16x32xf32>
    %252 = arith.negf %251 : vector<16x32xf32>
    %253 = math.exp %252 : vector<16x32xf32>
    %cst_48 = arith.constant 1.000000e+00 : f32
    %254 = vector.broadcast %cst_48 : f32 to vector<16x32xf32>
    %255 = arith.addf %254, %253 : vector<16x32xf32>
    %256 = arith.divf %254, %255 : vector<16x32xf32>
    %257 = vector.extract_strided_slice %247 {offsets = [0, 32], sizes = [16, 32], strides = [1, 1]} : vector<16x192xf32> to vector<16x32xf32>
    %258 = vector.extract_strided_slice %246 {offsets = [0, 32], sizes = [16, 32], strides = [1, 1]} : vector<16x192xf32> to vector<16x32xf32>
    %259 = arith.addf %257, %258 : vector<16x32xf32>
    %260 = arith.negf %259 : vector<16x32xf32>
    %261 = math.exp %260 : vector<16x32xf32>
    %cst_49 = arith.constant 1.000000e+00 : f32
    %262 = vector.broadcast %cst_49 : f32 to vector<16x32xf32>
    %263 = arith.addf %262, %261 : vector<16x32xf32>
    %264 = arith.divf %262, %263 : vector<16x32xf32>
    %265 = vector.extract_strided_slice %247 {offsets = [0, 64], sizes = [16, 32], strides = [1, 1]} : vector<16x192xf32> to vector<16x32xf32>
    %266 = vector.extract_strided_slice %246 {offsets = [0, 64], sizes = [16, 32], strides = [1, 1]} : vector<16x192xf32> to vector<16x32xf32>
    %267 = arith.mulf %256, %266 : vector<16x32xf32>
    %268 = arith.addf %265, %267 : vector<16x32xf32>
    %269 = math.tanh %268 : vector<16x32xf32>
    %270 = vector.extract_strided_slice %248 {offsets = [0, 96], sizes = [16, 32], strides = [1, 1]} : vector<16x192xf32> to vector<16x32xf32>
    %271 = vector.extract_strided_slice %246 {offsets = [0, 96], sizes = [16, 32], strides = [1, 1]} : vector<16x192xf32> to vector<16x32xf32>
    %272 = arith.addf %270, %271 : vector<16x32xf32>
    %273 = arith.negf %272 : vector<16x32xf32>
    %274 = math.exp %273 : vector<16x32xf32>
    %cst_50 = arith.constant 1.000000e+00 : f32
    %275 = vector.broadcast %cst_50 : f32 to vector<16x32xf32>
    %276 = arith.addf %275, %274 : vector<16x32xf32>
    %277 = arith.divf %275, %276 : vector<16x32xf32>
    %278 = vector.extract_strided_slice %248 {offsets = [0, 128], sizes = [16, 32], strides = [1, 1]} : vector<16x192xf32> to vector<16x32xf32>
    %279 = vector.extract_strided_slice %246 {offsets = [0, 128], sizes = [16, 32], strides = [1, 1]} : vector<16x192xf32> to vector<16x32xf32>
    %280 = arith.addf %278, %279 : vector<16x32xf32>
    %281 = arith.negf %280 : vector<16x32xf32>
    %282 = math.exp %281 : vector<16x32xf32>
    %cst_51 = arith.constant 1.000000e+00 : f32
    %283 = vector.broadcast %cst_51 : f32 to vector<16x32xf32>
    %284 = arith.addf %283, %282 : vector<16x32xf32>
    %285 = arith.divf %283, %284 : vector<16x32xf32>
    %286 = vector.extract_strided_slice %248 {offsets = [0, 160], sizes = [16, 32], strides = [1, 1]} : vector<16x192xf32> to vector<16x32xf32>
    %287 = vector.extract_strided_slice %246 {offsets = [0, 160], sizes = [16, 32], strides = [1, 1]} : vector<16x192xf32> to vector<16x32xf32>
    %288 = arith.mulf %277, %287 : vector<16x32xf32>
    %289 = arith.addf %286, %288 : vector<16x32xf32>
    %290 = math.tanh %289 : vector<16x32xf32>
    %cst_52 = arith.constant 1.000000e+00 : f32
    %291 = vector.broadcast %cst_52 : f32 to vector<16x32xf32>
    %292 = arith.subf %291, %264 : vector<16x32xf32>
    %293 = arith.mulf %292, %269 : vector<16x32xf32>
    %294 = vector.extract_strided_slice %242 {offsets = [0, 0], sizes = [16, 32], strides = [1, 1]} : vector<16x64xf32> to vector<16x32xf32>
    %295 = arith.mulf %264, %294 : vector<16x32xf32>
    %296 = arith.addf %293, %295 : vector<16x32xf32>
    %297 = vector.extract_strided_slice %242 {offsets = [0, 0], sizes = [16, 32], strides = [1, 1]} : vector<16x64xf32> to vector<16x32xf32>
    %298 = vector.shape_cast %26 : vector<16x1xi1> to vector<16x1xi1>
    %299 = vector.broadcast %298 : vector<16x1xi1> to vector<16x32xi1>
    %300 = arith.select %299, %296, %297 : vector<16x32xi1>, vector<16x32xf32>
    %cst_53 = arith.constant 1.000000e+00 : f32
    %301 = vector.broadcast %cst_53 : f32 to vector<16x32xf32>
    %302 = arith.subf %301, %285 : vector<16x32xf32>
    %303 = arith.mulf %302, %290 : vector<16x32xf32>
    %304 = vector.extract_strided_slice %242 {offsets = [0, 32], sizes = [16, 32], strides = [1, 1]} : vector<16x64xf32> to vector<16x32xf32>
    %305 = arith.mulf %285, %304 : vector<16x32xf32>
    %306 = arith.addf %303, %305 : vector<16x32xf32>
    %307 = vector.extract_strided_slice %242 {offsets = [0, 32], sizes = [16, 32], strides = [1, 1]} : vector<16x64xf32> to vector<16x32xf32>
    %308 = vector.shape_cast %28 : vector<16x1xi1> to vector<16x1xi1>
    %309 = vector.broadcast %308 : vector<16x1xi1> to vector<16x32xi1>
    %310 = arith.select %309, %306, %307 : vector<16x32xi1>, vector<16x32xf32>
    %311 = tpu.concatenate %300, %310 in 1 : vector<16x32xf32>, vector<16x32xf32> -> vector<16x64xf32>
    %312 = arith.truncf %311 : vector<16x64xf32> to vector<16x64xbf16>
    %cst_54 = arith.constant dense<0.000000e+00> : vector<16x192xf32>
    %313 = tpu.matmul %312, %17, %cst_54 {dimension_numbers = #tpu.dot_dimension_numbers<[1], [0], [0], [1], [0, 0, 1, 1], [], []>} : vector<16x64xbf16>, vector<64x192xbf16>, vector<16x192xf32> -> vector<16x192xf32>
    %314 = vector.broadcast %18 : vector<1x192xf32> to vector<16x192xf32>
    %315 = arith.addf %313, %314 : vector<16x192xf32>
    %c64_55 = arith.constant 64 : index
    %c0_56 = arith.constant 0 : index
    %316 = vector.load %arg20[%c64_55, %c0_56] : memref<128x192xf32, #tpu.memory_space<vmem>>, vector<16x192xf32>
    %c48_57 = arith.constant 48 : index
    %c0_58 = arith.constant 0 : index
    %317 = vector.load %arg20[%c48_57, %c0_58] : memref<128x192xf32, #tpu.memory_space<vmem>>, vector<16x192xf32>
    %318 = vector.extract_strided_slice %316 {offsets = [0, 0], sizes = [16, 32], strides = [1, 1]} : vector<16x192xf32> to vector<16x32xf32>
    %319 = vector.extract_strided_slice %315 {offsets = [0, 0], sizes = [16, 32], strides = [1, 1]} : vector<16x192xf32> to vector<16x32xf32>
    %320 = arith.addf %318, %319 : vector<16x32xf32>
    %321 = arith.negf %320 : vector<16x32xf32>
    %322 = math.exp %321 : vector<16x32xf32>
    %cst_59 = arith.constant 1.000000e+00 : f32
    %323 = vector.broadcast %cst_59 : f32 to vector<16x32xf32>
    %324 = arith.addf %323, %322 : vector<16x32xf32>
    %325 = arith.divf %323, %324 : vector<16x32xf32>
    %326 = vector.extract_strided_slice %316 {offsets = [0, 32], sizes = [16, 32], strides = [1, 1]} : vector<16x192xf32> to vector<16x32xf32>
    %327 = vector.extract_strided_slice %315 {offsets = [0, 32], sizes = [16, 32], strides = [1, 1]} : vector<16x192xf32> to vector<16x32xf32>
    %328 = arith.addf %326, %327 : vector<16x32xf32>
    %329 = arith.negf %328 : vector<16x32xf32>
    %330 = math.exp %329 : vector<16x32xf32>
    %cst_60 = arith.constant 1.000000e+00 : f32
    %331 = vector.broadcast %cst_60 : f32 to vector<16x32xf32>
    %332 = arith.addf %331, %330 : vector<16x32xf32>
    %333 = arith.divf %331, %332 : vector<16x32xf32>
    %334 = vector.extract_strided_slice %316 {offsets = [0, 64], sizes = [16, 32], strides = [1, 1]} : vector<16x192xf32> to vector<16x32xf32>
    %335 = vector.extract_strided_slice %315 {offsets = [0, 64], sizes = [16, 32], strides = [1, 1]} : vector<16x192xf32> to vector<16x32xf32>
    %336 = arith.mulf %325, %335 : vector<16x32xf32>
    %337 = arith.addf %334, %336 : vector<16x32xf32>
    %338 = math.tanh %337 : vector<16x32xf32>
    %339 = vector.extract_strided_slice %317 {offsets = [0, 96], sizes = [16, 32], strides = [1, 1]} : vector<16x192xf32> to vector<16x32xf32>
    %340 = vector.extract_strided_slice %315 {offsets = [0, 96], sizes = [16, 32], strides = [1, 1]} : vector<16x192xf32> to vector<16x32xf32>
    %341 = arith.addf %339, %340 : vector<16x32xf32>
    %342 = arith.negf %341 : vector<16x32xf32>
    %343 = math.exp %342 : vector<16x32xf32>
    %cst_61 = arith.constant 1.000000e+00 : f32
    %344 = vector.broadcast %cst_61 : f32 to vector<16x32xf32>
    %345 = arith.addf %344, %343 : vector<16x32xf32>
    %346 = arith.divf %344, %345 : vector<16x32xf32>
    %347 = vector.extract_strided_slice %317 {offsets = [0, 128], sizes = [16, 32], strides = [1, 1]} : vector<16x192xf32> to vector<16x32xf32>
    %348 = vector.extract_strided_slice %315 {offsets = [0, 128], sizes = [16, 32], strides = [1, 1]} : vector<16x192xf32> to vector<16x32xf32>
    %349 = arith.addf %347, %348 : vector<16x32xf32>
    %350 = arith.negf %349 : vector<16x32xf32>
    %351 = math.exp %350 : vector<16x32xf32>
    %cst_62 = arith.constant 1.000000e+00 : f32
    %352 = vector.broadcast %cst_62 : f32 to vector<16x32xf32>
    %353 = arith.addf %352, %351 : vector<16x32xf32>
    %354 = arith.divf %352, %353 : vector<16x32xf32>
    %355 = vector.extract_strided_slice %317 {offsets = [0, 160], sizes = [16, 32], strides = [1, 1]} : vector<16x192xf32> to vector<16x32xf32>
    %356 = vector.extract_strided_slice %315 {offsets = [0, 160], sizes = [16, 32], strides = [1, 1]} : vector<16x192xf32> to vector<16x32xf32>
    %357 = arith.mulf %346, %356 : vector<16x32xf32>
    %358 = arith.addf %355, %357 : vector<16x32xf32>
    %359 = math.tanh %358 : vector<16x32xf32>
    %cst_63 = arith.constant 1.000000e+00 : f32
    %360 = vector.broadcast %cst_63 : f32 to vector<16x32xf32>
    %361 = arith.subf %360, %333 : vector<16x32xf32>
    %362 = arith.mulf %361, %338 : vector<16x32xf32>
    %363 = vector.extract_strided_slice %311 {offsets = [0, 0], sizes = [16, 32], strides = [1, 1]} : vector<16x64xf32> to vector<16x32xf32>
    %364 = arith.mulf %333, %363 : vector<16x32xf32>
    %365 = arith.addf %362, %364 : vector<16x32xf32>
    %366 = vector.extract_strided_slice %311 {offsets = [0, 0], sizes = [16, 32], strides = [1, 1]} : vector<16x64xf32> to vector<16x32xf32>
    %367 = vector.shape_cast %28 : vector<16x1xi1> to vector<16x1xi1>
    %368 = vector.broadcast %367 : vector<16x1xi1> to vector<16x32xi1>
    %369 = arith.select %368, %365, %366 : vector<16x32xi1>, vector<16x32xf32>
    %cst_64 = arith.constant 1.000000e+00 : f32
    %370 = vector.broadcast %cst_64 : f32 to vector<16x32xf32>
    %371 = arith.subf %370, %354 : vector<16x32xf32>
    %372 = arith.mulf %371, %359 : vector<16x32xf32>
    %373 = vector.extract_strided_slice %311 {offsets = [0, 32], sizes = [16, 32], strides = [1, 1]} : vector<16x64xf32> to vector<16x32xf32>
    %374 = arith.mulf %354, %373 : vector<16x32xf32>
    %375 = arith.addf %372, %374 : vector<16x32xf32>
    %376 = vector.extract_strided_slice %311 {offsets = [0, 32], sizes = [16, 32], strides = [1, 1]} : vector<16x64xf32> to vector<16x32xf32>
    %377 = vector.shape_cast %26 : vector<16x1xi1> to vector<16x1xi1>
    %378 = vector.broadcast %377 : vector<16x1xi1> to vector<16x32xi1>
    %379 = arith.select %378, %375, %376 : vector<16x32xi1>, vector<16x32xf32>
    %380 = tpu.concatenate %369, %379 in 1 : vector<16x32xf32>, vector<16x32xf32> -> vector<16x64xf32>
    %381 = arith.truncf %380 : vector<16x64xf32> to vector<16x64xbf16>
    %cst_65 = arith.constant dense<0.000000e+00> : vector<16x192xf32>
    %382 = tpu.matmul %381, %17, %cst_65 {dimension_numbers = #tpu.dot_dimension_numbers<[1], [0], [0], [1], [0, 0, 1, 1], [], []>} : vector<16x64xbf16>, vector<64x192xbf16>, vector<16x192xf32> -> vector<16x192xf32>
    %383 = vector.broadcast %18 : vector<1x192xf32> to vector<16x192xf32>
    %384 = arith.addf %382, %383 : vector<16x192xf32>
    %c80_66 = arith.constant 80 : index
    %c0_67 = arith.constant 0 : index
    %385 = vector.load %arg20[%c80_66, %c0_67] : memref<128x192xf32, #tpu.memory_space<vmem>>, vector<16x192xf32>
    %c32_68 = arith.constant 32 : index
    %c0_69 = arith.constant 0 : index
    %386 = vector.load %arg20[%c32_68, %c0_69] : memref<128x192xf32, #tpu.memory_space<vmem>>, vector<16x192xf32>
    %387 = vector.extract_strided_slice %385 {offsets = [0, 0], sizes = [16, 32], strides = [1, 1]} : vector<16x192xf32> to vector<16x32xf32>
    %388 = vector.extract_strided_slice %384 {offsets = [0, 0], sizes = [16, 32], strides = [1, 1]} : vector<16x192xf32> to vector<16x32xf32>
    %389 = arith.addf %387, %388 : vector<16x32xf32>
    %390 = arith.negf %389 : vector<16x32xf32>
    %391 = math.exp %390 : vector<16x32xf32>
    %cst_70 = arith.constant 1.000000e+00 : f32
    %392 = vector.broadcast %cst_70 : f32 to vector<16x32xf32>
    %393 = arith.addf %392, %391 : vector<16x32xf32>
    %394 = arith.divf %392, %393 : vector<16x32xf32>
    %395 = vector.extract_strided_slice %385 {offsets = [0, 32], sizes = [16, 32], strides = [1, 1]} : vector<16x192xf32> to vector<16x32xf32>
    %396 = vector.extract_strided_slice %384 {offsets = [0, 32], sizes = [16, 32], strides = [1, 1]} : vector<16x192xf32> to vector<16x32xf32>
    %397 = arith.addf %395, %396 : vector<16x32xf32>
    %398 = arith.negf %397 : vector<16x32xf32>
    %399 = math.exp %398 : vector<16x32xf32>
    %cst_71 = arith.constant 1.000000e+00 : f32
    %400 = vector.broadcast %cst_71 : f32 to vector<16x32xf32>
    %401 = arith.addf %400, %399 : vector<16x32xf32>
    %402 = arith.divf %400, %401 : vector<16x32xf32>
    %403 = vector.extract_strided_slice %385 {offsets = [0, 64], sizes = [16, 32], strides = [1, 1]} : vector<16x192xf32> to vector<16x32xf32>
    %404 = vector.extract_strided_slice %384 {offsets = [0, 64], sizes = [16, 32], strides = [1, 1]} : vector<16x192xf32> to vector<16x32xf32>
    %405 = arith.mulf %394, %404 : vector<16x32xf32>
    %406 = arith.addf %403, %405 : vector<16x32xf32>
    %407 = math.tanh %406 : vector<16x32xf32>
    %408 = vector.extract_strided_slice %386 {offsets = [0, 96], sizes = [16, 32], strides = [1, 1]} : vector<16x192xf32> to vector<16x32xf32>
    %409 = vector.extract_strided_slice %384 {offsets = [0, 96], sizes = [16, 32], strides = [1, 1]} : vector<16x192xf32> to vector<16x32xf32>
    %410 = arith.addf %408, %409 : vector<16x32xf32>
    %411 = arith.negf %410 : vector<16x32xf32>
    %412 = math.exp %411 : vector<16x32xf32>
    %cst_72 = arith.constant 1.000000e+00 : f32
    %413 = vector.broadcast %cst_72 : f32 to vector<16x32xf32>
    %414 = arith.addf %413, %412 : vector<16x32xf32>
    %415 = arith.divf %413, %414 : vector<16x32xf32>
    %416 = vector.extract_strided_slice %386 {offsets = [0, 128], sizes = [16, 32], strides = [1, 1]} : vector<16x192xf32> to vector<16x32xf32>
    %417 = vector.extract_strided_slice %384 {offsets = [0, 128], sizes = [16, 32], strides = [1, 1]} : vector<16x192xf32> to vector<16x32xf32>
    %418 = arith.addf %416, %417 : vector<16x32xf32>
    %419 = arith.negf %418 : vector<16x32xf32>
    %420 = math.exp %419 : vector<16x32xf32>
    %cst_73 = arith.constant 1.000000e+00 : f32
    %421 = vector.broadcast %cst_73 : f32 to vector<16x32xf32>
    %422 = arith.addf %421, %420 : vector<16x32xf32>
    %423 = arith.divf %421, %422 : vector<16x32xf32>
    %424 = vector.extract_strided_slice %386 {offsets = [0, 160], sizes = [16, 32], strides = [1, 1]} : vector<16x192xf32> to vector<16x32xf32>
    %425 = vector.extract_strided_slice %384 {offsets = [0, 160], sizes = [16, 32], strides = [1, 1]} : vector<16x192xf32> to vector<16x32xf32>
    %426 = arith.mulf %415, %425 : vector<16x32xf32>
    %427 = arith.addf %424, %426 : vector<16x32xf32>
    %428 = math.tanh %427 : vector<16x32xf32>
    %cst_74 = arith.constant 1.000000e+00 : f32
    %429 = vector.broadcast %cst_74 : f32 to vector<16x32xf32>
    %430 = arith.subf %429, %402 : vector<16x32xf32>
    %431 = arith.mulf %430, %407 : vector<16x32xf32>
    %432 = vector.extract_strided_slice %380 {offsets = [0, 0], sizes = [16, 32], strides = [1, 1]} : vector<16x64xf32> to vector<16x32xf32>
    %433 = arith.mulf %402, %432 : vector<16x32xf32>
    %434 = arith.addf %431, %433 : vector<16x32xf32>
    %435 = vector.extract_strided_slice %380 {offsets = [0, 0], sizes = [16, 32], strides = [1, 1]} : vector<16x64xf32> to vector<16x32xf32>
    %436 = vector.shape_cast %30 : vector<16x1xi1> to vector<16x1xi1>
    %437 = vector.broadcast %436 : vector<16x1xi1> to vector<16x32xi1>
    %438 = arith.select %437, %434, %435 : vector<16x32xi1>, vector<16x32xf32>
    %cst_75 = arith.constant 1.000000e+00 : f32
    %439 = vector.broadcast %cst_75 : f32 to vector<16x32xf32>
    %440 = arith.subf %439, %423 : vector<16x32xf32>
    %441 = arith.mulf %440, %428 : vector<16x32xf32>
    %442 = vector.extract_strided_slice %380 {offsets = [0, 32], sizes = [16, 32], strides = [1, 1]} : vector<16x64xf32> to vector<16x32xf32>
    %443 = arith.mulf %423, %442 : vector<16x32xf32>
    %444 = arith.addf %441, %443 : vector<16x32xf32>
    %445 = vector.extract_strided_slice %380 {offsets = [0, 32], sizes = [16, 32], strides = [1, 1]} : vector<16x64xf32> to vector<16x32xf32>
    %446 = vector.shape_cast %24 : vector<16x1xi1> to vector<16x1xi1>
    %447 = vector.broadcast %446 : vector<16x1xi1> to vector<16x32xi1>
    %448 = arith.select %447, %444, %445 : vector<16x32xi1>, vector<16x32xf32>
    %449 = tpu.concatenate %438, %448 in 1 : vector<16x32xf32>, vector<16x32xf32> -> vector<16x64xf32>
    %450 = arith.truncf %449 : vector<16x64xf32> to vector<16x64xbf16>
    %cst_76 = arith.constant dense<0.000000e+00> : vector<16x192xf32>
    %451 = tpu.matmul %450, %17, %cst_76 {dimension_numbers = #tpu.dot_dimension_numbers<[1], [0], [0], [1], [0, 0, 1, 1], [], []>} : vector<16x64xbf16>, vector<64x192xbf16>, vector<16x192xf32> -> vector<16x192xf32>
    %452 = vector.broadcast %18 : vector<1x192xf32> to vector<16x192xf32>
    %453 = arith.addf %451, %452 : vector<16x192xf32>
    %c96_77 = arith.constant 96 : index
    %c0_78 = arith.constant 0 : index
    %454 = vector.load %arg20[%c96_77, %c0_78] : memref<128x192xf32, #tpu.memory_space<vmem>>, vector<16x192xf32>
    %c16_79 = arith.constant 16 : index
    %c0_80 = arith.constant 0 : index
    %455 = vector.load %arg20[%c16_79, %c0_80] : memref<128x192xf32, #tpu.memory_space<vmem>>, vector<16x192xf32>
    %456 = vector.extract_strided_slice %454 {offsets = [0, 0], sizes = [16, 32], strides = [1, 1]} : vector<16x192xf32> to vector<16x32xf32>
    %457 = vector.extract_strided_slice %453 {offsets = [0, 0], sizes = [16, 32], strides = [1, 1]} : vector<16x192xf32> to vector<16x32xf32>
    %458 = arith.addf %456, %457 : vector<16x32xf32>
    %459 = arith.negf %458 : vector<16x32xf32>
    %460 = math.exp %459 : vector<16x32xf32>
    %cst_81 = arith.constant 1.000000e+00 : f32
    %461 = vector.broadcast %cst_81 : f32 to vector<16x32xf32>
    %462 = arith.addf %461, %460 : vector<16x32xf32>
    %463 = arith.divf %461, %462 : vector<16x32xf32>
    %464 = vector.extract_strided_slice %454 {offsets = [0, 32], sizes = [16, 32], strides = [1, 1]} : vector<16x192xf32> to vector<16x32xf32>
    %465 = vector.extract_strided_slice %453 {offsets = [0, 32], sizes = [16, 32], strides = [1, 1]} : vector<16x192xf32> to vector<16x32xf32>
    %466 = arith.addf %464, %465 : vector<16x32xf32>
    %467 = arith.negf %466 : vector<16x32xf32>
    %468 = math.exp %467 : vector<16x32xf32>
    %cst_82 = arith.constant 1.000000e+00 : f32
    %469 = vector.broadcast %cst_82 : f32 to vector<16x32xf32>
    %470 = arith.addf %469, %468 : vector<16x32xf32>
    %471 = arith.divf %469, %470 : vector<16x32xf32>
    %472 = vector.extract_strided_slice %454 {offsets = [0, 64], sizes = [16, 32], strides = [1, 1]} : vector<16x192xf32> to vector<16x32xf32>
    %473 = vector.extract_strided_slice %453 {offsets = [0, 64], sizes = [16, 32], strides = [1, 1]} : vector<16x192xf32> to vector<16x32xf32>
    %474 = arith.mulf %463, %473 : vector<16x32xf32>
    %475 = arith.addf %472, %474 : vector<16x32xf32>
    %476 = math.tanh %475 : vector<16x32xf32>
    %477 = vector.extract_strided_slice %455 {offsets = [0, 96], sizes = [16, 32], strides = [1, 1]} : vector<16x192xf32> to vector<16x32xf32>
    %478 = vector.extract_strided_slice %453 {offsets = [0, 96], sizes = [16, 32], strides = [1, 1]} : vector<16x192xf32> to vector<16x32xf32>
    %479 = arith.addf %477, %478 : vector<16x32xf32>
    %480 = arith.negf %479 : vector<16x32xf32>
    %481 = math.exp %480 : vector<16x32xf32>
    %cst_83 = arith.constant 1.000000e+00 : f32
    %482 = vector.broadcast %cst_83 : f32 to vector<16x32xf32>
    %483 = arith.addf %482, %481 : vector<16x32xf32>
    %484 = arith.divf %482, %483 : vector<16x32xf32>
    %485 = vector.extract_strided_slice %455 {offsets = [0, 128], sizes = [16, 32], strides = [1, 1]} : vector<16x192xf32> to vector<16x32xf32>
    %486 = vector.extract_strided_slice %453 {offsets = [0, 128], sizes = [16, 32], strides = [1, 1]} : vector<16x192xf32> to vector<16x32xf32>
    %487 = arith.addf %485, %486 : vector<16x32xf32>
    %488 = arith.negf %487 : vector<16x32xf32>
    %489 = math.exp %488 : vector<16x32xf32>
    %cst_84 = arith.constant 1.000000e+00 : f32
    %490 = vector.broadcast %cst_84 : f32 to vector<16x32xf32>
    %491 = arith.addf %490, %489 : vector<16x32xf32>
    %492 = arith.divf %490, %491 : vector<16x32xf32>
    %493 = vector.extract_strided_slice %455 {offsets = [0, 160], sizes = [16, 32], strides = [1, 1]} : vector<16x192xf32> to vector<16x32xf32>
    %494 = vector.extract_strided_slice %453 {offsets = [0, 160], sizes = [16, 32], strides = [1, 1]} : vector<16x192xf32> to vector<16x32xf32>
    %495 = arith.mulf %484, %494 : vector<16x32xf32>
    %496 = arith.addf %493, %495 : vector<16x32xf32>
    %497 = math.tanh %496 : vector<16x32xf32>
    %cst_85 = arith.constant 1.000000e+00 : f32
    %498 = vector.broadcast %cst_85 : f32 to vector<16x32xf32>
    %499 = arith.subf %498, %471 : vector<16x32xf32>
    %500 = arith.mulf %499, %476 : vector<16x32xf32>
    %501 = vector.extract_strided_slice %449 {offsets = [0, 0], sizes = [16, 32], strides = [1, 1]} : vector<16x64xf32> to vector<16x32xf32>
    %502 = arith.mulf %471, %501 : vector<16x32xf32>
    %503 = arith.addf %500, %502 : vector<16x32xf32>
    %504 = vector.extract_strided_slice %449 {offsets = [0, 0], sizes = [16, 32], strides = [1, 1]} : vector<16x64xf32> to vector<16x32xf32>
    %505 = vector.shape_cast %32 : vector<16x1xi1> to vector<16x1xi1>
    %506 = vector.broadcast %505 : vector<16x1xi1> to vector<16x32xi1>
    %507 = arith.select %506, %503, %504 : vector<16x32xi1>, vector<16x32xf32>
    %cst_86 = arith.constant 1.000000e+00 : f32
    %508 = vector.broadcast %cst_86 : f32 to vector<16x32xf32>
    %509 = arith.subf %508, %492 : vector<16x32xf32>
    %510 = arith.mulf %509, %497 : vector<16x32xf32>
    %511 = vector.extract_strided_slice %449 {offsets = [0, 32], sizes = [16, 32], strides = [1, 1]} : vector<16x64xf32> to vector<16x32xf32>
    %512 = arith.mulf %492, %511 : vector<16x32xf32>
    %513 = arith.addf %510, %512 : vector<16x32xf32>
    %514 = vector.extract_strided_slice %449 {offsets = [0, 32], sizes = [16, 32], strides = [1, 1]} : vector<16x64xf32> to vector<16x32xf32>
    %515 = vector.shape_cast %22 : vector<16x1xi1> to vector<16x1xi1>
    %516 = vector.broadcast %515 : vector<16x1xi1> to vector<16x32xi1>
    %517 = arith.select %516, %513, %514 : vector<16x32xi1>, vector<16x32xf32>
    %518 = tpu.concatenate %507, %517 in 1 : vector<16x32xf32>, vector<16x32xf32> -> vector<16x64xf32>
    %519 = arith.truncf %518 : vector<16x64xf32> to vector<16x64xbf16>
    %cst_87 = arith.constant dense<0.000000e+00> : vector<16x192xf32>
    %520 = tpu.matmul %519, %17, %cst_87 {dimension_numbers = #tpu.dot_dimension_numbers<[1], [0], [0], [1], [0, 0, 1, 1], [], []>} : vector<16x64xbf16>, vector<64x192xbf16>, vector<16x192xf32> -> vector<16x192xf32>
    %521 = vector.broadcast %18 : vector<1x192xf32> to vector<16x192xf32>
    %522 = arith.addf %520, %521 : vector<16x192xf32>
    %c112_88 = arith.constant 112 : index
    %c0_89 = arith.constant 0 : index
    %523 = vector.load %arg20[%c112_88, %c0_89] : memref<128x192xf32, #tpu.memory_space<vmem>>, vector<16x192xf32>
    %c0_90 = arith.constant 0 : index
    %c0_91 = arith.constant 0 : index
    %524 = vector.load %arg20[%c0_90, %c0_91] : memref<128x192xf32, #tpu.memory_space<vmem>>, vector<16x192xf32>
    %525 = vector.extract_strided_slice %523 {offsets = [0, 0], sizes = [16, 32], strides = [1, 1]} : vector<16x192xf32> to vector<16x32xf32>
    %526 = vector.extract_strided_slice %522 {offsets = [0, 0], sizes = [16, 32], strides = [1, 1]} : vector<16x192xf32> to vector<16x32xf32>
    %527 = arith.addf %525, %526 : vector<16x32xf32>
    %528 = arith.negf %527 : vector<16x32xf32>
    %529 = math.exp %528 : vector<16x32xf32>
    %cst_92 = arith.constant 1.000000e+00 : f32
    %530 = vector.broadcast %cst_92 : f32 to vector<16x32xf32>
    %531 = arith.addf %530, %529 : vector<16x32xf32>
    %532 = arith.divf %530, %531 : vector<16x32xf32>
    %533 = vector.extract_strided_slice %523 {offsets = [0, 32], sizes = [16, 32], strides = [1, 1]} : vector<16x192xf32> to vector<16x32xf32>
    %534 = vector.extract_strided_slice %522 {offsets = [0, 32], sizes = [16, 32], strides = [1, 1]} : vector<16x192xf32> to vector<16x32xf32>
    %535 = arith.addf %533, %534 : vector<16x32xf32>
    %536 = arith.negf %535 : vector<16x32xf32>
    %537 = math.exp %536 : vector<16x32xf32>
    %cst_93 = arith.constant 1.000000e+00 : f32
    %538 = vector.broadcast %cst_93 : f32 to vector<16x32xf32>
    %539 = arith.addf %538, %537 : vector<16x32xf32>
    %540 = arith.divf %538, %539 : vector<16x32xf32>
    %541 = vector.extract_strided_slice %523 {offsets = [0, 64], sizes = [16, 32], strides = [1, 1]} : vector<16x192xf32> to vector<16x32xf32>
    %542 = vector.extract_strided_slice %522 {offsets = [0, 64], sizes = [16, 32], strides = [1, 1]} : vector<16x192xf32> to vector<16x32xf32>
    %543 = arith.mulf %532, %542 : vector<16x32xf32>
    %544 = arith.addf %541, %543 : vector<16x32xf32>
    %545 = math.tanh %544 : vector<16x32xf32>
    %546 = vector.extract_strided_slice %524 {offsets = [0, 96], sizes = [16, 32], strides = [1, 1]} : vector<16x192xf32> to vector<16x32xf32>
    %547 = vector.extract_strided_slice %522 {offsets = [0, 96], sizes = [16, 32], strides = [1, 1]} : vector<16x192xf32> to vector<16x32xf32>
    %548 = arith.addf %546, %547 : vector<16x32xf32>
    %549 = arith.negf %548 : vector<16x32xf32>
    %550 = math.exp %549 : vector<16x32xf32>
    %cst_94 = arith.constant 1.000000e+00 : f32
    %551 = vector.broadcast %cst_94 : f32 to vector<16x32xf32>
    %552 = arith.addf %551, %550 : vector<16x32xf32>
    %553 = arith.divf %551, %552 : vector<16x32xf32>
    %554 = vector.extract_strided_slice %524 {offsets = [0, 128], sizes = [16, 32], strides = [1, 1]} : vector<16x192xf32> to vector<16x32xf32>
    %555 = vector.extract_strided_slice %522 {offsets = [0, 128], sizes = [16, 32], strides = [1, 1]} : vector<16x192xf32> to vector<16x32xf32>
    %556 = arith.addf %554, %555 : vector<16x32xf32>
    %557 = arith.negf %556 : vector<16x32xf32>
    %558 = math.exp %557 : vector<16x32xf32>
    %cst_95 = arith.constant 1.000000e+00 : f32
    %559 = vector.broadcast %cst_95 : f32 to vector<16x32xf32>
    %560 = arith.addf %559, %558 : vector<16x32xf32>
    %561 = arith.divf %559, %560 : vector<16x32xf32>
    %562 = vector.extract_strided_slice %524 {offsets = [0, 160], sizes = [16, 32], strides = [1, 1]} : vector<16x192xf32> to vector<16x32xf32>
    %563 = vector.extract_strided_slice %522 {offsets = [0, 160], sizes = [16, 32], strides = [1, 1]} : vector<16x192xf32> to vector<16x32xf32>
    %564 = arith.mulf %553, %563 : vector<16x32xf32>
    %565 = arith.addf %562, %564 : vector<16x32xf32>
    %566 = math.tanh %565 : vector<16x32xf32>
    %cst_96 = arith.constant 1.000000e+00 : f32
    %567 = vector.broadcast %cst_96 : f32 to vector<16x32xf32>
    %568 = arith.subf %567, %540 : vector<16x32xf32>
    %569 = arith.mulf %568, %545 : vector<16x32xf32>
    %570 = vector.extract_strided_slice %518 {offsets = [0, 0], sizes = [16, 32], strides = [1, 1]} : vector<16x64xf32> to vector<16x32xf32>
    %571 = arith.mulf %540, %570 : vector<16x32xf32>
    %572 = arith.addf %569, %571 : vector<16x32xf32>
    %573 = vector.extract_strided_slice %518 {offsets = [0, 0], sizes = [16, 32], strides = [1, 1]} : vector<16x64xf32> to vector<16x32xf32>
    %574 = vector.shape_cast %34 : vector<16x1xi1> to vector<16x1xi1>
    %575 = vector.broadcast %574 : vector<16x1xi1> to vector<16x32xi1>
    %576 = arith.select %575, %572, %573 : vector<16x32xi1>, vector<16x32xf32>
    %cst_97 = arith.constant 1.000000e+00 : f32
    %577 = vector.broadcast %cst_97 : f32 to vector<16x32xf32>
    %578 = arith.subf %577, %561 : vector<16x32xf32>
    %579 = arith.mulf %578, %566 : vector<16x32xf32>
    %580 = vector.extract_strided_slice %518 {offsets = [0, 32], sizes = [16, 32], strides = [1, 1]} : vector<16x64xf32> to vector<16x32xf32>
    %581 = arith.mulf %561, %580 : vector<16x32xf32>
    %582 = arith.addf %579, %581 : vector<16x32xf32>
    %583 = vector.extract_strided_slice %518 {offsets = [0, 32], sizes = [16, 32], strides = [1, 1]} : vector<16x64xf32> to vector<16x32xf32>
    %584 = vector.shape_cast %20 : vector<16x1xi1> to vector<16x1xi1>
    %585 = vector.broadcast %584 : vector<16x1xi1> to vector<16x32xi1>
    %586 = arith.select %585, %582, %583 : vector<16x32xi1>, vector<16x32xf32>
    %587 = tpu.concatenate %576, %586 in 1 : vector<16x32xf32>, vector<16x32xf32> -> vector<16x64xf32>
    %588 = vector.extract_strided_slice %587 {offsets = [0, 0], sizes = [16, 32], strides = [1, 1]} : vector<16x64xf32> to vector<16x32xf32>
    %589 = vector.extract_strided_slice %587 {offsets = [0, 32], sizes = [16, 32], strides = [1, 1]} : vector<16x64xf32> to vector<16x32xf32>
    %590 = arith.addf %588, %589 : vector<16x32xf32>
    %c0_98 = arith.constant 0 : index
    %c0_99 = arith.constant 0 : index
    %591 = vector.load %arg3[%c0_98, %c0_99] : memref<1x16xi32, #tpu.memory_space<vmem>>, vector<1x16xi32>
    %592 = tpu.iota {dimensions = array<i32: 0>} : vector<32x16xi32>
    %593 = vector.broadcast %591 : vector<1x16xi32> to vector<32x16xi32>
    %594 = arith.cmpi eq, %592, %593 : vector<32x16xi32>
    %595 = arith.extui %594 : vector<32x16xi1> to vector<32x16xi32>
    %596 = arith.sitofp %595 : vector<32x16xi32> to vector<32x16xf32>
    %597 = arith.truncf %596 : vector<32x16xf32> to vector<32x16xbf16>
    %598 = arith.truncf %590 : vector<16x32xf32> to vector<16x32xbf16>
    %cst_100 = arith.constant dense<0.000000e+00> : vector<32x32xf32>
    %599 = tpu.matmul %597, %598, %cst_100 {dimension_numbers = #tpu.dot_dimension_numbers<[1], [0], [0], [1], [0, 0, 1, 1], [], []>} : vector<32x16xbf16>, vector<16x32xbf16>, vector<32x32xf32> -> vector<32x32xf32>
    %c0_101 = arith.constant 0 : index
    %c0_102 = arith.constant 0 : index
    %600 = vector.load %arg2[%c0_101, %c0_102] : memref<8x1xi32, #tpu.memory_space<vmem>>, vector<8x1xi32>
    %601 = arith.truncf %599 : vector<32x32xf32> to vector<32x32xbf16>
    %c0_103 = arith.constant 0 : index
    %c0_104 = arith.constant 0 : index
    %602 = vector.load %arg9[%c0_103, %c0_104] : memref<32x192xbf16, #tpu.memory_space<vmem>>, vector<32x192xbf16>
    %cst_105 = arith.constant dense<0.000000e+00> : vector<32x192xf32>
    %603 = tpu.matmul %601, %602, %cst_105 {dimension_numbers = #tpu.dot_dimension_numbers<[1], [0], [0], [1], [0, 0, 1, 1], [], []>} : vector<32x32xbf16>, vector<32x192xbf16>, vector<32x192xf32> -> vector<32x192xf32>
    %c0_106 = arith.constant 0 : index
    %c0_107 = arith.constant 0 : index
    %604 = vector.load %arg11[%c0_106, %c0_107] : memref<1x192xf32, #tpu.memory_space<vmem>>, vector<1x192xf32>
    %605 = vector.broadcast %604 : vector<1x192xf32> to vector<32x192xf32>
    %606 = arith.addf %603, %605 : vector<32x192xf32>
    %c0_108 = arith.constant 0 : index
    %c0_109 = arith.constant 0 : index
    %607 = vector.load %arg21[%c0_108, %c0_109] : memref<32x192xf32, #tpu.memory_space<vmem>>, vector<32x192xf32>
    tpu.vector_store %arg21[%c0_108, %c0_109], %606 {strides = array<i32>} : memref<32x192xf32, #tpu.memory_space<vmem>>, vector<32x192xf32>,
    %c0_110 = arith.constant 0 : index
    %c0_111 = arith.constant 0 : index
    %608 = vector.load %arg10[%c0_110, %c0_111] : memref<64x192xbf16, #tpu.memory_space<vmem>>, vector<64x192xbf16>
    %c0_112 = arith.constant 0 : index
    %c0_113 = arith.constant 0 : index
    %609 = vector.load %arg12[%c0_112, %c0_113] : memref<1x192xf32, #tpu.memory_space<vmem>>, vector<1x192xf32>
    %c0_i32_114 = arith.constant 0 : i32
    %610 = vector.broadcast %c0_i32_114 : i32 to vector<8x1xi32>
    %611 = arith.cmpi sgt, %600, %610 : vector<8x1xi32>
    %c1_i32_115 = arith.constant 1 : i32
    %612 = vector.broadcast %c1_i32_115 : i32 to vector<8x1xi32>
    %613 = arith.cmpi sgt, %600, %612 : vector<8x1xi32>
    %c2_i32_116 = arith.constant 2 : i32
    %614 = vector.broadcast %c2_i32_116 : i32 to vector<8x1xi32>
    %615 = arith.cmpi sgt, %600, %614 : vector<8x1xi32>
    %c3_i32_117 = arith.constant 3 : i32
    %616 = vector.broadcast %c3_i32_117 : i32 to vector<8x1xi32>
    %617 = arith.cmpi sgt, %600, %616 : vector<8x1xi32>
    %cst_118 = arith.constant 0.000000e+00 : f32
    %618 = vector.broadcast %cst_118 : f32 to vector<8x64xf32>
    %cst_119 = arith.constant 0.000000e+00 : f32
    %619 = vector.broadcast %cst_119 : f32 to vector<8x32xf32>
    %620 = arith.truncf %618 : vector<8x64xf32> to vector<8x64xbf16>
    %cst_120 = arith.constant dense<0.000000e+00> : vector<8x192xf32>
    %621 = tpu.matmul %620, %608, %cst_120 {dimension_numbers = #tpu.dot_dimension_numbers<[1], [0], [0], [1], [0, 0, 1, 1], [], []>} : vector<8x64xbf16>, vector<64x192xbf16>, vector<8x192xf32> -> vector<8x192xf32>
    %622 = vector.broadcast %609 : vector<1x192xf32> to vector<8x192xf32>
    %623 = arith.addf %621, %622 : vector<8x192xf32>
    %c0_121 = arith.constant 0 : index
    %c0_122 = arith.constant 0 : index
    %624 = vector.load %arg21[%c0_121, %c0_122] : memref<32x192xf32, #tpu.memory_space<vmem>>, vector<8x192xf32>
    %c24 = arith.constant 24 : index
    %c0_123 = arith.constant 0 : index
    %625 = vector.load %arg21[%c24, %c0_123] : memref<32x192xf32, #tpu.memory_space<vmem>>, vector<8x192xf32>
    %626 = vector.extract_strided_slice %624 {offsets = [0, 0], sizes = [8, 32], strides = [1, 1]} : vector<8x192xf32> to vector<8x32xf32>
    %627 = vector.extract_strided_slice %623 {offsets = [0, 0], sizes = [8, 32], strides = [1, 1]} : vector<8x192xf32> to vector<8x32xf32>
    %628 = arith.addf %626, %627 : vector<8x32xf32>
    %629 = arith.negf %628 : vector<8x32xf32>
    %630 = math.exp %629 : vector<8x32xf32>
    %cst_124 = arith.constant 1.000000e+00 : f32
    %631 = vector.broadcast %cst_124 : f32 to vector<8x32xf32>
    %632 = arith.addf %631, %630 : vector<8x32xf32>
    %633 = arith.divf %631, %632 : vector<8x32xf32>
    %634 = vector.extract_strided_slice %624 {offsets = [0, 32], sizes = [8, 32], strides = [1, 1]} : vector<8x192xf32> to vector<8x32xf32>
    %635 = vector.extract_strided_slice %623 {offsets = [0, 32], sizes = [8, 32], strides = [1, 1]} : vector<8x192xf32> to vector<8x32xf32>
    %636 = arith.addf %634, %635 : vector<8x32xf32>
    %637 = arith.negf %636 : vector<8x32xf32>
    %638 = math.exp %637 : vector<8x32xf32>
    %cst_125 = arith.constant 1.000000e+00 : f32
    %639 = vector.broadcast %cst_125 : f32 to vector<8x32xf32>
    %640 = arith.addf %639, %638 : vector<8x32xf32>
    %641 = arith.divf %639, %640 : vector<8x32xf32>
    %642 = vector.extract_strided_slice %624 {offsets = [0, 64], sizes = [8, 32], strides = [1, 1]} : vector<8x192xf32> to vector<8x32xf32>
    %643 = vector.extract_strided_slice %623 {offsets = [0, 64], sizes = [8, 32], strides = [1, 1]} : vector<8x192xf32> to vector<8x32xf32>
    %644 = arith.mulf %633, %643 : vector<8x32xf32>
    %645 = arith.addf %642, %644 : vector<8x32xf32>
    %646 = math.tanh %645 : vector<8x32xf32>
    %647 = vector.extract_strided_slice %625 {offsets = [0, 96], sizes = [8, 32], strides = [1, 1]} : vector<8x192xf32> to vector<8x32xf32>
    %648 = vector.extract_strided_slice %623 {offsets = [0, 96], sizes = [8, 32], strides = [1, 1]} : vector<8x192xf32> to vector<8x32xf32>
    %649 = arith.addf %647, %648 : vector<8x32xf32>
    %650 = arith.negf %649 : vector<8x32xf32>
    %651 = math.exp %650 : vector<8x32xf32>
    %cst_126 = arith.constant 1.000000e+00 : f32
    %652 = vector.broadcast %cst_126 : f32 to vector<8x32xf32>
    %653 = arith.addf %652, %651 : vector<8x32xf32>
    %654 = arith.divf %652, %653 : vector<8x32xf32>
    %655 = vector.extract_strided_slice %625 {offsets = [0, 128], sizes = [8, 32], strides = [1, 1]} : vector<8x192xf32> to vector<8x32xf32>
    %656 = vector.extract_strided_slice %623 {offsets = [0, 128], sizes = [8, 32], strides = [1, 1]} : vector<8x192xf32> to vector<8x32xf32>
    %657 = arith.addf %655, %656 : vector<8x32xf32>
    %658 = arith.negf %657 : vector<8x32xf32>
    %659 = math.exp %658 : vector<8x32xf32>
    %cst_127 = arith.constant 1.000000e+00 : f32
    %660 = vector.broadcast %cst_127 : f32 to vector<8x32xf32>
    %661 = arith.addf %660, %659 : vector<8x32xf32>
    %662 = arith.divf %660, %661 : vector<8x32xf32>
    %663 = vector.extract_strided_slice %625 {offsets = [0, 160], sizes = [8, 32], strides = [1, 1]} : vector<8x192xf32> to vector<8x32xf32>
    %664 = vector.extract_strided_slice %623 {offsets = [0, 160], sizes = [8, 32], strides = [1, 1]} : vector<8x192xf32> to vector<8x32xf32>
    %665 = arith.mulf %654, %664 : vector<8x32xf32>
    %666 = arith.addf %663, %665 : vector<8x32xf32>
    %667 = math.tanh %666 : vector<8x32xf32>
    %cst_128 = arith.constant 1.000000e+00 : f32
    %668 = vector.broadcast %cst_128 : f32 to vector<8x32xf32>
    %669 = arith.subf %668, %641 : vector<8x32xf32>
    %670 = arith.mulf %669, %646 : vector<8x32xf32>
    %671 = vector.extract_strided_slice %618 {offsets = [0, 0], sizes = [8, 32], strides = [1, 1]} : vector<8x64xf32> to vector<8x32xf32>
    %672 = arith.mulf %641, %671 : vector<8x32xf32>
    %673 = arith.addf %670, %672 : vector<8x32xf32>
    %674 = vector.extract_strided_slice %618 {offsets = [0, 0], sizes = [8, 32], strides = [1, 1]} : vector<8x64xf32> to vector<8x32xf32>
    %675 = vector.shape_cast %611 : vector<8x1xi1> to vector<8x1xi1>
    %676 = vector.broadcast %675 : vector<8x1xi1> to vector<8x32xi1>
    %677 = arith.select %676, %673, %674 : vector<8x32xi1>, vector<8x32xf32>
    %cst_129 = arith.constant 1.000000e+00 : f32
    %678 = vector.broadcast %cst_129 : f32 to vector<8x32xf32>
    %679 = arith.subf %678, %662 : vector<8x32xf32>
    %680 = arith.mulf %679, %667 : vector<8x32xf32>
    %681 = vector.extract_strided_slice %618 {offsets = [0, 32], sizes = [8, 32], strides = [1, 1]} : vector<8x64xf32> to vector<8x32xf32>
    %682 = arith.mulf %662, %681 : vector<8x32xf32>
    %683 = arith.addf %680, %682 : vector<8x32xf32>
    %684 = vector.extract_strided_slice %618 {offsets = [0, 32], sizes = [8, 32], strides = [1, 1]} : vector<8x64xf32> to vector<8x32xf32>
    %685 = vector.shape_cast %617 : vector<8x1xi1> to vector<8x1xi1>
    %686 = vector.broadcast %685 : vector<8x1xi1> to vector<8x32xi1>
    %687 = arith.select %686, %683, %684 : vector<8x32xi1>, vector<8x32xf32>
    %688 = tpu.concatenate %677, %687 in 1 : vector<8x32xf32>, vector<8x32xf32> -> vector<8x64xf32>
    %c4_i32_130 = arith.constant 4 : i32
    %689 = vector.broadcast %c4_i32_130 : i32 to vector<8x1xi32>
    %690 = arith.cmpi eq, %600, %689 : vector<8x1xi32>
    %691 = vector.shape_cast %690 : vector<8x1xi1> to vector<8x1xi1>
    %692 = vector.broadcast %691 : vector<8x1xi1> to vector<8x32xi1>
    %693 = arith.select %692, %687, %619 : vector<8x32xi1>, vector<8x32xf32>
    %694 = arith.truncf %688 : vector<8x64xf32> to vector<8x64xbf16>
    %cst_131 = arith.constant dense<0.000000e+00> : vector<8x192xf32>
    %695 = tpu.matmul %694, %608, %cst_131 {dimension_numbers = #tpu.dot_dimension_numbers<[1], [0], [0], [1], [0, 0, 1, 1], [], []>} : vector<8x64xbf16>, vector<64x192xbf16>, vector<8x192xf32> -> vector<8x192xf32>
    %696 = vector.broadcast %609 : vector<1x192xf32> to vector<8x192xf32>
    %697 = arith.addf %695, %696 : vector<8x192xf32>
    %c8 = arith.constant 8 : index
    %c0_132 = arith.constant 0 : index
    %698 = vector.load %arg21[%c8, %c0_132] : memref<32x192xf32, #tpu.memory_space<vmem>>, vector<8x192xf32>
    %c16_133 = arith.constant 16 : index
    %c0_134 = arith.constant 0 : index
    %699 = vector.load %arg21[%c16_133, %c0_134] : memref<32x192xf32, #tpu.memory_space<vmem>>, vector<8x192xf32>
    %700 = vector.extract_strided_slice %698 {offsets = [0, 0], sizes = [8, 32], strides = [1, 1]} : vector<8x192xf32> to vector<8x32xf32>
    %701 = vector.extract_strided_slice %697 {offsets = [0, 0], sizes = [8, 32], strides = [1, 1]} : vector<8x192xf32> to vector<8x32xf32>
    %702 = arith.addf %700, %701 : vector<8x32xf32>
    %703 = arith.negf %702 : vector<8x32xf32>
    %704 = math.exp %703 : vector<8x32xf32>
    %cst_135 = arith.constant 1.000000e+00 : f32
    %705 = vector.broadcast %cst_135 : f32 to vector<8x32xf32>
    %706 = arith.addf %705, %704 : vector<8x32xf32>
    %707 = arith.divf %705, %706 : vector<8x32xf32>
    %708 = vector.extract_strided_slice %698 {offsets = [0, 32], sizes = [8, 32], strides = [1, 1]} : vector<8x192xf32> to vector<8x32xf32>
    %709 = vector.extract_strided_slice %697 {offsets = [0, 32], sizes = [8, 32], strides = [1, 1]} : vector<8x192xf32> to vector<8x32xf32>
    %710 = arith.addf %708, %709 : vector<8x32xf32>
    %711 = arith.negf %710 : vector<8x32xf32>
    %712 = math.exp %711 : vector<8x32xf32>
    %cst_136 = arith.constant 1.000000e+00 : f32
    %713 = vector.broadcast %cst_136 : f32 to vector<8x32xf32>
    %714 = arith.addf %713, %712 : vector<8x32xf32>
    %715 = arith.divf %713, %714 : vector<8x32xf32>
    %716 = vector.extract_strided_slice %698 {offsets = [0, 64], sizes = [8, 32], strides = [1, 1]} : vector<8x192xf32> to vector<8x32xf32>
    %717 = vector.extract_strided_slice %697 {offsets = [0, 64], sizes = [8, 32], strides = [1, 1]} : vector<8x192xf32> to vector<8x32xf32>
    %718 = arith.mulf %707, %717 : vector<8x32xf32>
    %719 = arith.addf %716, %718 : vector<8x32xf32>
    %720 = math.tanh %719 : vector<8x32xf32>
    %721 = vector.extract_strided_slice %699 {offsets = [0, 96], sizes = [8, 32], strides = [1, 1]} : vector<8x192xf32> to vector<8x32xf32>
    %722 = vector.extract_strided_slice %697 {offsets = [0, 96], sizes = [8, 32], strides = [1, 1]} : vector<8x192xf32> to vector<8x32xf32>
    %723 = arith.addf %721, %722 : vector<8x32xf32>
    %724 = arith.negf %723 : vector<8x32xf32>
    %725 = math.exp %724 : vector<8x32xf32>
    %cst_137 = arith.constant 1.000000e+00 : f32
    %726 = vector.broadcast %cst_137 : f32 to vector<8x32xf32>
    %727 = arith.addf %726, %725 : vector<8x32xf32>
    %728 = arith.divf %726, %727 : vector<8x32xf32>
    %729 = vector.extract_strided_slice %699 {offsets = [0, 128], sizes = [8, 32], strides = [1, 1]} : vector<8x192xf32> to vector<8x32xf32>
    %730 = vector.extract_strided_slice %697 {offsets = [0, 128], sizes = [8, 32], strides = [1, 1]} : vector<8x192xf32> to vector<8x32xf32>
    %731 = arith.addf %729, %730 : vector<8x32xf32>
    %732 = arith.negf %731 : vector<8x32xf32>
    %733 = math.exp %732 : vector<8x32xf32>
    %cst_138 = arith.constant 1.000000e+00 : f32
    %734 = vector.broadcast %cst_138 : f32 to vector<8x32xf32>
    %735 = arith.addf %734, %733 : vector<8x32xf32>
    %736 = arith.divf %734, %735 : vector<8x32xf32>
    %737 = vector.extract_strided_slice %699 {offsets = [0, 160], sizes = [8, 32], strides = [1, 1]} : vector<8x192xf32> to vector<8x32xf32>
    %738 = vector.extract_strided_slice %697 {offsets = [0, 160], sizes = [8, 32], strides = [1, 1]} : vector<8x192xf32> to vector<8x32xf32>
    %739 = arith.mulf %728, %738 : vector<8x32xf32>
    %740 = arith.addf %737, %739 : vector<8x32xf32>
    %741 = math.tanh %740 : vector<8x32xf32>
    %cst_139 = arith.constant 1.000000e+00 : f32
    %742 = vector.broadcast %cst_139 : f32 to vector<8x32xf32>
    %743 = arith.subf %742, %715 : vector<8x32xf32>
    %744 = arith.mulf %743, %720 : vector<8x32xf32>
    %745 = vector.extract_strided_slice %688 {offsets = [0, 0], sizes = [8, 32], strides = [1, 1]} : vector<8x64xf32> to vector<8x32xf32>
    %746 = arith.mulf %715, %745 : vector<8x32xf32>
    %747 = arith.addf %744, %746 : vector<8x32xf32>
    %748 = vector.extract_strided_slice %688 {offsets = [0, 0], sizes = [8, 32], strides = [1, 1]} : vector<8x64xf32> to vector<8x32xf32>
    %749 = vector.shape_cast %613 : vector<8x1xi1> to vector<8x1xi1>
    %750 = vector.broadcast %749 : vector<8x1xi1> to vector<8x32xi1>
    %751 = arith.select %750, %747, %748 : vector<8x32xi1>, vector<8x32xf32>
    %cst_140 = arith.constant 1.000000e+00 : f32
    %752 = vector.broadcast %cst_140 : f32 to vector<8x32xf32>
    %753 = arith.subf %752, %736 : vector<8x32xf32>
    %754 = arith.mulf %753, %741 : vector<8x32xf32>
    %755 = vector.extract_strided_slice %688 {offsets = [0, 32], sizes = [8, 32], strides = [1, 1]} : vector<8x64xf32> to vector<8x32xf32>
    %756 = arith.mulf %736, %755 : vector<8x32xf32>
    %757 = arith.addf %754, %756 : vector<8x32xf32>
    %758 = vector.extract_strided_slice %688 {offsets = [0, 32], sizes = [8, 32], strides = [1, 1]} : vector<8x64xf32> to vector<8x32xf32>
    %759 = vector.shape_cast %615 : vector<8x1xi1> to vector<8x1xi1>
    %760 = vector.broadcast %759 : vector<8x1xi1> to vector<8x32xi1>
    %761 = arith.select %760, %757, %758 : vector<8x32xi1>, vector<8x32xf32>
    %762 = tpu.concatenate %751, %761 in 1 : vector<8x32xf32>, vector<8x32xf32> -> vector<8x64xf32>
    %c3_i32_141 = arith.constant 3 : i32
    %763 = vector.broadcast %c3_i32_141 : i32 to vector<8x1xi32>
    %764 = arith.cmpi eq, %600, %763 : vector<8x1xi32>
    %765 = vector.shape_cast %764 : vector<8x1xi1> to vector<8x1xi1>
    %766 = vector.broadcast %765 : vector<8x1xi1> to vector<8x32xi1>
    %767 = arith.select %766, %761, %693 : vector<8x32xi1>, vector<8x32xf32>
    %768 = arith.truncf %762 : vector<8x64xf32> to vector<8x64xbf16>
    %cst_142 = arith.constant dense<0.000000e+00> : vector<8x192xf32>
    %769 = tpu.matmul %768, %608, %cst_142 {dimension_numbers = #tpu.dot_dimension_numbers<[1], [0], [0], [1], [0, 0, 1, 1], [], []>} : vector<8x64xbf16>, vector<64x192xbf16>, vector<8x192xf32> -> vector<8x192xf32>
    %770 = vector.broadcast %609 : vector<1x192xf32> to vector<8x192xf32>
    %771 = arith.addf %769, %770 : vector<8x192xf32>
    %c16_143 = arith.constant 16 : index
    %c0_144 = arith.constant 0 : index
    %772 = vector.load %arg21[%c16_143, %c0_144] : memref<32x192xf32, #tpu.memory_space<vmem>>, vector<8x192xf32>
    %c8_145 = arith.constant 8 : index
    %c0_146 = arith.constant 0 : index
    %773 = vector.load %arg21[%c8_145, %c0_146] : memref<32x192xf32, #tpu.memory_space<vmem>>, vector<8x192xf32>
    %774 = vector.extract_strided_slice %772 {offsets = [0, 0], sizes = [8, 32], strides = [1, 1]} : vector<8x192xf32> to vector<8x32xf32>
    %775 = vector.extract_strided_slice %771 {offsets = [0, 0], sizes = [8, 32], strides = [1, 1]} : vector<8x192xf32> to vector<8x32xf32>
    %776 = arith.addf %774, %775 : vector<8x32xf32>
    %777 = arith.negf %776 : vector<8x32xf32>
    %778 = math.exp %777 : vector<8x32xf32>
    %cst_147 = arith.constant 1.000000e+00 : f32
    %779 = vector.broadcast %cst_147 : f32 to vector<8x32xf32>
    %780 = arith.addf %779, %778 : vector<8x32xf32>
    %781 = arith.divf %779, %780 : vector<8x32xf32>
    %782 = vector.extract_strided_slice %772 {offsets = [0, 32], sizes = [8, 32], strides = [1, 1]} : vector<8x192xf32> to vector<8x32xf32>
    %783 = vector.extract_strided_slice %771 {offsets = [0, 32], sizes = [8, 32], strides = [1, 1]} : vector<8x192xf32> to vector<8x32xf32>
    %784 = arith.addf %782, %783 : vector<8x32xf32>
    %785 = arith.negf %784 : vector<8x32xf32>
    %786 = math.exp %785 : vector<8x32xf32>
    %cst_148 = arith.constant 1.000000e+00 : f32
    %787 = vector.broadcast %cst_148 : f32 to vector<8x32xf32>
    %788 = arith.addf %787, %786 : vector<8x32xf32>
    %789 = arith.divf %787, %788 : vector<8x32xf32>
    %790 = vector.extract_strided_slice %772 {offsets = [0, 64], sizes = [8, 32], strides = [1, 1]} : vector<8x192xf32> to vector<8x32xf32>
    %791 = vector.extract_strided_slice %771 {offsets = [0, 64], sizes = [8, 32], strides = [1, 1]} : vector<8x192xf32> to vector<8x32xf32>
    %792 = arith.mulf %781, %791 : vector<8x32xf32>
    %793 = arith.addf %790, %792 : vector<8x32xf32>
    %794 = math.tanh %793 : vector<8x32xf32>
    %795 = vector.extract_strided_slice %773 {offsets = [0, 96], sizes = [8, 32], strides = [1, 1]} : vector<8x192xf32> to vector<8x32xf32>
    %796 = vector.extract_strided_slice %771 {offsets = [0, 96], sizes = [8, 32], strides = [1, 1]} : vector<8x192xf32> to vector<8x32xf32>
    %797 = arith.addf %795, %796 : vector<8x32xf32>
    %798 = arith.negf %797 : vector<8x32xf32>
    %799 = math.exp %798 : vector<8x32xf32>
    %cst_149 = arith.constant 1.000000e+00 : f32
    %800 = vector.broadcast %cst_149 : f32 to vector<8x32xf32>
    %801 = arith.addf %800, %799 : vector<8x32xf32>
    %802 = arith.divf %800, %801 : vector<8x32xf32>
    %803 = vector.extract_strided_slice %773 {offsets = [0, 128], sizes = [8, 32], strides = [1, 1]} : vector<8x192xf32> to vector<8x32xf32>
    %804 = vector.extract_strided_slice %771 {offsets = [0, 128], sizes = [8, 32], strides = [1, 1]} : vector<8x192xf32> to vector<8x32xf32>
    %805 = arith.addf %803, %804 : vector<8x32xf32>
    %806 = arith.negf %805 : vector<8x32xf32>
    %807 = math.exp %806 : vector<8x32xf32>
    %cst_150 = arith.constant 1.000000e+00 : f32
    %808 = vector.broadcast %cst_150 : f32 to vector<8x32xf32>
    %809 = arith.addf %808, %807 : vector<8x32xf32>
    %810 = arith.divf %808, %809 : vector<8x32xf32>
    %811 = vector.extract_strided_slice %773 {offsets = [0, 160], sizes = [8, 32], strides = [1, 1]} : vector<8x192xf32> to vector<8x32xf32>
    %812 = vector.extract_strided_slice %771 {offsets = [0, 160], sizes = [8, 32], strides = [1, 1]} : vector<8x192xf32> to vector<8x32xf32>
    %813 = arith.mulf %802, %812 : vector<8x32xf32>
    %814 = arith.addf %811, %813 : vector<8x32xf32>
    %815 = math.tanh %814 : vector<8x32xf32>
    %cst_151 = arith.constant 1.000000e+00 : f32
    %816 = vector.broadcast %cst_151 : f32 to vector<8x32xf32>
    %817 = arith.subf %816, %789 : vector<8x32xf32>
    %818 = arith.mulf %817, %794 : vector<8x32xf32>
    %819 = vector.extract_strided_slice %762 {offsets = [0, 0], sizes = [8, 32], strides = [1, 1]} : vector<8x64xf32> to vector<8x32xf32>
    %820 = arith.mulf %789, %819 : vector<8x32xf32>
    %821 = arith.addf %818, %820 : vector<8x32xf32>
    %822 = vector.extract_strided_slice %762 {offsets = [0, 0], sizes = [8, 32], strides = [1, 1]} : vector<8x64xf32> to vector<8x32xf32>
    %823 = vector.shape_cast %615 : vector<8x1xi1> to vector<8x1xi1>
    %824 = vector.broadcast %823 : vector<8x1xi1> to vector<8x32xi1>
    %825 = arith.select %824, %821, %822 : vector<8x32xi1>, vector<8x32xf32>
    %cst_152 = arith.constant 1.000000e+00 : f32
    %826 = vector.broadcast %cst_152 : f32 to vector<8x32xf32>
    %827 = arith.subf %826, %810 : vector<8x32xf32>
    %828 = arith.mulf %827, %815 : vector<8x32xf32>
    %829 = vector.extract_strided_slice %762 {offsets = [0, 32], sizes = [8, 32], strides = [1, 1]} : vector<8x64xf32> to vector<8x32xf32>
    %830 = arith.mulf %810, %829 : vector<8x32xf32>
    %831 = arith.addf %828, %830 : vector<8x32xf32>
    %832 = vector.extract_strided_slice %762 {offsets = [0, 32], sizes = [8, 32], strides = [1, 1]} : vector<8x64xf32> to vector<8x32xf32>
    %833 = vector.shape_cast %613 : vector<8x1xi1> to vector<8x1xi1>
    %834 = vector.broadcast %833 : vector<8x1xi1> to vector<8x32xi1>
    %835 = arith.select %834, %831, %832 : vector<8x32xi1>, vector<8x32xf32>
    %836 = tpu.concatenate %825, %835 in 1 : vector<8x32xf32>, vector<8x32xf32> -> vector<8x64xf32>
    %c2_i32_153 = arith.constant 2 : i32
    %837 = vector.broadcast %c2_i32_153 : i32 to vector<8x1xi32>
    %838 = arith.cmpi eq, %600, %837 : vector<8x1xi32>
    %839 = vector.shape_cast %838 : vector<8x1xi1> to vector<8x1xi1>
    %840 = vector.broadcast %839 : vector<8x1xi1> to vector<8x32xi1>
    %841 = arith.select %840, %835, %767 : vector<8x32xi1>, vector<8x32xf32>
    %842 = arith.truncf %836 : vector<8x64xf32> to vector<8x64xbf16>
    %cst_154 = arith.constant dense<0.000000e+00> : vector<8x192xf32>
    %843 = tpu.matmul %842, %608, %cst_154 {dimension_numbers = #tpu.dot_dimension_numbers<[1], [0], [0], [1], [0, 0, 1, 1], [], []>} : vector<8x64xbf16>, vector<64x192xbf16>, vector<8x192xf32> -> vector<8x192xf32>
    %844 = vector.broadcast %609 : vector<1x192xf32> to vector<8x192xf32>
    %845 = arith.addf %843, %844 : vector<8x192xf32>
    %c24_155 = arith.constant 24 : index
    %c0_156 = arith.constant 0 : index
    %846 = vector.load %arg21[%c24_155, %c0_156] : memref<32x192xf32, #tpu.memory_space<vmem>>, vector<8x192xf32>
    %c0_157 = arith.constant 0 : index
    %c0_158 = arith.constant 0 : index
    %847 = vector.load %arg21[%c0_157, %c0_158] : memref<32x192xf32, #tpu.memory_space<vmem>>, vector<8x192xf32>
    %848 = vector.extract_strided_slice %846 {offsets = [0, 0], sizes = [8, 32], strides = [1, 1]} : vector<8x192xf32> to vector<8x32xf32>
    %849 = vector.extract_strided_slice %845 {offsets = [0, 0], sizes = [8, 32], strides = [1, 1]} : vector<8x192xf32> to vector<8x32xf32>
    %850 = arith.addf %848, %849 : vector<8x32xf32>
    %851 = arith.negf %850 : vector<8x32xf32>
    %852 = math.exp %851 : vector<8x32xf32>
    %cst_159 = arith.constant 1.000000e+00 : f32
    %853 = vector.broadcast %cst_159 : f32 to vector<8x32xf32>
    %854 = arith.addf %853, %852 : vector<8x32xf32>
    %855 = arith.divf %853, %854 : vector<8x32xf32>
    %856 = vector.extract_strided_slice %846 {offsets = [0, 32], sizes = [8, 32], strides = [1, 1]} : vector<8x192xf32> to vector<8x32xf32>
    %857 = vector.extract_strided_slice %845 {offsets = [0, 32], sizes = [8, 32], strides = [1, 1]} : vector<8x192xf32> to vector<8x32xf32>
    %858 = arith.addf %856, %857 : vector<8x32xf32>
    %859 = arith.negf %858 : vector<8x32xf32>
    %860 = math.exp %859 : vector<8x32xf32>
    %cst_160 = arith.constant 1.000000e+00 : f32
    %861 = vector.broadcast %cst_160 : f32 to vector<8x32xf32>
    %862 = arith.addf %861, %860 : vector<8x32xf32>
    %863 = arith.divf %861, %862 : vector<8x32xf32>
    %864 = vector.extract_strided_slice %846 {offsets = [0, 64], sizes = [8, 32], strides = [1, 1]} : vector<8x192xf32> to vector<8x32xf32>
    %865 = vector.extract_strided_slice %845 {offsets = [0, 64], sizes = [8, 32], strides = [1, 1]} : vector<8x192xf32> to vector<8x32xf32>
    %866 = arith.mulf %855, %865 : vector<8x32xf32>
    %867 = arith.addf %864, %866 : vector<8x32xf32>
    %868 = math.tanh %867 : vector<8x32xf32>
    %869 = vector.extract_strided_slice %847 {offsets = [0, 96], sizes = [8, 32], strides = [1, 1]} : vector<8x192xf32> to vector<8x32xf32>
    %870 = vector.extract_strided_slice %845 {offsets = [0, 96], sizes = [8, 32], strides = [1, 1]} : vector<8x192xf32> to vector<8x32xf32>
    %871 = arith.addf %869, %870 : vector<8x32xf32>
    %872 = arith.negf %871 : vector<8x32xf32>
    %873 = math.exp %872 : vector<8x32xf32>
    %cst_161 = arith.constant 1.000000e+00 : f32
    %874 = vector.broadcast %cst_161 : f32 to vector<8x32xf32>
    %875 = arith.addf %874, %873 : vector<8x32xf32>
    %876 = arith.divf %874, %875 : vector<8x32xf32>
    %877 = vector.extract_strided_slice %847 {offsets = [0, 128], sizes = [8, 32], strides = [1, 1]} : vector<8x192xf32> to vector<8x32xf32>
    %878 = vector.extract_strided_slice %845 {offsets = [0, 128], sizes = [8, 32], strides = [1, 1]} : vector<8x192xf32> to vector<8x32xf32>
    %879 = arith.addf %877, %878 : vector<8x32xf32>
    %880 = arith.negf %879 : vector<8x32xf32>
    %881 = math.exp %880 : vector<8x32xf32>
    %cst_162 = arith.constant 1.000000e+00 : f32
    %882 = vector.broadcast %cst_162 : f32 to vector<8x32xf32>
    %883 = arith.addf %882, %881 : vector<8x32xf32>
    %884 = arith.divf %882, %883 : vector<8x32xf32>
    %885 = vector.extract_strided_slice %847 {offsets = [0, 160], sizes = [8, 32], strides = [1, 1]} : vector<8x192xf32> to vector<8x32xf32>
    %886 = vector.extract_strided_slice %845 {offsets = [0, 160], sizes = [8, 32], strides = [1, 1]} : vector<8x192xf32> to vector<8x32xf32>
    %887 = arith.mulf %876, %886 : vector<8x32xf32>
    %888 = arith.addf %885, %887 : vector<8x32xf32>
    %889 = math.tanh %888 : vector<8x32xf32>
    %cst_163 = arith.constant 1.000000e+00 : f32
    %890 = vector.broadcast %cst_163 : f32 to vector<8x32xf32>
    %891 = arith.subf %890, %863 : vector<8x32xf32>
    %892 = arith.mulf %891, %868 : vector<8x32xf32>
    %893 = vector.extract_strided_slice %836 {offsets = [0, 0], sizes = [8, 32], strides = [1, 1]} : vector<8x64xf32> to vector<8x32xf32>
    %894 = arith.mulf %863, %893 : vector<8x32xf32>
    %895 = arith.addf %892, %894 : vector<8x32xf32>
    %896 = vector.extract_strided_slice %836 {offsets = [0, 0], sizes = [8, 32], strides = [1, 1]} : vector<8x64xf32> to vector<8x32xf32>
    %897 = vector.shape_cast %617 : vector<8x1xi1> to vector<8x1xi1>
    %898 = vector.broadcast %897 : vector<8x1xi1> to vector<8x32xi1>
    %899 = arith.select %898, %895, %896 : vector<8x32xi1>, vector<8x32xf32>
    %cst_164 = arith.constant 1.000000e+00 : f32
    %900 = vector.broadcast %cst_164 : f32 to vector<8x32xf32>
    %901 = arith.subf %900, %884 : vector<8x32xf32>
    %902 = arith.mulf %901, %889 : vector<8x32xf32>
    %903 = vector.extract_strided_slice %836 {offsets = [0, 32], sizes = [8, 32], strides = [1, 1]} : vector<8x64xf32> to vector<8x32xf32>
    %904 = arith.mulf %884, %903 : vector<8x32xf32>
    %905 = arith.addf %902, %904 : vector<8x32xf32>
    %906 = vector.extract_strided_slice %836 {offsets = [0, 32], sizes = [8, 32], strides = [1, 1]} : vector<8x64xf32> to vector<8x32xf32>
    %907 = vector.shape_cast %611 : vector<8x1xi1> to vector<8x1xi1>
    %908 = vector.broadcast %907 : vector<8x1xi1> to vector<8x32xi1>
    %909 = arith.select %908, %905, %906 : vector<8x32xi1>, vector<8x32xf32>
    %910 = tpu.concatenate %899, %909 in 1 : vector<8x32xf32>, vector<8x32xf32> -> vector<8x64xf32>
    %c1_i32_165 = arith.constant 1 : i32
    %911 = vector.broadcast %c1_i32_165 : i32 to vector<8x1xi32>
    %912 = arith.cmpi eq, %600, %911 : vector<8x1xi32>
    %913 = vector.shape_cast %912 : vector<8x1xi1> to vector<8x1xi1>
    %914 = vector.broadcast %913 : vector<8x1xi1> to vector<8x32xi1>
    %915 = arith.select %914, %909, %841 : vector<8x32xi1>, vector<8x32xf32>
    %916 = vector.extract_strided_slice %910 {offsets = [0, 0], sizes = [8, 32], strides = [1, 1]} : vector<8x64xf32> to vector<8x32xf32>
    %917 = arith.addf %916, %915 : vector<8x32xf32>
    %918 = arith.truncf %917 : vector<8x32xf32> to vector<8x32xbf16>
    %c0_166 = arith.constant 0 : index
    %c0_167 = arith.constant 0 : index
    %919 = vector.load %arg13[%c0_166, %c0_167] : memref<32x32xbf16, #tpu.memory_space<vmem>>, vector<32x32xbf16>
    %cst_168 = arith.constant dense<0.000000e+00> : vector<8x32xf32>
    %920 = tpu.matmul %918, %919, %cst_168 {dimension_numbers = #tpu.dot_dimension_numbers<[1], [0], [0], [1], [0, 0, 1, 1], [], []>} : vector<8x32xbf16>, vector<32x32xbf16>, vector<8x32xf32> -> vector<8x32xf32>
    %c0_169 = arith.constant 0 : index
    %c0_170 = arith.constant 0 : index
    %921 = vector.load %arg14[%c0_169, %c0_170] : memref<1x32xf32, #tpu.memory_space<vmem>>, vector<1x32xf32>
    %922 = vector.broadcast %921 : vector<1x32xf32> to vector<8x32xf32>
    %923 = arith.addf %920, %922 : vector<8x32xf32>
    %cst_171 = arith.constant 0.000000e+00 : f32
    %924 = vector.broadcast %cst_171 : f32 to vector<8x32xf32>
    %925 = arith.cmpf ogt, %923, %924 : vector<8x32xf32>
    %cst_172 = arith.constant 0.00999999977 : f32
    %926 = vector.broadcast %cst_172 : f32 to vector<8x32xf32>
    %927 = arith.mulf %926, %923 : vector<8x32xf32>
    %928 = arith.select %925, %923, %927 : vector<8x32xi1>, vector<8x32xf32>
    %929 = arith.truncf %928 : vector<8x32xf32> to vector<8x32xbf16>
    %c0_173 = arith.constant 0 : index
    %c0_174 = arith.constant 0 : index
    %930 = vector.load %arg15[%c0_173, %c0_174] : memref<32x16xbf16, #tpu.memory_space<vmem>>, vector<32x16xbf16>
    %cst_175 = arith.constant dense<0.000000e+00> : vector<8x16xf32>
    %931 = tpu.matmul %929, %930, %cst_175 {dimension_numbers = #tpu.dot_dimension_numbers<[1], [0], [0], [1], [0, 0, 1, 1], [], []>} : vector<8x32xbf16>, vector<32x16xbf16>, vector<8x16xf32> -> vector<8x16xf32>
    %c0_176 = arith.constant 0 : index
    %c0_177 = arith.constant 0 : index
    %932 = vector.load %arg16[%c0_176, %c0_177] : memref<1x16xf32, #tpu.memory_space<vmem>>, vector<1x16xf32>
    %933 = vector.broadcast %932 : vector<1x16xf32> to vector<8x16xf32>
    %934 = arith.addf %931, %933 : vector<8x16xf32>
    %cst_178 = arith.constant 0.000000e+00 : f32
    %935 = vector.broadcast %cst_178 : f32 to vector<8x16xf32>
    %936 = arith.cmpf ogt, %934, %935 : vector<8x16xf32>
    %cst_179 = arith.constant 0.00999999977 : f32
    %937 = vector.broadcast %cst_179 : f32 to vector<8x16xf32>
    %938 = arith.mulf %937, %934 : vector<8x16xf32>
    %939 = arith.select %936, %934, %938 : vector<8x16xi1>, vector<8x16xf32>
    %940 = arith.truncf %939 : vector<8x16xf32> to vector<8x16xbf16>
    %c0_180 = arith.constant 0 : index
    %c0_181 = arith.constant 0 : index
    %941 = vector.load %arg17[%c0_180, %c0_181] : memref<16x1xbf16, #tpu.memory_space<vmem>>, vector<16x1xbf16>
    %cst_182 = arith.constant dense<0.000000e+00> : vector<8x1xf32>
    %942 = tpu.matmul %940, %941, %cst_182 {dimension_numbers = #tpu.dot_dimension_numbers<[1], [0], [0], [1], [0, 0, 1, 1], [], []>} : vector<8x16xbf16>, vector<16x1xbf16>, vector<8x1xf32> -> vector<8x1xf32>
    %c0_183 = arith.constant 0 : index
    %c0_184 = arith.constant 0 : index
    %943 = vector.load %arg18[%c0_183, %c0_184] : memref<1x1xf32, #tpu.memory_space<vmem>>, vector<1x1xf32>
    %944 = vector.broadcast %943 : vector<1x1xf32> to vector<8x1xf32>
    %945 = arith.addf %942, %944 : vector<8x1xf32>
    %946 = arith.negf %945 : vector<8x1xf32>
    %947 = math.exp %946 : vector<8x1xf32>
    %cst_185 = arith.constant 1.000000e+00 : f32
    %948 = vector.broadcast %cst_185 : f32 to vector<8x1xf32>
    %949 = arith.addf %948, %947 : vector<8x1xf32>
    %950 = arith.divf %948, %949 : vector<8x1xf32>
    %c0_186 = arith.constant 0 : index
    %c0_187 = arith.constant 0 : index
    %951 = vector.load %arg19[%c0_186, %c0_187] : memref<8x1xf32, #tpu.memory_space<vmem>>, vector<8x1xf32>
    tpu.vector_store %arg19[%c0_186, %c0_187], %950 {strides = array<i32>} : memref<8x1xf32, #tpu.memory_space<vmem>>, vector<8x1xf32>,
    return
  }
}

</mosaic_0001>

<llo_original>
// kernel: predictor_forward.1
$region0: #{predictor_forward.1}
  #allocation0 [shape = 'u32[]', space=smem, size = 0x4, offset = 0x4, fixed_abs, tag = 'smem constant byte address 0x4 - core index']
  #allocation1 [shape = 'u32[144,128]{1,0:T(1,128)}', space=vmem, size = 0x12000, scoped, tag = 'internal scratch']
  #allocation2 [shape = 'f32[128,192]{1,0:T(8,128)}', space=vmem, size = 0x20000, scoped, tag = 'scratch operand']
  #allocation3 [shape = 'f32[32,192]{1,0:T(8,128)}', space=vmem, size = 0x8000, scoped, tag = 'scratch operand']
  #allocation4 [shape = 'f32[1,1]{1,0:T(1,128)S(1)}', space=vmem, size = 0x200, scoped, tag = 'scoped memory for predictor_forward.1']
  %s0 = inlined_call_operand.vmem [shape: s32[128,1], index: 0, kind: input, shape index: {}]
  %s1 = inlined_call_operand.vmem [shape: s32[16,1], index: 1, kind: input, shape index: {}]
  %s2 = inlined_call_operand.vmem [shape: s32[8,1], index: 2, kind: input, shape index: {}]
  %s3 = inlined_call_operand.vmem [shape: s32[1,16], index: 3, kind: input, shape index: {}]
  %s4 = inlined_call_operand.vmem [shape: bf16[50,32], index: 4, kind: input, shape index: {}]
  %s5 = inlined_call_operand.vmem [shape: bf16[32,192], index: 5, kind: input, shape index: {}]
  %s6 = inlined_call_operand.vmem [shape: bf16[64,192], index: 6, kind: input, shape index: {}]
  %s7 = inlined_call_operand.vmem [shape: f32[1,192], index: 7, kind: input, shape index: {}]
  %s8 = inlined_call_operand.vmem [shape: f32[1,192], index: 8, kind: input, shape index: {}]
  %s9 = inlined_call_operand.vmem [shape: bf16[32,192], index: 9, kind: input, shape index: {}]
  %s10 = inlined_call_operand.vmem [shape: bf16[64,192], index: 10, kind: input, shape index: {}]
  %s11 = inlined_call_operand.vmem [shape: f32[1,192], index: 11, kind: input, shape index: {}]
  %s12 = inlined_call_operand.vmem [shape: f32[1,192], index: 12, kind: input, shape index: {}]
  %s13 = inlined_call_operand.vmem [shape: bf16[32,32], index: 13, kind: input, shape index: {}]
  %s14 = inlined_call_operand.vmem [shape: f32[1,32], index: 14, kind: input, shape index: {}]
  %s15 = inlined_call_operand.vmem [shape: bf16[32,16], index: 15, kind: input, shape index: {}]
  %s16 = inlined_call_operand.vmem [shape: f32[1,16], index: 16, kind: input, shape index: {}]
  %s17 = inlined_call_operand.vmem [shape: bf16[16,1], index: 17, kind: input, shape index: {}]
  %s18 = inlined_call_operand.<no memory space> [shape: f32[1,1], index: 18, kind: input, shape index: {}]
  %s19 = inlined_call_operand.vmem [shape: f32[8,1], index: 19, kind: output, shape index: {}]
  %s20 = sld [smem:[#allocation0]]
  $region86: #{predictor_forward.1} parent=0
    _
  %s22 = ssub.s32 1, %s20
  %s23 = scalar_select 0, %s22, %s20
  %v24 = vstv %s18
  %25 = vst [vmem:[#allocation4] sm:$0x1] %v24
  // Predicated region
  $region2: #{predictor_forward.1} parent=0 // pred_check
    _
  $region3: #{predictor_forward.1} parent=0 // pred_check_branch
    %27 = sbr.rel (0) target = $region5
  $region4: #{predictor_forward.1} parent=0 // pred_region
    _
  $region5: #{predictor_forward.1} parent=0 // pred_fallthru
    _
  // Predicated region
  $region6: #{predictor_forward.1} parent=0 // pred_check
    _
  $region7: #{predictor_forward.1} parent=0 // pred_check_branch
    %29 = sbr.rel (0) target = $region9
  $region8: #{predictor_forward.1} parent=0 // pred_region
    _
  $region9: #{predictor_forward.1} parent=0 // pred_fallthru
    _
  // Predicated region
  $region10: #{predictor_forward.1} parent=0 // pred_check
    _
  $region11: #{predictor_forward.1} parent=0 // pred_check_branch
    %31 = sbr.rel (0) target = $region13
  $region12: #{predictor_forward.1} parent=0 // pred_region
    _
  $region13: #{predictor_forward.1} parent=0 // pred_fallthru
    _
  // Predicated region
  $region14: #{predictor_forward.1} parent=0 // pred_check
    _
  $region15: #{predictor_forward.1} parent=0 // pred_check_branch
    %33 = sbr.rel (0) target = $region17
  $region16: #{predictor_forward.1} parent=0 // pred_region
    _
  $region17: #{predictor_forward.1} parent=0 // pred_fallthru
    _
  // Predicated region
  $region18: #{predictor_forward.1} parent=0 // pred_check
    _
  $region19: #{predictor_forward.1} parent=0 // pred_check_branch
    %35 = sbr.rel (0) target = $region21
  $region20: #{predictor_forward.1} parent=0 // pred_region
    _
  $region21: #{predictor_forward.1} parent=0 // pred_fallthru
    _
  // Predicated region
  $region22: #{predictor_forward.1} parent=0 // pred_check
    _
  $region23: #{predictor_forward.1} parent=0 // pred_check_branch
    %37 = sbr.rel (0) target = $region25
  $region24: #{predictor_forward.1} parent=0 // pred_region
    _
  $region25: #{predictor_forward.1} parent=0 // pred_fallthru
    _
  // Predicated region
  $region26: #{predictor_forward.1} parent=0 // pred_check
    _
  $region27: #{predictor_forward.1} parent=0 // pred_check_branch
    %39 = sbr.rel (0) target = $region29
  $region28: #{predictor_forward.1} parent=0 // pred_region
    _
  $region29: #{predictor_forward.1} parent=0 // pred_fallthru
    _
  // Predicated region
  $region30: #{predictor_forward.1} parent=0 // pred_check
    _
  $region31: #{predictor_forward.1} parent=0 // pred_check_branch
    %41 = sbr.rel (0) target = $region33
  $region32: #{predictor_forward.1} parent=0 // pred_region
    _
  $region33: #{predictor_forward.1} parent=0 // pred_fallthru
    _
  // Predicated region
  $region34: #{predictor_forward.1} parent=0 // pred_check
    _
  $region35: #{predictor_forward.1} parent=0 // pred_check_branch
    %43 = sbr.rel (0) target = $region37
  $region36: #{predictor_forward.1} parent=0 // pred_region
    _
  $region37: #{predictor_forward.1} parent=0 // pred_fallthru
    _
  // Predicated region
  $region38: #{predictor_forward.1} parent=0 // pred_check
    _
  $region39: #{predictor_forward.1} parent=0 // pred_check_branch
    %45 = sbr.rel (0) target = $region41
  $region40: #{predictor_forward.1} parent=0 // pred_region
    _
  $region41: #{predictor_forward.1} parent=0 // pred_fallthru
    _
  // Predicated region
  $region42: #{predictor_forward.1} parent=0 // pred_check
    _
  $region43: #{predictor_forward.1} parent=0 // pred_check_branch
    %47 = sbr.rel (0) target = $region45
  $region44: #{predictor_forward.1} parent=0 // pred_region
    _
  $region45: #{predictor_forward.1} parent=0 // pred_fallthru
    _
  // Predicated region
  $region46: #{predictor_forward.1} parent=0 // pred_check
    _
  $region47: #{predictor_forward.1} parent=0 // pred_check_branch
    %49 = sbr.rel (0) target = $region49
  $region48: #{predictor_forward.1} parent=0 // pred_region
    _
  $region49: #{predictor_forward.1} parent=0 // pred_fallthru
    _
  // Predicated region
  $region50: #{predictor_forward.1} parent=0 // pred_check
    _
  $region51: #{predictor_forward.1} parent=0 // pred_check_branch
    %51 = sbr.rel (0) target = $region53
  $region52: #{predictor_forward.1} parent=0 // pred_region
    _
  $region53: #{predictor_forward.1} parent=0 // pred_fallthru
    _
  // Predicated region
  $region54: #{predictor_forward.1} parent=0 // pred_check
    _
  $region55: #{predictor_forward.1} parent=0 // pred_check_branch
    %53 = sbr.rel (0) target = $region57
  $region56: #{predictor_forward.1} parent=0 // pred_region
    _
  $region57: #{predictor_forward.1} parent=0 // pred_fallthru
    _
  // Predicated region
  $region58: #{predictor_forward.1} parent=0 // pred_check
    _
  $region59: #{predictor_forward.1} parent=0 // pred_check_branch
    %55 = sbr.rel (0) target = $region61
  $region60: #{predictor_forward.1} parent=0 // pred_region
    _
  $region61: #{predictor_forward.1} parent=0 // pred_fallthru
    _
  // Predicated region
  $region62: #{predictor_forward.1} parent=0 // pred_check
    _
  $region63: #{predictor_forward.1} parent=0 // pred_check_branch
    %57 = sbr.rel (0) target = $region65
  $region64: #{predictor_forward.1} parent=0 // pred_region
    _
  $region65: #{predictor_forward.1} parent=0 // pred_fallthru
    _
  // Predicated region
  $region66: #{predictor_forward.1} parent=0 // pred_check
    _
  $region67: #{predictor_forward.1} parent=0 // pred_check_branch
    %59 = sbr.rel (0) target = $region69
  $region68: #{predictor_forward.1} parent=0 // pred_region
    _
  $region69: #{predictor_forward.1} parent=0 // pred_fallthru
    _
  // Predicated region
  $region70: #{predictor_forward.1} parent=0 // pred_check
    _
  $region71: #{predictor_forward.1} parent=0 // pred_check_branch
    %61 = sbr.rel (0) target = $region73
  $region72: #{predictor_forward.1} parent=0 // pred_region
    _
  $region73: #{predictor_forward.1} parent=0 // pred_fallthru
    _
  // Predicated region
  $region74: #{predictor_forward.1} parent=0 // pred_check
    _
  $region75: #{predictor_forward.1} parent=0 // pred_check_branch
    %63 = sbr.rel (0) target = $region77
  $region76: #{predictor_forward.1} parent=0 // pred_region
    _
  $region77: #{predictor_forward.1} parent=0 // pred_fallthru
    _
  %v65 = vld [vmem:[%s0] sm:$0xff]
  %v66 = vld [vmem:[%s0 + $0x8] sm:$0xff]
  %v67 = vld [vmem:[%s0 + $0x10] sm:$0xff]
  %v68 = vld [vmem:[%s0 + $0x18] sm:$0xff]
  %v69 = vld [vmem:[%s0 + $0x20] sm:$0xff]
  %v70 = vld [vmem:[%s0 + $0x28] sm:$0xff]
  %v71 = vld [vmem:[%s0 + $0x30] sm:$0xff]
  %v72 = vld [vmem:[%s0 + $0x38] sm:$0xff]
  %v73 = vld [vmem:[%s0 + $0x40] sm:$0xff]
  %v74 = vld [vmem:[%s0 + $0x48] sm:$0xff]
  %v75 = vld [vmem:[%s0 + $0x50] sm:$0xff]
  %v76 = vld [vmem:[%s0 + $0x58] sm:$0xff]
  %v77 = vld [vmem:[%s0 + $0x60] sm:$0xff]
  %v78 = vld [vmem:[%s0 + $0x68] sm:$0xff]
  %v79 = vld [vmem:[%s0 + $0x70] sm:$0xff]
  %v80 = vld [vmem:[%s0 + $0x78] sm:$0xff]
  %v81 = vlaneseq
  %v82 = vand.u32 %v81, 127
  %83 = vset.pattern.permute.xlu0 0
  %84 = vperm.xlu0 %83, %v65
  %v85 = vpop.permute.xlu0 %84
  %86 = vset.pattern.permute.xlu0 0
  %87 = vperm.xlu0 %86, %v66
  %v88 = vpop.permute.xlu0 %87
  %89 = vset.pattern.permute.xlu0 0
  %90 = vperm.xlu0 %89, %v67
  %v91 = vpop.permute.xlu0 %90
  %92 = vset.pattern.permute.xlu0 0
  %93 = vperm.xlu0 %92, %v68
  %v94 = vpop.permute.xlu0 %93
  %95 = vset.pattern.permute.xlu0 0
  %96 = vperm.xlu0 %95, %v69
  %v97 = vpop.permute.xlu0 %96
  %98 = vset.pattern.permute.xlu0 0
  %99 = vperm.xlu0 %98, %v70
  %v100 = vpop.permute.xlu0 %99
  %101 = vset.pattern.permute.xlu0 0
  %102 = vperm.xlu0 %101, %v71
  %v103 = vpop.permute.xlu0 %102
  %104 = vset.pattern.permute.xlu0 0
  %105 = vperm.xlu0 %104, %v72
  %v106 = vpop.permute.xlu0 %105
  %107 = vset.pattern.permute.xlu0 0
  %108 = vperm.xlu0 %107, %v73
  %v109 = vpop.permute.xlu0 %108
  %110 = vset.pattern.permute.xlu0 0
  %111 = vperm.xlu0 %110, %v74
  %v112 = vpop.permute.xlu0 %111
  %113 = vset.pattern.permute.xlu0 0
  %114 = vperm.xlu0 %113, %v75
  %v115 = vpop.permute.xlu0 %114
  %116 = vset.pattern.permute.xlu0 0
  %117 = vperm.xlu0 %116, %v76
  %v118 = vpop.permute.xlu0 %117
  %119 = vset.pattern.permute.xlu0 0
  %120 = vperm.xlu0 %119, %v77
  %v121 = vpop.permute.xlu0 %120
  %122 = vset.pattern.permute.xlu0 0
  %123 = vperm.xlu0 %122, %v78
  %v124 = vpop.permute.xlu0 %123
  %125 = vset.pattern.permute.xlu0 0
  %126 = vperm.xlu0 %125, %v79
  %v127 = vpop.permute.xlu0 %126
  %128 = vset.pattern.permute.xlu0 0
  %129 = vperm.xlu0 %128, %v80
  %v130 = vpop.permute.xlu0 %129
  %vm131 = vcmp.eq.s32.totalorder %v82, %v85
  %vm132 = vcmp.eq.s32.totalorder %v82, %v88
  %vm133 = vcmp.eq.s32.totalorder %v82, %v91
  %vm134 = vcmp.eq.s32.totalorder %v82, %v94
  %vm135 = vcmp.eq.s32.totalorder %v82, %v97
  %vm136 = vcmp.eq.s32.totalorder %v82, %v100
  %vm137 = vcmp.eq.s32.totalorder %v82, %v103
  %vm138 = vcmp.eq.s32.totalorder %v82, %v106
  %vm139 = vcmp.eq.s32.totalorder %v82, %v109
  %vm140 = vcmp.eq.s32.totalorder %v82, %v112
  %vm141 = vcmp.eq.s32.totalorder %v82, %v115
  %vm142 = vcmp.eq.s32.totalorder %v82, %v118
  %vm143 = vcmp.eq.s32.totalorder %v82, %v121
  %vm144 = vcmp.eq.s32.totalorder %v82, %v124
  %vm145 = vcmp.eq.s32.totalorder %v82, %v127
  %vm146 = vcmp.eq.s32.totalorder %v82, %v130
  %v147 = vsel %vm131, 1, 0
  %v148 = vsel %vm132, 1, 0
  %v149 = vsel %vm133, 1, 0
  %v150 = vsel %vm134, 1, 0
  %v151 = vsel %vm135, 1, 0
  %v152 = vsel %vm136, 1, 0
  %v153 = vsel %vm137, 1, 0
  %v154 = vsel %vm138, 1, 0
  %v155 = vsel %vm139, 1, 0
  %v156 = vsel %vm140, 1, 0
  %v157 = vsel %vm141, 1, 0
  %v158 = vsel %vm142, 1, 0
  %v159 = vsel %vm143, 1, 0
  %v160 = vsel %vm144, 1, 0
  %v161 = vsel %vm145, 1, 0
  %v162 = vsel %vm146, 1, 0
  %v163 = vcvt.s32.f32 %v147
  %v164 = vcvt.s32.f32 %v148
  %v165 = vcvt.s32.f32 %v149
  %v166 = vcvt.s32.f32 %v150
  %v167 = vcvt.s32.f32 %v151
  %v168 = vcvt.s32.f32 %v152
  %v169 = vcvt.s32.f32 %v153
  %v170 = vcvt.s32.f32 %v154
  %v171 = vcvt.s32.f32 %v155
  %v172 = vcvt.s32.f32 %v156
  %v173 = vcvt.s32.f32 %v157
  %v174 = vcvt.s32.f32 %v158
  %v175 = vcvt.s32.f32 %v159
  %v176 = vcvt.s32.f32 %v160
  %v177 = vcvt.s32.f32 %v161
  %v178 = vcvt.s32.f32 %v162
  %v179 = vpack.c.bf16 %v164, %v163
  %v180 = vpack.c.bf16 %v166, %v165
  %v181 = vpack.c.bf16 %v168, %v167
  %v182 = vpack.c.bf16 %v170, %v169
  %v183 = vpack.c.bf16 %v172, %v171
  %v184 = vpack.c.bf16 %v174, %v173
  %v185 = vpack.c.bf16 %v176, %v175
  %v186 = vpack.c.bf16 %v178, %v177
  %v187 = vld [vmem:[%s4] sm:$0xf]
  %v188 = vld [vmem:[%s4 + $0x4] sm:$0xf]
  %v189 = vld [vmem:[%s4 + $0x8] sm:$0xf]
  %v190 = vld [vmem:[%s4 + $0xc] sm:$0xf]
  %v191 = vld [vmem:[%s4 + $0x10] sm:$0xf]
  %v192 = vld [vmem:[%s4 + $0x14] sm:$0xf]
  %v193 = vld [vmem:[%s4 + $0x18] sm:$0x1]
  %v201 = vunpack.c.l.b16 %v187
  %v202 = vunpack.c.l.b16 %v188
  %v203 = vunpack.c.l.b16 %v189
  %v204 = vunpack.c.l.b16 %v190
  %v205 = vunpack.c.l.b16 %v191
  %v206 = vunpack.c.l.b16 %v192
  %v207 = vunpack.c.l.b16 %v193
  %v208 = vpack.c.b16 %v202, %v201
  %v209 = vpack.c.b16 %v204, %v203
  %v210 = vpack.c.b16 %v206, %v205
  %v211 = vpack.c.b16 %v207, %v207
  %vm215 = vcmask 408576
  %v217 = vsel %vm215, %v179, 0
  %v220 = vsel %vm215, %v180, 0
  %v223 = vsel %vm215, %v181, 0
  %v226 = vsel %vm215, %v182, 0
  %v229 = vsel %vm215, %v183, 0
  %v232 = vsel %vm215, %v184, 0
  %v235 = vsel %vm215, %v185, 0
  %v238 = vsel %vm215, %v186, 0
  %vm240 = vcmask 1040384
  %v242 = vsel %vm240, %v211, 0
  %244 = vmatprep.subr.bf16.mxu0 0
  %245 = vmatpush1.bf16.msra.mxu0 %v208
  %246 = vmatprep.subr.bf16.mxu0 0
  %247 = vmatpush1.bf16.msra.mxu0 %v209
  %248 = vmatprep.subr.bf16.mxu0 0
  %249 = vmatpush1.bf16.msra.mxu0 %v210
  %250 = vmatprep.subr.bf16.mxu0 0
  %251 = vmatpush1.bf16.msra.mxu0 %v242
  %252 = vmatprep.subr.bf16.mxu0 0
  %253 = vmatpush1.bf16.msra.mxu0 0
  %254 = vmatprep.subr.bf16.mxu0 0
  %255 = vmatpush1.bf16.msra.mxu0 0
  %256 = vmatprep.subr.bf16.mxu0 0
  %257 = vmatpush1.bf16.msra.mxu0 0
  %258 = vmatprep.subr.bf16.mxu0 0
  %259 = vmatpush1.bf16.msra.mxu0 0
  %260 = vmatprep.subr.bf16.mxu0 0
  %261 = vmatpush1.bf16.msra.mxu0 0
  %262 = vmatprep.subr.bf16.mxu0 0
  %263 = vmatpush1.bf16.msra.mxu0 0
  %264 = vmatprep.subr.bf16.mxu0 0
  %265 = vmatpush1.bf16.msra.mxu0 0
  %266 = vmatprep.subr.bf16.mxu0 0
  %267 = vmatpush1.bf16.msra.mxu0 0
  %268 = vmatprep.subr.bf16.mxu0 0
  %269 = vmatpush1.bf16.msra.mxu0 0
  %270 = vmatprep.subr.bf16.mxu0 0
  %271 = vmatpush1.bf16.msra.mxu0 0
  %272 = vmatprep.subr.bf16.mxu0 0
  %273 = vmatpush1.bf16.msra.mxu0 0
  %274 = vmatprep.subr.bf16.mxu0 0
  %275 = vmatpush1.bf16.msra.mxu0 0
  %276 = vmatprep.mubr.bf16.mxu0 0
  %277 = vmatmul.mubr.bf16.gmra.mrb[0].mxu0 %v217
  %v278 = vpop.f32.mrb[0].mxu0
  %v279 = vadd.f32 0.0, %v278
  %v280 = vpop.f32.mrb[0].mxu0
  %v281 = vpop.f32.mrb[0].mxu0
  %v282 = vadd.f32 0.0, %v281
  %v283 = vpop.f32.mrb[0].mxu0
  %284 = vmatprep.mubr.bf16.mxu0 0
  %285 = vmatmul.mubr.bf16.gmra.mrb[0].mxu0 %v220
  %v286 = vpop.f32.mrb[0].mxu0
  %v287 = vadd.f32 0.0, %v286
  %v288 = vpop.f32.mrb[0].mxu0
  %v289 = vpop.f32.mrb[0].mxu0
  %v290 = vadd.f32 0.0, %v289
  %v291 = vpop.f32.mrb[0].mxu0
  %292 = vmatprep.mubr.bf16.mxu0 0
  %293 = vmatmul.mubr.bf16.gmra.mrb[0].mxu0 %v223
  %v294 = vpop.f32.mrb[0].mxu0
  %v295 = vadd.f32 0.0, %v294
  %v296 = vpop.f32.mrb[0].mxu0
  %v297 = vpop.f32.mrb[0].mxu0
  %v298 = vadd.f32 0.0, %v297
  %v299 = vpop.f32.mrb[0].mxu0
  %300 = vmatprep.mubr.bf16.mxu0 0
  %301 = vmatmul.mubr.bf16.gmra.mrb[0].mxu0 %v226
  %v302 = vpop.f32.mrb[0].mxu0
  %v303 = vadd.f32 0.0, %v302
  %v304 = vpop.f32.mrb[0].mxu0
  %v305 = vpop.f32.mrb[0].mxu0
  %v306 = vadd.f32 0.0, %v305
  %v307 = vpop.f32.mrb[0].mxu0
  %308 = vmatprep.mubr.bf16.mxu0 0
  %309 = vmatmul.mubr.bf16.gmra.mrb[0].mxu0 %v229
  %v310 = vpop.f32.mrb[0].mxu0
  %v311 = vadd.f32 0.0, %v310
  %v312 = vpop.f32.mrb[0].mxu0
  %v313 = vpop.f32.mrb[0].mxu0
  %v314 = vadd.f32 0.0, %v313
  %v315 = vpop.f32.mrb[0].mxu0
  %316 = vmatprep.mubr.bf16.mxu0 0
  %317 = vmatmul.mubr.bf16.gmra.mrb[0].mxu0 %v232
  %v318 = vpop.f32.mrb[0].mxu0
  %v319 = vadd.f32 0.0, %v318
  %v320 = vpop.f32.mrb[0].mxu0
  %v321 = vpop.f32.mrb[0].mxu0
  %v322 = vadd.f32 0.0, %v321
  %v323 = vpop.f32.mrb[0].mxu0
  %324 = vmatprep.mubr.bf16.mxu0 0
  %325 = vmatmul.mubr.bf16.gmra.mrb[0].mxu0 %v235
  %v326 = vpop.f32.mrb[0].mxu0
  %v327 = vadd.f32 0.0, %v326
  %v328 = vpop.f32.mrb[0].mxu0
  %v329 = vpop.f32.mrb[0].mxu0
  %v330 = vadd.f32 0.0, %v329
  %v331 = vpop.f32.mrb[0].mxu0
  %332 = vmatprep.mubr.bf16.mxu0 0
  %333 = vmatmul.mubr.bf16.gmra.mrb[0].mxu0 %v238
  %v334 = vpop.f32.mrb[0].mxu0
  %v335 = vadd.f32 0.0, %v334
  %v336 = vpop.f32.mrb[0].mxu0
  %v337 = vpop.f32.mrb[0].mxu0
  %v338 = vadd.f32 0.0, %v337
  %v339 = vpop.f32.mrb[0].mxu0
  %340 = vdwg.mxu0
  %v341 = vld [vmem:[%s1] sm:$0xff]
  %v342 = vld [vmem:[%s1 + $0x8] sm:$0xff]
  %v343 = vpack.c.bf16 %v282, %v279
  %v344 = vpack.c.bf16 %v290, %v287
  %v345 = vpack.c.bf16 %v298, %v295
  %v346 = vpack.c.bf16 %v306, %v303
  %v347 = vpack.c.bf16 %v314, %v311
  %v348 = vpack.c.bf16 %v322, %v319
  %v349 = vpack.c.bf16 %v330, %v327
  %v350 = vpack.c.bf16 %v338, %v335
  %v351 = vld [vmem:[%s5] sm:$0xff]
  %v352 = vld [vmem:[%s5 + $0x8] sm:$0xff]
  %v353 = vld [vmem:[%s5 + $0x10] sm:$0xff]
  %v354 = vld [vmem:[%s5 + $0x18] sm:$0xff]
  %v355 = vld [vmem:[%s7] sm:$0x3]
  %v357 = vlaneseq
  %v358 = vshrl.u32 %v357, 7
  %v359 = vsub.s32 0, %v358
  %v360 = vrot.slane %v355, %v359
  %v361 = vlaneseq
  %v362 = vshrl.u32 %v361, 7
  %v363 = vsub.s32 1, %v362
  %v364 = vrot.slane %v355, %v363
  %v371 = vunpack.c.l.b16 %v351
  %v372 = vunpack.c.h.b16 %v351
  %v373 = vunpack.c.l.b16 %v352
  %v374 = vunpack.c.h.b16 %v352
  %v375 = vunpack.c.l.b16 %v353
  %v376 = vunpack.c.h.b16 %v353
  %v377 = vunpack.c.l.b16 %v354
  %v378 = vunpack.c.h.b16 %v354
  %v379 = vpack.c.b16 %v373, %v371
  %v380 = vpack.c.b16 %v374, %v372
  %v381 = vpack.c.b16 %v377, %v375
  %v382 = vpack.c.b16 %v378, %v376
  %vm387 = vcmask 261120
  %v389 = vsel %vm387, %v343, 0
  %v392 = vsel %vm387, %v344, 0
  %v395 = vsel %vm387, %v345, 0
  %v398 = vsel %vm387, %v346, 0
  %v401 = vsel %vm387, %v347, 0
  %v404 = vsel %vm387, %v348, 0
  %v407 = vsel %vm387, %v349, 0
  %v410 = vsel %vm387, %v350, 0
  %412 = vmatprep.subr.bf16.mxu0 %v380
  %413 = vmatpush1.bf16.msra.mxu0 %v379
  %414 = vmatprep.subr.bf16.mxu0 %v382
  %415 = vmatpush1.bf16.msra.mxu0 %v381
  %416 = vmatprep.subr.bf16.mxu0 0
  %417 = vmatpush1.bf16.msra.mxu0 0
  %418 = vmatprep.subr.bf16.mxu0 0
  %419 = vmatpush1.bf16.msra.mxu0 0
  %420 = vmatprep.subr.bf16.mxu0 0
  %421 = vmatpush1.bf16.msra.mxu0 0
  %422 = vmatprep.subr.bf16.mxu0 0
  %423 = vmatpush1.bf16.msra.mxu0 0
  %424 = vmatprep.subr.bf16.mxu0 0
  %425 = vmatpush1.bf16.msra.mxu0 0
  %426 = vmatprep.subr.bf16.mxu0 0
  %427 = vmatpush1.bf16.msra.mxu0 0
  %428 = vmatprep.subr.bf16.mxu0 0
  %429 = vmatpush1.bf16.msra.mxu0 0
  %430 = vmatprep.subr.bf16.mxu0 0
  %431 = vmatpush1.bf16.msra.mxu0 0
  %432 = vmatprep.subr.bf16.mxu0 0
  %433 = vmatpush1.bf16.msra.mxu0 0
  %434 = vmatprep.subr.bf16.mxu0 0
  %435 = vmatpush1.bf16.msra.mxu0 0
  %436 = vmatprep.subr.bf16.mxu0 0
  %437 = vmatpush1.bf16.msra.mxu0 0
  %438 = vmatprep.subr.bf16.mxu0 0
  %439 = vmatpush1.bf16.msra.mxu0 0
  %440 = vmatprep.subr.bf16.mxu0 0
  %441 = vmatpush1.bf16.msra.mxu0 0
  %442 = vmatprep.subr.bf16.mxu0 0
  %443 = vmatpush1.bf16.msra.mxu0 0
  %444 = vmatprep.mubr.bf16.mxu0 0
  %445 = vmatmul.mubr.bf16.gmra.mrb[0].mxu0 %v389
  %v446 = vpop.f32.mrb[0].mxu0
  %v447 = vadd.f32 %v360, %v446
  %v448 = vpop.f32.mrb[0].mxu0
  %v449 = vadd.f32 %v364, %v448
  %v450 = vpop.f32.mrb[0].mxu0
  %v451 = vadd.f32 %v360, %v450
  %v452 = vpop.f32.mrb[0].mxu0
  %v453 = vadd.f32 %v364, %v452
  %454 = vmatprep.mubr.bf16.mxu0 0
  %455 = vmatmul.mubr.bf16.gmra.mrb[0].mxu0 %v392
  %v456 = vpop.f32.mrb[0].mxu0
  %v457 = vadd.f32 %v360, %v456
  %v458 = vpop.f32.mrb[0].mxu0
  %v459 = vadd.f32 %v364, %v458
  %v460 = vpop.f32.mrb[0].mxu0
  %v461 = vadd.f32 %v360, %v460
  %v462 = vpop.f32.mrb[0].mxu0
  %v463 = vadd.f32 %v364, %v462
  %464 = vmatprep.mubr.bf16.mxu0 0
  %465 = vmatmul.mubr.bf16.gmra.mrb[0].mxu0 %v395
  %v466 = vpop.f32.mrb[0].mxu0
  %v467 = vadd.f32 %v360, %v466
  %v468 = vpop.f32.mrb[0].mxu0
  %v469 = vadd.f32 %v364, %v468
  %v470 = vpop.f32.mrb[0].mxu0
  %v471 = vadd.f32 %v360, %v470
  %v472 = vpop.f32.mrb[0].mxu0
  %v473 = vadd.f32 %v364, %v472
  %474 = vmatprep.mubr.bf16.mxu0 0
  %475 = vmatmul.mubr.bf16.gmra.mrb[0].mxu0 %v398
  %v476 = vpop.f32.mrb[0].mxu0
  %v477 = vadd.f32 %v360, %v476
  %v478 = vpop.f32.mrb[0].mxu0
  %v479 = vadd.f32 %v364, %v478
  %v480 = vpop.f32.mrb[0].mxu0
  %v481 = vadd.f32 %v360, %v480
  %v482 = vpop.f32.mrb[0].mxu0
  %v483 = vadd.f32 %v364, %v482
  %484 = vmatprep.mubr.bf16.mxu0 0
  %485 = vmatmul.mubr.bf16.gmra.mrb[0].mxu0 %v401
  %v486 = vpop.f32.mrb[0].mxu0
  %v487 = vadd.f32 %v360, %v486
  %v488 = vpop.f32.mrb[0].mxu0
  %v489 = vadd.f32 %v364, %v488
  %v490 = vpop.f32.mrb[0].mxu0
  %v491 = vadd.f32 %v360, %v490
  %v492 = vpop.f32.mrb[0].mxu0
  %v493 = vadd.f32 %v364, %v492
  %494 = vmatprep.mubr.bf16.mxu0 0
  %495 = vmatmul.mubr.bf16.gmra.mrb[0].mxu0 %v404
  %v496 = vpop.f32.mrb[0].mxu0
  %v497 = vadd.f32 %v360, %v496
  %v498 = vpop.f32.mrb[0].mxu0
  %v499 = vadd.f32 %v364, %v498
  %v500 = vpop.f32.mrb[0].mxu0
  %v501 = vadd.f32 %v360, %v500
  %v502 = vpop.f32.mrb[0].mxu0
  %v503 = vadd.f32 %v364, %v502
  %504 = vmatprep.mubr.bf16.mxu0 0
  %505 = vmatmul.mubr.bf16.gmra.mrb[0].mxu0 %v407
  %v506 = vpop.f32.mrb[0].mxu0
  %v507 = vadd.f32 %v360, %v506
  %v508 = vpop.f32.mrb[0].mxu0
  %v509 = vadd.f32 %v364, %v508
  %v510 = vpop.f32.mrb[0].mxu0
  %v511 = vadd.f32 %v360, %v510
  %v512 = vpop.f32.mrb[0].mxu0
  %v513 = vadd.f32 %v364, %v512
  %514 = vmatprep.mubr.bf16.mxu0 0
  %515 = vmatmul.mubr.bf16.gmra.mrb[0].mxu0 %v410
  %v516 = vpop.f32.mrb[0].mxu0
  %v517 = vadd.f32 %v360, %v516
  %v518 = vpop.f32.mrb[0].mxu0
  %v519 = vadd.f32 %v364, %v518
  %v520 = vpop.f32.mrb[0].mxu0
  %v521 = vadd.f32 %v360, %v520
  %v522 = vpop.f32.mrb[0].mxu0
  %v523 = vadd.f32 %v364, %v522
  %524 = vdwg.mxu0
  %525 = vst [vmem:[#allocation2] sm:$0xff] %v447
  %vm526 = vcmask 523264
  %527 = vst.msk [vmem:[#allocation2 + $0x8] sm:$0xff] %vm526, %v449
  %528 = vst [vmem:[#allocation2 + $0x10] sm:$0xff] %v451
  %529 = vst.msk [vmem:[#allocation2 + $0x18] sm:$0xff] %vm526, %v453
  %530 = vst [vmem:[#allocation2 + $0x20] sm:$0xff] %v457
  %531 = vst.msk [vmem:[#allocation2 + $0x28] sm:$0xff] %vm526, %v459
  %532 = vst [vmem:[#allocation2 + $0x30] sm:$0xff] %v461
  %533 = vst.msk [vmem:[#allocation2 + $0x38] sm:$0xff] %vm526, %v463
  %534 = vst [vmem:[#allocation2 + $0x40] sm:$0xff] %v467
  %535 = vst.msk [vmem:[#allocation2 + $0x48] sm:$0xff] %vm526, %v469
  %536 = vst [vmem:[#allocation2 + $0x50] sm:$0xff] %v471
  %537 = vst.msk [vmem:[#allocation2 + $0x58] sm:$0xff] %vm526, %v473
  %538 = vst [vmem:[#allocation2 + $0x60] sm:$0xff] %v477
  %539 = vst.msk [vmem:[#allocation2 + $0x68] sm:$0xff] %vm526, %v479
  %540 = vst [vmem:[#allocation2 + $0x70] sm:$0xff] %v481
  %541 = vst.msk [vmem:[#allocation2 + $0x78] sm:$0xff] %vm526, %v483
  %542 = vst [vmem:[#allocation2 + $0x80] sm:$0xff] %v487
  %543 = vst.msk [vmem:[#allocation2 + $0x88] sm:$0xff] %vm526, %v489
  %544 = vst [vmem:[#allocation2 + $0x90] sm:$0xff] %v491
  %545 = vst.msk [vmem:[#allocation2 + $0x98] sm:$0xff] %vm526, %v493
  %546 = vst [vmem:[#allocation2 + $0xa0] sm:$0xff] %v497
  %547 = vst.msk [vmem:[#allocation2 + $0xa8] sm:$0xff] %vm526, %v499
  %548 = vst [vmem:[#allocation2 + $0xb0] sm:$0xff] %v501
  %549 = vst.msk [vmem:[#allocation2 + $0xb8] sm:$0xff] %vm526, %v503
  %550 = vst [vmem:[#allocation2 + $0xc0] sm:$0xff] %v507
  %551 = vst.msk [vmem:[#allocation2 + $0xc8] sm:$0xff] %vm526, %v509
  %552 = vst [vmem:[#allocation2 + $0xd0] sm:$0xff] %v511
  %553 = vst.msk [vmem:[#allocation2 + $0xd8] sm:$0xff] %vm526, %v513
  %554 = vst [vmem:[#allocation2 + $0xe0] sm:$0xff] %v517
  %555 = vst.msk [vmem:[#allocation2 + $0xe8] sm:$0xff] %vm526, %v519
  %556 = vst [vmem:[#allocation2 + $0xf0] sm:$0xff] %v521
  %557 = vst.msk [vmem:[#allocation2 + $0xf8] sm:$0xff] %vm526, %v523
  %v558 = vld [vmem:[%s6] sm:$0xff]
  %v559 = vld [vmem:[%s6 + $0x8] sm:$0xff]
  %v560 = vld [vmem:[%s6 + $0x10] sm:$0xff]
  %v561 = vld [vmem:[%s6 + $0x18] sm:$0xff]
  %v562 = vld [vmem:[%s6 + $0x20] sm:$0xff]
  %v563 = vld [vmem:[%s6 + $0x28] sm:$0xff]
  %v564 = vld [vmem:[%s6 + $0x30] sm:$0xff]
  %v565 = vld [vmem:[%s6 + $0x38] sm:$0xff]
  %v566 = vld [vmem:[%s8] sm:$0x3]
  %vm567 = vcmp.gt.s32.totalorder %v341, 0
  %vm568 = vcmp.gt.s32.totalorder %v342, 0
  %vm569 = vcmp.gt.s32.totalorder %v341, 1
  %vm570 = vcmp.gt.s32.totalorder %v342, 1
  %vm571 = vcmp.gt.s32.totalorder %v341, 2
  %vm572 = vcmp.gt.s32.totalorder %v342, 2
  %vm573 = vcmp.gt.s32.totalorder %v341, 3
  %vm574 = vcmp.gt.s32.totalorder %v342, 3
  %vm575 = vcmp.gt.s32.totalorder %v341, 4
  %vm576 = vcmp.gt.s32.totalorder %v342, 4
  %vm577 = vcmp.gt.s32.totalorder %v341, 5
  %vm578 = vcmp.gt.s32.totalorder %v342, 5
  %vm579 = vcmp.gt.s32.totalorder %v341, 6
  %vm580 = vcmp.gt.s32.totalorder %v342, 6
  %vm581 = vcmp.gt.s32.totalorder %v341, 7
  %vm582 = vcmp.gt.s32.totalorder %v342, 7
  %v584 = vlaneseq
  %v585 = vshrl.u32 %v584, 7
  %v586 = vsub.s32 0, %v585
  %v587 = vrot.slane %v566, %v586
  %v588 = vlaneseq
  %v589 = vshrl.u32 %v588, 7
  %v590 = vsub.s32 1, %v589
  %v591 = vrot.slane %v566, %v590
  %v602 = vunpack.c.l.b16 %v558
  %v603 = vunpack.c.h.b16 %v558
  %v604 = vunpack.c.l.b16 %v559
  %v605 = vunpack.c.h.b16 %v559
  %v606 = vunpack.c.l.b16 %v560
  %v607 = vunpack.c.h.b16 %v560
  %v608 = vunpack.c.l.b16 %v561
  %v609 = vunpack.c.h.b16 %v561
  %v610 = vunpack.c.l.b16 %v562
  %v611 = vunpack.c.h.b16 %v562
  %v612 = vunpack.c.l.b16 %v563
  %v613 = vunpack.c.h.b16 %v563
  %v614 = vunpack.c.l.b16 %v564
  %v615 = vunpack.c.h.b16 %v564
  %v616 = vunpack.c.l.b16 %v565
  %v617 = vunpack.c.h.b16 %v565
  %v618 = vpack.c.b16 %v604, %v602
  %v619 = vpack.c.b16 %v605, %v603
  %v620 = vpack.c.b16 %v608, %v606
  %v621 = vpack.c.b16 %v609, %v607
  %v622 = vpack.c.b16 %v612, %v610
  %v623 = vpack.c.b16 %v613, %v611
  %v624 = vpack.c.b16 %v616, %v614
  %v625 = vpack.c.b16 %v617, %v615
  %v635 = vsel %vm526, 0, 0
  %637 = vmatprep.subr.bf16.mxu0 %v619
  %638 = vmatpush1.bf16.msra.mxu0 %v618
  %639 = vmatprep.subr.bf16.mxu0 %v621
  %640 = vmatpush1.bf16.msra.mxu0 %v620
  %641 = vmatprep.subr.bf16.mxu0 %v623
  %642 = vmatpush1.bf16.msra.mxu0 %v622
  %643 = vmatprep.subr.bf16.mxu0 %v625
  %644 = vmatpush1.bf16.msra.mxu0 %v624
  %645 = vmatprep.subr.bf16.mxu0 0
  %646 = vmatpush1.bf16.msra.mxu0 0
  %647 = vmatprep.subr.bf16.mxu0 0
  %648 = vmatpush1.bf16.msra.mxu0 0
  %649 = vmatprep.subr.bf16.mxu0 0
  %650 = vmatpush1.bf16.msra.mxu0 0
  %651 = vmatprep.subr.bf16.mxu0 0
  %652 = vmatpush1.bf16.msra.mxu0 0
  %653 = vmatprep.subr.bf16.mxu0 0
  %654 = vmatpush1.bf16.msra.mxu0 0
  %655 = vmatprep.subr.bf16.mxu0 0
  %656 = vmatpush1.bf16.msra.mxu0 0
  %657 = vmatprep.subr.bf16.mxu0 0
  %658 = vmatpush1.bf16.msra.mxu0 0
  %659 = vmatprep.subr.bf16.mxu0 0
  %660 = vmatpush1.bf16.msra.mxu0 0
  %661 = vmatprep.subr.bf16.mxu0 0
  %662 = vmatpush1.bf16.msra.mxu0 0
  %663 = vmatprep.subr.bf16.mxu0 0
  %664 = vmatpush1.bf16.msra.mxu0 0
  %665 = vmatprep.subr.bf16.mxu0 0
  %666 = vmatpush1.bf16.msra.mxu0 0
  %667 = vmatprep.subr.bf16.mxu0 0
  %668 = vmatpush1.bf16.msra.mxu0 0
  %669 = vmatprep.mubr.bf16.mxu0 0
  %670 = vmatmul.mubr.bf16.gmra.mrb[0].mxu0 %v635
  %v671 = vpop.f32.mrb[0].mxu0
  %v672 = vadd.f32 %v587, %v671
  %v673 = vpop.f32.mrb[0].mxu0
  %v674 = vadd.f32 %v591, %v673
  %v675 = vpop.f32.mrb[0].mxu0
  %v676 = vadd.f32 %v587, %v675
  %v677 = vpop.f32.mrb[0].mxu0
  %v678 = vadd.f32 %v591, %v677
  %679 = vdwg.mxu0
  %v680 = vld [vmem:[#allocation2] sm:$0xff]
  %v681 = vld [vmem:[#allocation2 + $0x8] sm:$0xff]
  %v682 = vld [vmem:[#allocation2 + $0x10] sm:$0xff]
  %v683 = vld [vmem:[#allocation2 + $0x18] sm:$0xff]
  %v684 = vld [vmem:[#allocation2 + $0xe0] sm:$0xff]
  %v685 = vld [vmem:[#allocation2 + $0xe8] sm:$0xff]
  %v686 = vld [vmem:[#allocation2 + $0xf0] sm:$0xff]
  %v687 = vld [vmem:[#allocation2 + $0xf8] sm:$0xff]
  %v688 = vadd.f32 %v680, %v672
  %v689 = vadd.f32 %v682, %v676
  %v690 = vxor.u32 %v688, 2147483648
  %v691 = vxor.u32 %v689, 2147483648
  %v692 = vmul.f32 %v690, 1.442695
  %v693 = vpow.pop %v692
  %v694 = vmul.f32 %v691, 1.442695
  %v695 = vpow.pop %v694
  %v696 = vadd.f32 %v693, 1.0
  %v697 = vadd.f32 %v695, 1.0
  %v698 = vrcp.pop %v696
  %v699 = vmul.f32 1.0, %v698
  %v700 = vrcp.pop %v697
  %v701 = vmul.f32 1.0, %v700
  %704 = vrot.lane.b32.xlu0 %v672, 64
  %v705 = vpop.permute.xlu0 %704
  %706 = vrot.lane.b32.xlu0 %v676, 64
  %v707 = vpop.permute.xlu0 %706
  %v710 = vmul.f32 %v699, %v705
  %v711 = vmul.f32 %v701, %v707
  %714 = vrot.lane.b32.xlu0 %v710, 64
  %v715 = vpop.permute.xlu0 %714
  %716 = vrot.lane.b32.xlu0 %v711, 64
  %v717 = vpop.permute.xlu0 %716
  %v720 = vadd.f32 %v680, %v715
  %v721 = vadd.f32 %v682, %v717
  %v722 = vtanh.pop %v720
  %v723 = vtanh.pop %v721
  %v724 = vadd.f32 %v684, %v672
  %v725 = vadd.f32 %v686, %v676
  %v726 = vxor.u32 %v724, 2147483648
  %v727 = vxor.u32 %v725, 2147483648
  %v728 = vmul.f32 %v726, 1.442695
  %v729 = vpow.pop %v728
  %v730 = vmul.f32 %v727, 1.442695
  %v731 = vpow.pop %v730
  %v732 = vadd.f32 %v729, 1.0
  %v733 = vadd.f32 %v731, 1.0
  %v734 = vrcp.pop %v732
  %v735 = vmul.f32 1.0, %v734
  %v736 = vrcp.pop %v733
  %v737 = vmul.f32 1.0, %v736
  %v738 = vadd.f32 %v685, %v674
  %v739 = vadd.f32 %v687, %v678
  %v740 = vxor.u32 %v738, 2147483648
  %v741 = vxor.u32 %v739, 2147483648
  %v742 = vmul.f32 %v740, 1.442695
  %v743 = vpow.pop %v742
  %v744 = vmul.f32 %v741, 1.442695
  %v745 = vpow.pop %v744
  %v746 = vadd.f32 %v743, 1.0
  %v747 = vadd.f32 %v745, 1.0
  %v748 = vrcp.pop %v746
  %v749 = vmul.f32 1.0, %v748
  %v750 = vrcp.pop %v747
  %v751 = vmul.f32 1.0, %v750
  %754 = vrot.lane.b32.xlu0 %v674, 64
  %v755 = vpop.permute.xlu0 %754
  %756 = vrot.lane.b32.xlu0 %v678, 64
  %v757 = vpop.permute.xlu0 %756
  %v760 = vmul.f32 %v735, %v755
  %v761 = vmul.f32 %v737, %v757
  %764 = vrot.lane.b32.xlu0 %v760, 64
  %v765 = vpop.permute.xlu0 %764
  %766 = vrot.lane.b32.xlu0 %v761, 64
  %v767 = vpop.permute.xlu0 %766
  %v770 = vadd.f32 %v685, %v765
  %v771 = vadd.f32 %v687, %v767
  %v772 = vtanh.pop %v770
  %v773 = vtanh.pop %v771
  %v774 = vsub.f32 1.0, %v699
  %v775 = vsub.f32 1.0, %v701
  %778 = vrot.lane.b32.xlu0 %v722, 96
  %v779 = vpop.permute.xlu0 %778
  %780 = vrot.lane.b32.xlu0 %v723, 96
  %v781 = vpop.permute.xlu0 %780
  %v784 = vmul.f32 %v774, %v779
  %v785 = vmul.f32 %v775, %v781
  %v786 = vmul.f32 %v699, 0.0
  %v787 = vmul.f32 %v701, 0.0
  %v788 = vadd.f32 %v784, %v786
  %v789 = vadd.f32 %v785, %v787
  %v790 = vsel %vm567, 1, 0
  %v791 = vsel %vm568, 1, 0
  %792 = vset.pattern.permute.xlu0 0
  %793 = vperm.xlu0 %792, %v790
  %v794 = vpop.permute.xlu0 %793
  %795 = vset.pattern.permute.xlu0 0
  %796 = vperm.xlu0 %795, %v791
  %v797 = vpop.permute.xlu0 %796
  %vm798 = vcmp.eq.s32.totalorder %v794, 1
  %vm799 = vcmp.eq.s32.totalorder %v797, 1
  %v800 = vsel %vm798, %v788, 0.0
  %v801 = vsel %vm799, %v789, 0.0
  %v802 = vsub.f32 1.0, %v749
  %v803 = vsub.f32 1.0, %v751
  %806 = vrot.lane.b32.xlu0 %v772, 96
  %v807 = vpop.permute.xlu0 %806
  %808 = vrot.lane.b32.xlu0 %v773, 96
  %v809 = vpop.permute.xlu0 %808
  %v812 = vmul.f32 %v802, %v807
  %v813 = vmul.f32 %v803, %v809
  %v814 = vmul.f32 %v749, 0.0
  %v815 = vmul.f32 %v751, 0.0
  %v816 = vadd.f32 %v812, %v814
  %v817 = vadd.f32 %v813, %v815
  %v818 = vsel %vm581, 1, 0
  %v819 = vsel %vm582, 1, 0
  %820 = vset.pattern.permute.xlu0 0
  %821 = vperm.xlu0 %820, %v818
  %v822 = vpop.permute.xlu0 %821
  %823 = vset.pattern.permute.xlu0 0
  %824 = vperm.xlu0 %823, %v819
  %v825 = vpop.permute.xlu0 %824
  %vm826 = vcmp.eq.s32.totalorder %v822, 1
  %vm827 = vcmp.eq.s32.totalorder %v825, 1
  %v828 = vsel %vm826, %v816, 0.0
  %v829 = vsel %vm827, %v817, 0.0
  %832 = vrot.lane.b32.xlu0 %v800, 96
  %v833 = vpop.permute.xlu0 %832
  %834 = vrot.lane.b32.xlu0 %v801, 96
  %v835 = vpop.permute.xlu0 %834
  %840 = vrot.lane.b32.xlu0 %v828, 32
  %v841 = vpop.permute.xlu0 %840
  %842 = vrot.lane.b32.xlu0 %v829, 32
  %v843 = vpop.permute.xlu0 %842
  %v846 = vsel %vm387, %v833, %v841
  %v847 = vsel %vm387, %v835, %v843
  %v848 = vpack.c.bf16 %v847, %v846
  %v850 = vsel %vm526, %v848, 0
  %852 = vmatprep.subr.bf16.mxu0 %v619
  %853 = vmatpush1.bf16.msra.mxu0 %v618
  %854 = vmatprep.subr.bf16.mxu0 %v621
  %855 = vmatpush1.bf16.msra.mxu0 %v620
  %856 = vmatprep.subr.bf16.mxu0 %v623
  %857 = vmatpush1.bf16.msra.mxu0 %v622
  %858 = vmatprep.subr.bf16.mxu0 %v625
  %859 = vmatpush1.bf16.msra.mxu0 %v624
  %860 = vmatprep.subr.bf16.mxu0 0
  %861 = vmatpush1.bf16.msra.mxu0 0
  %862 = vmatprep.subr.bf16.mxu0 0
  %863 = vmatpush1.bf16.msra.mxu0 0
  %864 = vmatprep.subr.bf16.mxu0 0
  %865 = vmatpush1.bf16.msra.mxu0 0
  %866 = vmatprep.subr.bf16.mxu0 0
  %867 = vmatpush1.bf16.msra.mxu0 0
  %868 = vmatprep.subr.bf16.mxu0 0
  %869 = vmatpush1.bf16.msra.mxu0 0
  %870 = vmatprep.subr.bf16.mxu0 0
  %871 = vmatpush1.bf16.msra.mxu0 0
  %872 = vmatprep.subr.bf16.mxu0 0
  %873 = vmatpush1.bf16.msra.mxu0 0
  %874 = vmatprep.subr.bf16.mxu0 0
  %875 = vmatpush1.bf16.msra.mxu0 0
  %876 = vmatprep.subr.bf16.mxu0 0
  %877 = vmatpush1.bf16.msra.mxu0 0
  %878 = vmatprep.subr.bf16.mxu0 0
  %879 = vmatpush1.bf16.msra.mxu0 0
  %880 = vmatprep.subr.bf16.mxu0 0
  %881 = vmatpush1.bf16.msra.mxu0 0
  %882 = vmatprep.subr.bf16.mxu0 0
  %883 = vmatpush1.bf16.msra.mxu0 0
  %884 = vmatprep.mubr.bf16.mxu0 0
  %885 = vmatmul.mubr.bf16.gmra.mrb[0].mxu0 %v850
  %v886 = vpop.f32.mrb[0].mxu0
  %v887 = vadd.f32 %v587, %v886
  %v888 = vpop.f32.mrb[0].mxu0
  %v889 = vadd.f32 %v591, %v888
  %v890 = vpop.f32.mrb[0].mxu0
  %v891 = vadd.f32 %v587, %v890
  %v892 = vpop.f32.mrb[0].mxu0
  %v893 = vadd.f32 %v591, %v892
  %894 = vdwg.mxu0
  %v895 = vld [vmem:[#allocation2 + $0x20] sm:$0xff]
  %v896 = vld [vmem:[#allocation2 + $0x28] sm:$0xff]
  %v897 = vld [vmem:[#allocation2 + $0x30] sm:$0xff]
  %v898 = vld [vmem:[#allocation2 + $0x38] sm:$0xff]
  %v899 = vld [vmem:[#allocation2 + $0xc0] sm:$0xff]
  %v900 = vld [vmem:[#allocation2 + $0xc8] sm:$0xff]
  %v901 = vld [vmem:[#allocation2 + $0xd0] sm:$0xff]
  %v902 = vld [vmem:[#allocation2 + $0xd8] sm:$0xff]
  %v903 = vadd.f32 %v895, %v887
  %v904 = vadd.f32 %v897, %v891
  %v905 = vxor.u32 %v903, 2147483648
  %v906 = vxor.u32 %v904, 2147483648
  %v907 = vmul.f32 %v905, 1.442695
  %v908 = vpow.pop %v907
  %v909 = vmul.f32 %v906, 1.442695
  %v910 = vpow.pop %v909
  %v911 = vadd.f32 %v908, 1.0
  %v912 = vadd.f32 %v910, 1.0
  %v913 = vrcp.pop %v911
  %v914 = vmul.f32 1.0, %v913
  %v915 = vrcp.pop %v912
  %v916 = vmul.f32 1.0, %v915
  %919 = vrot.lane.b32.xlu0 %v887, 64
  %v920 = vpop.permute.xlu0 %919
  %921 = vrot.lane.b32.xlu0 %v891, 64
  %v922 = vpop.permute.xlu0 %921
  %v925 = vmul.f32 %v914, %v920
  %v926 = vmul.f32 %v916, %v922
  %929 = vrot.lane.b32.xlu0 %v925, 64
  %v930 = vpop.permute.xlu0 %929
  %931 = vrot.lane.b32.xlu0 %v926, 64
  %v932 = vpop.permute.xlu0 %931
  %v935 = vadd.f32 %v895, %v930
  %v936 = vadd.f32 %v897, %v932
  %v937 = vtanh.pop %v935
  %v938 = vtanh.pop %v936
  %v939 = vadd.f32 %v899, %v887
  %v940 = vadd.f32 %v901, %v891
  %v941 = vxor.u32 %v939, 2147483648
  %v942 = vxor.u32 %v940, 2147483648
  %v943 = vmul.f32 %v941, 1.442695
  %v944 = vpow.pop %v943
  %v945 = vmul.f32 %v942, 1.442695
  %v946 = vpow.pop %v945
  %v947 = vadd.f32 %v944, 1.0
  %v948 = vadd.f32 %v946, 1.0
  %v949 = vrcp.pop %v947
  %v950 = vmul.f32 1.0, %v949
  %v951 = vrcp.pop %v948
  %v952 = vmul.f32 1.0, %v951
  %v953 = vadd.f32 %v900, %v889
  %v954 = vadd.f32 %v902, %v893
  %v955 = vxor.u32 %v953, 2147483648
  %v956 = vxor.u32 %v954, 2147483648
  %v957 = vmul.f32 %v955, 1.442695
  %v958 = vpow.pop %v957
  %v959 = vmul.f32 %v956, 1.442695
  %v960 = vpow.pop %v959
  %v961 = vadd.f32 %v958, 1.0
  %v962 = vadd.f32 %v960, 1.0
  %v963 = vrcp.pop %v961
  %v964 = vmul.f32 1.0, %v963
  %v965 = vrcp.pop %v962
  %v966 = vmul.f32 1.0, %v965
  %969 = vrot.lane.b32.xlu0 %v889, 64
  %v970 = vpop.permute.xlu0 %969
  %971 = vrot.lane.b32.xlu0 %v893, 64
  %v972 = vpop.permute.xlu0 %971
  %v975 = vmul.f32 %v950, %v970
  %v976 = vmul.f32 %v952, %v972
  %979 = vrot.lane.b32.xlu0 %v975, 64
  %v980 = vpop.permute.xlu0 %979
  %981 = vrot.lane.b32.xlu0 %v976, 64
  %v982 = vpop.permute.xlu0 %981
  %v985 = vadd.f32 %v900, %v980
  %v986 = vadd.f32 %v902, %v982
  %v987 = vtanh.pop %v985
  %v988 = vtanh.pop %v986
  %v989 = vsub.f32 1.0, %v914
  %v990 = vsub.f32 1.0, %v916
  %993 = vrot.lane.b32.xlu0 %v937, 96
  %v994 = vpop.permute.xlu0 %993
  %995 = vrot.lane.b32.xlu0 %v938, 96
  %v996 = vpop.permute.xlu0 %995
  %v999 = vmul.f32 %v989, %v994
  %v1000 = vmul.f32 %v990, %v996
  %1003 = vrot.lane.b32.xlu0 %v846, 32
  %v1004 = vpop.permute.xlu0 %1003
  %1005 = vrot.lane.b32.xlu0 %v847, 32
  %v1006 = vpop.permute.xlu0 %1005
  %v1009 = vmul.f32 %v914, %v1004
  %v1010 = vmul.f32 %v916, %v1006
  %v1011 = vadd.f32 %v999, %v1009
  %v1012 = vadd.f32 %v1000, %v1010
  %v1013 = vsel %vm569, 1, 0
  %v1014 = vsel %vm570, 1, 0
  %1015 = vset.pattern.permute.xlu0 0
  %1016 = vperm.xlu0 %1015, %v1013
  %v1017 = vpop.permute.xlu0 %1016
  %1018 = vset.pattern.permute.xlu0 0
  %1019 = vperm.xlu0 %1018, %v1014
  %v1020 = vpop.permute.xlu0 %1019
  %vm1021 = vcmp.eq.s32.totalorder %v1017, 1
  %vm1022 = vcmp.eq.s32.totalorder %v1020, 1
  %v1023 = vsel %vm1021, %v1011, %v1004
  %v1024 = vsel %vm1022, %v1012, %v1006
  %v1025 = vsub.f32 1.0, %v964
  %v1026 = vsub.f32 1.0, %v966
  %1029 = vrot.lane.b32.xlu0 %v987, 96
  %v1030 = vpop.permute.xlu0 %1029
  %1031 = vrot.lane.b32.xlu0 %v988, 96
  %v1032 = vpop.permute.xlu0 %1031
  %v1035 = vmul.f32 %v1025, %v1030
  %v1036 = vmul.f32 %v1026, %v1032
  %1037 = vrot.lane.b32.xlu0 %v846, 96
  %v1038 = vpop.permute.xlu0 %1037
  %1039 = vrot.lane.b32.xlu0 %v847, 96
  %v1040 = vpop.permute.xlu0 %1039
  %v1043 = vmul.f32 %v964, %v1038
  %v1044 = vmul.f32 %v966, %v1040
  %v1045 = vadd.f32 %v1035, %v1043
  %v1046 = vadd.f32 %v1036, %v1044
  %v1047 = vsel %vm579, 1, 0
  %v1048 = vsel %vm580, 1, 0
  %1049 = vset.pattern.permute.xlu0 0
  %1050 = vperm.xlu0 %1049, %v1047
  %v1051 = vpop.permute.xlu0 %1050
  %1052 = vset.pattern.permute.xlu0 0
  %1053 = vperm.xlu0 %1052, %v1048
  %v1054 = vpop.permute.xlu0 %1053
  %vm1055 = vcmp.eq.s32.totalorder %v1051, 1
  %vm1056 = vcmp.eq.s32.totalorder %v1054, 1
  %v1057 = vsel %vm1055, %v1045, %v1038
  %v1058 = vsel %vm1056, %v1046, %v1040
  %1061 = vrot.lane.b32.xlu0 %v1023, 96
  %v1062 = vpop.permute.xlu0 %1061
  %1063 = vrot.lane.b32.xlu0 %v1024, 96
  %v1064 = vpop.permute.xlu0 %1063
  %1069 = vrot.lane.b32.xlu0 %v1057, 32
  %v1070 = vpop.permute.xlu0 %1069
  %1071 = vrot.lane.b32.xlu0 %v1058, 32
  %v1072 = vpop.permute.xlu0 %1071
  %v1075 = vsel %vm387, %v1062, %v1070
  %v1076 = vsel %vm387, %v1064, %v1072
  %v1077 = vpack.c.bf16 %v1076, %v1075
  %v1079 = vsel %vm526, %v1077, 0
  %1081 = vmatprep.subr.bf16.mxu0 %v619
  %1082 = vmatpush1.bf16.msra.mxu0 %v618
  %1083 = vmatprep.subr.bf16.mxu0 %v621
  %1084 = vmatpush1.bf16.msra.mxu0 %v620
  %1085 = vmatprep.subr.bf16.mxu0 %v623
  %1086 = vmatpush1.bf16.msra.mxu0 %v622
  %1087 = vmatprep.subr.bf16.mxu0 %v625
  %1088 = vmatpush1.bf16.msra.mxu0 %v624
  %1089 = vmatprep.subr.bf16.mxu0 0
  %1090 = vmatpush1.bf16.msra.mxu0 0
  %1091 = vmatprep.subr.bf16.mxu0 0
  %1092 = vmatpush1.bf16.msra.mxu0 0
  %1093 = vmatprep.subr.bf16.mxu0 0
  %1094 = vmatpush1.bf16.msra.mxu0 0
  %1095 = vmatprep.subr.bf16.mxu0 0
  %1096 = vmatpush1.bf16.msra.mxu0 0
  %1097 = vmatprep.subr.bf16.mxu0 0
  %1098 = vmatpush1.bf16.msra.mxu0 0
  %1099 = vmatprep.subr.bf16.mxu0 0
  %1100 = vmatpush1.bf16.msra.mxu0 0
  %1101 = vmatprep.subr.bf16.mxu0 0
  %1102 = vmatpush1.bf16.msra.mxu0 0
  %1103 = vmatprep.subr.bf16.mxu0 0
  %1104 = vmatpush1.bf16.msra.mxu0 0
  %1105 = vmatprep.subr.bf16.mxu0 0
  %1106 = vmatpush1.bf16.msra.mxu0 0
  %1107 = vmatprep.subr.bf16.mxu0 0
  %1108 = vmatpush1.bf16.msra.mxu0 0
  %1109 = vmatprep.subr.bf16.mxu0 0
  %1110 = vmatpush1.bf16.msra.mxu0 0
  %1111 = vmatprep.subr.bf16.mxu0 0
  %1112 = vmatpush1.bf16.msra.mxu0 0
  %1113 = vmatprep.mubr.bf16.mxu0 0
  %1114 = vmatmul.mubr.bf16.gmra.mrb[0].mxu0 %v1079
  %v1115 = vpop.f32.mrb[0].mxu0
  %v1116 = vadd.f32 %v587, %v1115
  %v1117 = vpop.f32.mrb[0].mxu0
  %v1118 = vadd.f32 %v591, %v1117
  %v1119 = vpop.f32.mrb[0].mxu0
  %v1120 = vadd.f32 %v587, %v1119
  %v1121 = vpop.f32.mrb[0].mxu0
  %v1122 = vadd.f32 %v591, %v1121
  %1123 = vdwg.mxu0
  %v1124 = vld [vmem:[#allocation2 + $0x40] sm:$0xff]
  %v1125 = vld [vmem:[#allocation2 + $0x48] sm:$0xff]
  %v1126 = vld [vmem:[#allocation2 + $0x50] sm:$0xff]
  %v1127 = vld [vmem:[#allocation2 + $0x58] sm:$0xff]
  %v1128 = vld [vmem:[#allocation2 + $0xa0] sm:$0xff]
  %v1129 = vld [vmem:[#allocation2 + $0xa8] sm:$0xff]
  %v1130 = vld [vmem:[#allocation2 + $0xb0] sm:$0xff]
  %v1131 = vld [vmem:[#allocation2 + $0xb8] sm:$0xff]
  %v1132 = vadd.f32 %v1124, %v1116
  %v1133 = vadd.f32 %v1126, %v1120
  %v1134 = vxor.u32 %v1132, 2147483648
  %v1135 = vxor.u32 %v1133, 2147483648
  %v1136 = vmul.f32 %v1134, 1.442695
  %v1137 = vpow.pop %v1136
  %v1138 = vmul.f32 %v1135, 1.442695
  %v1139 = vpow.pop %v1138
  %v1140 = vadd.f32 %v1137, 1.0
  %v1141 = vadd.f32 %v1139, 1.0
  %v1142 = vrcp.pop %v1140
  %v1143 = vmul.f32 1.0, %v1142
  %v1144 = vrcp.pop %v1141
  %v1145 = vmul.f32 1.0, %v1144
  %1148 = vrot.lane.b32.xlu0 %v1116, 64
  %v1149 = vpop.permute.xlu0 %1148
  %1150 = vrot.lane.b32.xlu0 %v1120, 64
  %v1151 = vpop.permute.xlu0 %1150
  %v1154 = vmul.f32 %v1143, %v1149
  %v1155 = vmul.f32 %v1145, %v1151
  %1158 = vrot.lane.b32.xlu0 %v1154, 64
  %v1159 = vpop.permute.xlu0 %1158
  %1160 = vrot.lane.b32.xlu0 %v1155, 64
  %v1161 = vpop.permute.xlu0 %1160
  %v1164 = vadd.f32 %v1124, %v1159
  %v1165 = vadd.f32 %v1126, %v1161
  %v1166 = vtanh.pop %v1164
  %v1167 = vtanh.pop %v1165
  %v1168 = vadd.f32 %v1128, %v1116
  %v1169 = vadd.f32 %v1130, %v1120
  %v1170 = vxor.u32 %v1168, 2147483648
  %v1171 = vxor.u32 %v1169, 2147483648
  %v1172 = vmul.f32 %v1170, 1.442695
  %v1173 = vpow.pop %v1172
  %v1174 = vmul.f32 %v1171, 1.442695
  %v1175 = vpow.pop %v1174
  %v1176 = vadd.f32 %v1173, 1.0
  %v1177 = vadd.f32 %v1175, 1.0
  %v1178 = vrcp.pop %v1176
  %v1179 = vmul.f32 1.0, %v1178
  %v1180 = vrcp.pop %v1177
  %v1181 = vmul.f32 1.0, %v1180
  %v1182 = vadd.f32 %v1129, %v1118
  %v1183 = vadd.f32 %v1131, %v1122
  %v1184 = vxor.u32 %v1182, 2147483648
  %v1185 = vxor.u32 %v1183, 2147483648
  %v1186 = vmul.f32 %v1184, 1.442695
  %v1187 = vpow.pop %v1186
  %v1188 = vmul.f32 %v1185, 1.442695
  %v1189 = vpow.pop %v1188
  %v1190 = vadd.f32 %v1187, 1.0
  %v1191 = vadd.f32 %v1189, 1.0
  %v1192 = vrcp.pop %v1190
  %v1193 = vmul.f32 1.0, %v1192
  %v1194 = vrcp.pop %v1191
  %v1195 = vmul.f32 1.0, %v1194
  %1198 = vrot.lane.b32.xlu0 %v1118, 64
  %v1199 = vpop.permute.xlu0 %1198
  %1200 = vrot.lane.b32.xlu0 %v1122, 64
  %v1201 = vpop.permute.xlu0 %1200
  %v1204 = vmul.f32 %v1179, %v1199
  %v1205 = vmul.f32 %v1181, %v1201
  %1208 = vrot.lane.b32.xlu0 %v1204, 64
  %v1209 = vpop.permute.xlu0 %1208
  %1210 = vrot.lane.b32.xlu0 %v1205, 64
  %v1211 = vpop.permute.xlu0 %1210
  %v1214 = vadd.f32 %v1129, %v1209
  %v1215 = vadd.f32 %v1131, %v1211
  %v1216 = vtanh.pop %v1214
  %v1217 = vtanh.pop %v1215
  %v1218 = vsub.f32 1.0, %v1143
  %v1219 = vsub.f32 1.0, %v1145
  %1222 = vrot.lane.b32.xlu0 %v1166, 96
  %v1223 = vpop.permute.xlu0 %1222
  %1224 = vrot.lane.b32.xlu0 %v1167, 96
  %v1225 = vpop.permute.xlu0 %1224
  %v1228 = vmul.f32 %v1218, %v1223
  %v1229 = vmul.f32 %v1219, %v1225
  %1232 = vrot.lane.b32.xlu0 %v1075, 32
  %v1233 = vpop.permute.xlu0 %1232
  %1234 = vrot.lane.b32.xlu0 %v1076, 32
  %v1235 = vpop.permute.xlu0 %1234
  %v1238 = vmul.f32 %v1143, %v1233
  %v1239 = vmul.f32 %v1145, %v1235
  %v1240 = vadd.f32 %v1228, %v1238
  %v1241 = vadd.f32 %v1229, %v1239
  %v1242 = vsel %vm571, 1, 0
  %v1243 = vsel %vm572, 1, 0
  %1244 = vset.pattern.permute.xlu0 0
  %1245 = vperm.xlu0 %1244, %v1242
  %v1246 = vpop.permute.xlu0 %1245
  %1247 = vset.pattern.permute.xlu0 0
  %1248 = vperm.xlu0 %1247, %v1243
  %v1249 = vpop.permute.xlu0 %1248
  %vm1250 = vcmp.eq.s32.totalorder %v1246, 1
  %vm1251 = vcmp.eq.s32.totalorder %v1249, 1
  %v1252 = vsel %vm1250, %v1240, %v1233
  %v1253 = vsel %vm1251, %v1241, %v1235
  %v1254 = vsub.f32 1.0, %v1193
  %v1255 = vsub.f32 1.0, %v1195
  %1258 = vrot.lane.b32.xlu0 %v1216, 96
  %v1259 = vpop.permute.xlu0 %1258
  %1260 = vrot.lane.b32.xlu0 %v1217, 96
  %v1261 = vpop.permute.xlu0 %1260
  %v1264 = vmul.f32 %v1254, %v1259
  %v1265 = vmul.f32 %v1255, %v1261
  %1266 = vrot.lane.b32.xlu0 %v1075, 96
  %v1267 = vpop.permute.xlu0 %1266
  %1268 = vrot.lane.b32.xlu0 %v1076, 96
  %v1269 = vpop.permute.xlu0 %1268
  %v1272 = vmul.f32 %v1193, %v1267
  %v1273 = vmul.f32 %v1195, %v1269
  %v1274 = vadd.f32 %v1264, %v1272
  %v1275 = vadd.f32 %v1265, %v1273
  %v1276 = vsel %vm577, 1, 0
  %v1277 = vsel %vm578, 1, 0
  %1278 = vset.pattern.permute.xlu0 0
  %1279 = vperm.xlu0 %1278, %v1276
  %v1280 = vpop.permute.xlu0 %1279
  %1281 = vset.pattern.permute.xlu0 0
  %1282 = vperm.xlu0 %1281, %v1277
  %v1283 = vpop.permute.xlu0 %1282
  %vm1284 = vcmp.eq.s32.totalorder %v1280, 1
  %vm1285 = vcmp.eq.s32.totalorder %v1283, 1
  %v1286 = vsel %vm1284, %v1274, %v1267
  %v1287 = vsel %vm1285, %v1275, %v1269
  %1290 = vrot.lane.b32.xlu0 %v1252, 96
  %v1291 = vpop.permute.xlu0 %1290
  %1292 = vrot.lane.b32.xlu0 %v1253, 96
  %v1293 = vpop.permute.xlu0 %1292
  %1298 = vrot.lane.b32.xlu0 %v1286, 32
  %v1299 = vpop.permute.xlu0 %1298
  %1300 = vrot.lane.b32.xlu0 %v1287, 32
  %v1301 = vpop.permute.xlu0 %1300
  %v1304 = vsel %vm387, %v1291, %v1299
  %v1305 = vsel %vm387, %v1293, %v1301
  %v1306 = vpack.c.bf16 %v1305, %v1304
  %v1308 = vsel %vm526, %v1306, 0
  %1310 = vmatprep.subr.bf16.mxu0 %v619
  %1311 = vmatpush1.bf16.msra.mxu0 %v618
  %1312 = vmatprep.subr.bf16.mxu0 %v621
  %1313 = vmatpush1.bf16.msra.mxu0 %v620
  %1314 = vmatprep.subr.bf16.mxu0 %v623
  %1315 = vmatpush1.bf16.msra.mxu0 %v622
  %1316 = vmatprep.subr.bf16.mxu0 %v625
  %1317 = vmatpush1.bf16.msra.mxu0 %v624
  %1318 = vmatprep.subr.bf16.mxu0 0
  %1319 = vmatpush1.bf16.msra.mxu0 0
  %1320 = vmatprep.subr.bf16.mxu0 0
  %1321 = vmatpush1.bf16.msra.mxu0 0
  %1322 = vmatprep.subr.bf16.mxu0 0
  %1323 = vmatpush1.bf16.msra.mxu0 0
  %1324 = vmatprep.subr.bf16.mxu0 0
  %1325 = vmatpush1.bf16.msra.mxu0 0
  %1326 = vmatprep.subr.bf16.mxu0 0
  %1327 = vmatpush1.bf16.msra.mxu0 0
  %1328 = vmatprep.subr.bf16.mxu0 0
  %1329 = vmatpush1.bf16.msra.mxu0 0
  %1330 = vmatprep.subr.bf16.mxu0 0
  %1331 = vmatpush1.bf16.msra.mxu0 0
  %1332 = vmatprep.subr.bf16.mxu0 0
  %1333 = vmatpush1.bf16.msra.mxu0 0
  %1334 = vmatprep.subr.bf16.mxu0 0
  %1335 = vmatpush1.bf16.msra.mxu0 0
  %1336 = vmatprep.subr.bf16.mxu0 0
  %1337 = vmatpush1.bf16.msra.mxu0 0
  %1338 = vmatprep.subr.bf16.mxu0 0
  %1339 = vmatpush1.bf16.msra.mxu0 0
  %1340 = vmatprep.subr.bf16.mxu0 0
  %1341 = vmatpush1.bf16.msra.mxu0 0
  %1342 = vmatprep.mubr.bf16.mxu0 0
  %1343 = vmatmul.mubr.bf16.gmra.mrb[0].mxu0 %v1308
  %v1344 = vpop.f32.mrb[0].mxu0
  %v1345 = vadd.f32 %v587, %v1344
  %v1346 = vpop.f32.mrb[0].mxu0
  %v1347 = vadd.f32 %v591, %v1346
  %v1348 = vpop.f32.mrb[0].mxu0
  %v1349 = vadd.f32 %v587, %v1348
  %v1350 = vpop.f32.mrb[0].mxu0
  %v1351 = vadd.f32 %v591, %v1350
  %1352 = vdwg.mxu0
  %v1353 = vld [vmem:[#allocation2 + $0x60] sm:$0xff]
  %v1354 = vld [vmem:[#allocation2 + $0x68] sm:$0xff]
  %v1355 = vld [vmem:[#allocation2 + $0x70] sm:$0xff]
  %v1356 = vld [vmem:[#allocation2 + $0x78] sm:$0xff]
  %v1357 = vld [vmem:[#allocation2 + $0x80] sm:$0xff]
  %v1358 = vld [vmem:[#allocation2 + $0x88] sm:$0xff]
  %v1359 = vld [vmem:[#allocation2 + $0x90] sm:$0xff]
  %v1360 = vld [vmem:[#allocation2 + $0x98] sm:$0xff]
  %v1361 = vadd.f32 %v1353, %v1345
  %v1362 = vadd.f32 %v1355, %v1349
  %v1363 = vxor.u32 %v1361, 2147483648
  %v1364 = vxor.u32 %v1362, 2147483648
  %v1365 = vmul.f32 %v1363, 1.442695
  %v1366 = vpow.pop %v1365
  %v1367 = vmul.f32 %v1364, 1.442695
  %v1368 = vpow.pop %v1367
  %v1369 = vadd.f32 %v1366, 1.0
  %v1370 = vadd.f32 %v1368, 1.0
  %v1371 = vrcp.pop %v1369
  %v1372 = vmul.f32 1.0, %v1371
  %v1373 = vrcp.pop %v1370
  %v1374 = vmul.f32 1.0, %v1373
  %1377 = vrot.lane.b32.xlu0 %v1345, 64
  %v1378 = vpop.permute.xlu0 %1377
  %1379 = vrot.lane.b32.xlu0 %v1349, 64
  %v1380 = vpop.permute.xlu0 %1379
  %v1383 = vmul.f32 %v1372, %v1378
  %v1384 = vmul.f32 %v1374, %v1380
  %1387 = vrot.lane.b32.xlu0 %v1383, 64
  %v1388 = vpop.permute.xlu0 %1387
  %1389 = vrot.lane.b32.xlu0 %v1384, 64
  %v1390 = vpop.permute.xlu0 %1389
  %v1393 = vadd.f32 %v1353, %v1388
  %v1394 = vadd.f32 %v1355, %v1390
  %v1395 = vtanh.pop %v1393
  %v1396 = vtanh.pop %v1394
  %v1397 = vadd.f32 %v1357, %v1345
  %v1398 = vadd.f32 %v1359, %v1349
  %v1399 = vxor.u32 %v1397, 2147483648
  %v1400 = vxor.u32 %v1398, 2147483648
  %v1401 = vmul.f32 %v1399, 1.442695
  %v1402 = vpow.pop %v1401
  %v1403 = vmul.f32 %v1400, 1.442695
  %v1404 = vpow.pop %v1403
  %v1405 = vadd.f32 %v1402, 1.0
  %v1406 = vadd.f32 %v1404, 1.0
  %v1407 = vrcp.pop %v1405
  %v1408 = vmul.f32 1.0, %v1407
  %v1409 = vrcp.pop %v1406
  %v1410 = vmul.f32 1.0, %v1409
  %v1411 = vadd.f32 %v1358, %v1347
  %v1412 = vadd.f32 %v1360, %v1351
  %v1413 = vxor.u32 %v1411, 2147483648
  %v1414 = vxor.u32 %v1412, 2147483648
  %v1415 = vmul.f32 %v1413, 1.442695
  %v1416 = vpow.pop %v1415
  %v1417 = vmul.f32 %v1414, 1.442695
  %v1418 = vpow.pop %v1417
  %v1419 = vadd.f32 %v1416, 1.0
  %v1420 = vadd.f32 %v1418, 1.0
  %v1421 = vrcp.pop %v1419
  %v1422 = vmul.f32 1.0, %v1421
  %v1423 = vrcp.pop %v1420
  %v1424 = vmul.f32 1.0, %v1423
  %1427 = vrot.lane.b32.xlu0 %v1347, 64
  %v1428 = vpop.permute.xlu0 %1427
  %1429 = vrot.lane.b32.xlu0 %v1351, 64
  %v1430 = vpop.permute.xlu0 %1429
  %v1433 = vmul.f32 %v1408, %v1428
  %v1434 = vmul.f32 %v1410, %v1430
  %1437 = vrot.lane.b32.xlu0 %v1433, 64
  %v1438 = vpop.permute.xlu0 %1437
  %1439 = vrot.lane.b32.xlu0 %v1434, 64
  %v1440 = vpop.permute.xlu0 %1439
  %v1443 = vadd.f32 %v1358, %v1438
  %v1444 = vadd.f32 %v1360, %v1440
  %v1445 = vtanh.pop %v1443
  %v1446 = vtanh.pop %v1444
  %v1447 = vsub.f32 1.0, %v1372
  %v1448 = vsub.f32 1.0, %v1374
  %1451 = vrot.lane.b32.xlu0 %v1395, 96
  %v1452 = vpop.permute.xlu0 %1451
  %1453 = vrot.lane.b32.xlu0 %v1396, 96
  %v1454 = vpop.permute.xlu0 %1453
  %v1457 = vmul.f32 %v1447, %v1452
  %v1458 = vmul.f32 %v1448, %v1454
  %1461 = vrot.lane.b32.xlu0 %v1304, 32
  %v1462 = vpop.permute.xlu0 %1461
  %1463 = vrot.lane.b32.xlu0 %v1305, 32
  %v1464 = vpop.permute.xlu0 %1463
  %v1467 = vmul.f32 %v1372, %v1462
  %v1468 = vmul.f32 %v1374, %v1464
  %v1469 = vadd.f32 %v1457, %v1467
  %v1470 = vadd.f32 %v1458, %v1468
  %v1471 = vsel %vm573, 1, 0
  %v1472 = vsel %vm574, 1, 0
  %1473 = vset.pattern.permute.xlu0 0
  %1474 = vperm.xlu0 %1473, %v1471
  %v1475 = vpop.permute.xlu0 %1474
  %1476 = vset.pattern.permute.xlu0 0
  %1477 = vperm.xlu0 %1476, %v1472
  %v1478 = vpop.permute.xlu0 %1477
  %vm1479 = vcmp.eq.s32.totalorder %v1475, 1
  %vm1480 = vcmp.eq.s32.totalorder %v1478, 1
  %v1481 = vsel %vm1479, %v1469, %v1462
  %v1482 = vsel %vm1480, %v1470, %v1464
  %v1483 = vsub.f32 1.0, %v1422
  %v1484 = vsub.f32 1.0, %v1424
  %1487 = vrot.lane.b32.xlu0 %v1445, 96
  %v1488 = vpop.permute.xlu0 %1487
  %1489 = vrot.lane.b32.xlu0 %v1446, 96
  %v1490 = vpop.permute.xlu0 %1489
  %v1493 = vmul.f32 %v1483, %v1488
  %v1494 = vmul.f32 %v1484, %v1490
  %1495 = vrot.lane.b32.xlu0 %v1304, 96
  %v1496 = vpop.permute.xlu0 %1495
  %1497 = vrot.lane.b32.xlu0 %v1305, 96
  %v1498 = vpop.permute.xlu0 %1497
  %v1501 = vmul.f32 %v1422, %v1496
  %v1502 = vmul.f32 %v1424, %v1498
  %v1503 = vadd.f32 %v1493, %v1501
  %v1504 = vadd.f32 %v1494, %v1502
  %v1505 = vsel %vm575, 1, 0
  %v1506 = vsel %vm576, 1, 0
  %1507 = vset.pattern.permute.xlu0 0
  %1508 = vperm.xlu0 %1507, %v1505
  %v1509 = vpop.permute.xlu0 %1508
  %1510 = vset.pattern.permute.xlu0 0
  %1511 = vperm.xlu0 %1510, %v1506
  %v1512 = vpop.permute.xlu0 %1511
  %vm1513 = vcmp.eq.s32.totalorder %v1509, 1
  %vm1514 = vcmp.eq.s32.totalorder %v1512, 1
  %v1515 = vsel %vm1513, %v1503, %v1496
  %v1516 = vsel %vm1514, %v1504, %v1498
  %1519 = vrot.lane.b32.xlu0 %v1481, 96
  %v1520 = vpop.permute.xlu0 %1519
  %1521 = vrot.lane.b32.xlu0 %v1482, 96
  %v1522 = vpop.permute.xlu0 %1521
  %1527 = vrot.lane.b32.xlu0 %v1515, 32
  %v1528 = vpop.permute.xlu0 %1527
  %1529 = vrot.lane.b32.xlu0 %v1516, 32
  %v1530 = vpop.permute.xlu0 %1529
  %v1533 = vsel %vm387, %v1520, %v1528
  %v1534 = vsel %vm387, %v1522, %v1530
  %v1535 = vpack.c.bf16 %v1534, %v1533
  %v1537 = vsel %vm526, %v1535, 0
  %1539 = vmatprep.subr.bf16.mxu0 %v619
  %1540 = vmatpush1.bf16.msra.mxu0 %v618
  %1541 = vmatprep.subr.bf16.mxu0 %v621
  %1542 = vmatpush1.bf16.msra.mxu0 %v620
  %1543 = vmatprep.subr.bf16.mxu0 %v623
  %1544 = vmatpush1.bf16.msra.mxu0 %v622
  %1545 = vmatprep.subr.bf16.mxu0 %v625
  %1546 = vmatpush1.bf16.msra.mxu0 %v624
  %1547 = vmatprep.subr.bf16.mxu0 0
  %1548 = vmatpush1.bf16.msra.mxu0 0
  %1549 = vmatprep.subr.bf16.mxu0 0
  %1550 = vmatpush1.bf16.msra.mxu0 0
  %1551 = vmatprep.subr.bf16.mxu0 0
  %1552 = vmatpush1.bf16.msra.mxu0 0
  %1553 = vmatprep.subr.bf16.mxu0 0
  %1554 = vmatpush1.bf16.msra.mxu0 0
  %1555 = vmatprep.subr.bf16.mxu0 0
  %1556 = vmatpush1.bf16.msra.mxu0 0
  %1557 = vmatprep.subr.bf16.mxu0 0
  %1558 = vmatpush1.bf16.msra.mxu0 0
  %1559 = vmatprep.subr.bf16.mxu0 0
  %1560 = vmatpush1.bf16.msra.mxu0 0
  %1561 = vmatprep.subr.bf16.mxu0 0
  %1562 = vmatpush1.bf16.msra.mxu0 0
  %1563 = vmatprep.subr.bf16.mxu0 0
  %1564 = vmatpush1.bf16.msra.mxu0 0
  %1565 = vmatprep.subr.bf16.mxu0 0
  %1566 = vmatpush1.bf16.msra.mxu0 0
  %1567 = vmatprep.subr.bf16.mxu0 0
  %1568 = vmatpush1.bf16.msra.mxu0 0
  %1569 = vmatprep.subr.bf16.mxu0 0
  %1570 = vmatpush1.bf16.msra.mxu0 0
  %1571 = vmatprep.mubr.bf16.mxu0 0
  %1572 = vmatmul.mubr.bf16.gmra.mrb[0].mxu0 %v1537
  %v1573 = vpop.f32.mrb[0].mxu0
  %v1574 = vadd.f32 %v587, %v1573
  %v1575 = vpop.f32.mrb[0].mxu0
  %v1576 = vadd.f32 %v591, %v1575
  %v1577 = vpop.f32.mrb[0].mxu0
  %v1578 = vadd.f32 %v587, %v1577
  %v1579 = vpop.f32.mrb[0].mxu0
  %v1580 = vadd.f32 %v591, %v1579
  %1581 = vdwg.mxu0
  %v1582 = vadd.f32 %v1357, %v1574
  %v1583 = vadd.f32 %v1359, %v1578
  %v1584 = vxor.u32 %v1582, 2147483648
  %v1585 = vxor.u32 %v1583, 2147483648
  %v1586 = vmul.f32 %v1584, 1.442695
  %v1587 = vpow.pop %v1586
  %v1588 = vmul.f32 %v1585, 1.442695
  %v1589 = vpow.pop %v1588
  %v1590 = vadd.f32 %v1587, 1.0
  %v1591 = vadd.f32 %v1589, 1.0
  %v1592 = vrcp.pop %v1590
  %v1593 = vmul.f32 1.0, %v1592
  %v1594 = vrcp.pop %v1591
  %v1595 = vmul.f32 1.0, %v1594
  %1598 = vrot.lane.b32.xlu0 %v1574, 64
  %v1599 = vpop.permute.xlu0 %1598
  %1600 = vrot.lane.b32.xlu0 %v1578, 64
  %v1601 = vpop.permute.xlu0 %1600
  %v1604 = vmul.f32 %v1593, %v1599
  %v1605 = vmul.f32 %v1595, %v1601
  %1608 = vrot.lane.b32.xlu0 %v1604, 64
  %v1609 = vpop.permute.xlu0 %1608
  %1610 = vrot.lane.b32.xlu0 %v1605, 64
  %v1611 = vpop.permute.xlu0 %1610
  %v1614 = vadd.f32 %v1357, %v1609
  %v1615 = vadd.f32 %v1359, %v1611
  %v1616 = vtanh.pop %v1614
  %v1617 = vtanh.pop %v1615
  %v1618 = vadd.f32 %v1353, %v1574
  %v1619 = vadd.f32 %v1355, %v1578
  %v1620 = vxor.u32 %v1618, 2147483648
  %v1621 = vxor.u32 %v1619, 2147483648
  %v1622 = vmul.f32 %v1620, 1.442695
  %v1623 = vpow.pop %v1622
  %v1624 = vmul.f32 %v1621, 1.442695
  %v1625 = vpow.pop %v1624
  %v1626 = vadd.f32 %v1623, 1.0
  %v1627 = vadd.f32 %v1625, 1.0
  %v1628 = vrcp.pop %v1626
  %v1629 = vmul.f32 1.0, %v1628
  %v1630 = vrcp.pop %v1627
  %v1631 = vmul.f32 1.0, %v1630
  %v1632 = vadd.f32 %v1354, %v1576
  %v1633 = vadd.f32 %v1356, %v1580
  %v1634 = vxor.u32 %v1632, 2147483648
  %v1635 = vxor.u32 %v1633, 2147483648
  %v1636 = vmul.f32 %v1634, 1.442695
  %v1637 = vpow.pop %v1636
  %v1638 = vmul.f32 %v1635, 1.442695
  %v1639 = vpow.pop %v1638
  %v1640 = vadd.f32 %v1637, 1.0
  %v1641 = vadd.f32 %v1639, 1.0
  %v1642 = vrcp.pop %v1640
  %v1643 = vmul.f32 1.0, %v1642
  %v1644 = vrcp.pop %v1641
  %v1645 = vmul.f32 1.0, %v1644
  %1648 = vrot.lane.b32.xlu0 %v1576, 64
  %v1649 = vpop.permute.xlu0 %1648
  %1650 = vrot.lane.b32.xlu0 %v1580, 64
  %v1651 = vpop.permute.xlu0 %1650
  %v1654 = vmul.f32 %v1629, %v1649
  %v1655 = vmul.f32 %v1631, %v1651
  %1658 = vrot.lane.b32.xlu0 %v1654, 64
  %v1659 = vpop.permute.xlu0 %1658
  %1660 = vrot.lane.b32.xlu0 %v1655, 64
  %v1661 = vpop.permute.xlu0 %1660
  %v1664 = vadd.f32 %v1354, %v1659
  %v1665 = vadd.f32 %v1356, %v1661
  %v1666 = vtanh.pop %v1664
  %v1667 = vtanh.pop %v1665
  %v1668 = vsub.f32 1.0, %v1593
  %v1669 = vsub.f32 1.0, %v1595
  %1672 = vrot.lane.b32.xlu0 %v1616, 96
  %v1673 = vpop.permute.xlu0 %1672
  %1674 = vrot.lane.b32.xlu0 %v1617, 96
  %v1675 = vpop.permute.xlu0 %1674
  %v1678 = vmul.f32 %v1668, %v1673
  %v1679 = vmul.f32 %v1669, %v1675
  %1682 = vrot.lane.b32.xlu0 %v1533, 32
  %v1683 = vpop.permute.xlu0 %1682
  %1684 = vrot.lane.b32.xlu0 %v1534, 32
  %v1685 = vpop.permute.xlu0 %1684
  %v1688 = vmul.f32 %v1593, %v1683
  %v1689 = vmul.f32 %v1595, %v1685
  %v1690 = vadd.f32 %v1678, %v1688
  %v1691 = vadd.f32 %v1679, %v1689
  %v1692 = vsel %vm1513, %v1690, %v1683
  %v1693 = vsel %vm1514, %v1691, %v1685
  %v1694 = vsub.f32 1.0, %v1643
  %v1695 = vsub.f32 1.0, %v1645
  %1698 = vrot.lane.b32.xlu0 %v1666, 96
  %v1699 = vpop.permute.xlu0 %1698
  %1700 = vrot.lane.b32.xlu0 %v1667, 96
  %v1701 = vpop.permute.xlu0 %1700
  %v1704 = vmul.f32 %v1694, %v1699
  %v1705 = vmul.f32 %v1695, %v1701
  %1706 = vrot.lane.b32.xlu0 %v1533, 96
  %v1707 = vpop.permute.xlu0 %1706
  %1708 = vrot.lane.b32.xlu0 %v1534, 96
  %v1709 = vpop.permute.xlu0 %1708
  %v1712 = vmul.f32 %v1643, %v1707
  %v1713 = vmul.f32 %v1645, %v1709
  %v1714 = vadd.f32 %v1704, %v1712
  %v1715 = vadd.f32 %v1705, %v1713
  %v1716 = vsel %vm1479, %v1714, %v1707
  %v1717 = vsel %vm1480, %v1715, %v1709
  %1720 = vrot.lane.b32.xlu0 %v1692, 96
  %v1721 = vpop.permute.xlu0 %1720
  %1722 = vrot.lane.b32.xlu0 %v1693, 96
  %v1723 = vpop.permute.xlu0 %1722
  %1728 = vrot.lane.b32.xlu0 %v1716, 32
  %v1729 = vpop.permute.xlu0 %1728
  %1730 = vrot.lane.b32.xlu0 %v1717, 32
  %v1731 = vpop.permute.xlu0 %1730
  %v1734 = vsel %vm387, %v1721, %v1729
  %v1735 = vsel %vm387, %v1723, %v1731
  %v1736 = vpack.c.bf16 %v1735, %v1734
  %v1738 = vsel %vm526, %v1736, 0
  %1740 = vmatprep.subr.bf16.mxu0 %v619
  %1741 = vmatpush1.bf16.msra.mxu0 %v618
  %1742 = vmatprep.subr.bf16.mxu0 %v621
  %1743 = vmatpush1.bf16.msra.mxu0 %v620
  %1744 = vmatprep.subr.bf16.mxu0 %v623
  %1745 = vmatpush1.bf16.msra.mxu0 %v622
  %1746 = vmatprep.subr.bf16.mxu0 %v625
  %1747 = vmatpush1.bf16.msra.mxu0 %v624
  %1748 = vmatprep.subr.bf16.mxu0 0
  %1749 = vmatpush1.bf16.msra.mxu0 0
  %1750 = vmatprep.subr.bf16.mxu0 0
  %1751 = vmatpush1.bf16.msra.mxu0 0
  %1752 = vmatprep.subr.bf16.mxu0 0
  %1753 = vmatpush1.bf16.msra.mxu0 0
  %1754 = vmatprep.subr.bf16.mxu0 0
  %1755 = vmatpush1.bf16.msra.mxu0 0
  %1756 = vmatprep.subr.bf16.mxu0 0
  %1757 = vmatpush1.bf16.msra.mxu0 0
  %1758 = vmatprep.subr.bf16.mxu0 0
  %1759 = vmatpush1.bf16.msra.mxu0 0
  %1760 = vmatprep.subr.bf16.mxu0 0
  %1761 = vmatpush1.bf16.msra.mxu0 0
  %1762 = vmatprep.subr.bf16.mxu0 0
  %1763 = vmatpush1.bf16.msra.mxu0 0
  %1764 = vmatprep.subr.bf16.mxu0 0
  %1765 = vmatpush1.bf16.msra.mxu0 0
  %1766 = vmatprep.subr.bf16.mxu0 0
  %1767 = vmatpush1.bf16.msra.mxu0 0
  %1768 = vmatprep.subr.bf16.mxu0 0
  %1769 = vmatpush1.bf16.msra.mxu0 0
  %1770 = vmatprep.subr.bf16.mxu0 0
  %1771 = vmatpush1.bf16.msra.mxu0 0
  %1772 = vmatprep.mubr.bf16.mxu0 0
  %1773 = vmatmul.mubr.bf16.gmra.mrb[0].mxu0 %v1738
  %v1774 = vpop.f32.mrb[0].mxu0
  %v1775 = vadd.f32 %v587, %v1774
  %v1776 = vpop.f32.mrb[0].mxu0
  %v1777 = vadd.f32 %v591, %v1776
  %v1778 = vpop.f32.mrb[0].mxu0
  %v1779 = vadd.f32 %v587, %v1778
  %v1780 = vpop.f32.mrb[0].mxu0
  %v1781 = vadd.f32 %v591, %v1780
  %1782 = vdwg.mxu0
  %v1783 = vadd.f32 %v1128, %v1775
  %v1784 = vadd.f32 %v1130, %v1779
  %v1785 = vxor.u32 %v1783, 2147483648
  %v1786 = vxor.u32 %v1784, 2147483648
  %v1787 = vmul.f32 %v1785, 1.442695
  %v1788 = vpow.pop %v1787
  %v1789 = vmul.f32 %v1786, 1.442695
  %v1790 = vpow.pop %v1789
  %v1791 = vadd.f32 %v1788, 1.0
  %v1792 = vadd.f32 %v1790, 1.0
  %v1793 = vrcp.pop %v1791
  %v1794 = vmul.f32 1.0, %v1793
  %v1795 = vrcp.pop %v1792
  %v1796 = vmul.f32 1.0, %v1795
  %1799 = vrot.lane.b32.xlu0 %v1775, 64
  %v1800 = vpop.permute.xlu0 %1799
  %1801 = vrot.lane.b32.xlu0 %v1779, 64
  %v1802 = vpop.permute.xlu0 %1801
  %v1805 = vmul.f32 %v1794, %v1800
  %v1806 = vmul.f32 %v1796, %v1802
  %1809 = vrot.lane.b32.xlu0 %v1805, 64
  %v1810 = vpop.permute.xlu0 %1809
  %1811 = vrot.lane.b32.xlu0 %v1806, 64
  %v1812 = vpop.permute.xlu0 %1811
  %v1815 = vadd.f32 %v1128, %v1810
  %v1816 = vadd.f32 %v1130, %v1812
  %v1817 = vtanh.pop %v1815
  %v1818 = vtanh.pop %v1816
  %v1819 = vadd.f32 %v1124, %v1775
  %v1820 = vadd.f32 %v1126, %v1779
  %v1821 = vxor.u32 %v1819, 2147483648
  %v1822 = vxor.u32 %v1820, 2147483648
  %v1823 = vmul.f32 %v1821, 1.442695
  %v1824 = vpow.pop %v1823
  %v1825 = vmul.f32 %v1822, 1.442695
  %v1826 = vpow.pop %v1825
  %v1827 = vadd.f32 %v1824, 1.0
  %v1828 = vadd.f32 %v1826, 1.0
  %v1829 = vrcp.pop %v1827
  %v1830 = vmul.f32 1.0, %v1829
  %v1831 = vrcp.pop %v1828
  %v1832 = vmul.f32 1.0, %v1831
  %v1833 = vadd.f32 %v1125, %v1777
  %v1834 = vadd.f32 %v1127, %v1781
  %v1835 = vxor.u32 %v1833, 2147483648
  %v1836 = vxor.u32 %v1834, 2147483648
  %v1837 = vmul.f32 %v1835, 1.442695
  %v1838 = vpow.pop %v1837
  %v1839 = vmul.f32 %v1836, 1.442695
  %v1840 = vpow.pop %v1839
  %v1841 = vadd.f32 %v1838, 1.0
  %v1842 = vadd.f32 %v1840, 1.0
  %v1843 = vrcp.pop %v1841
  %v1844 = vmul.f32 1.0, %v1843
  %v1845 = vrcp.pop %v1842
  %v1846 = vmul.f32 1.0, %v1845
  %1849 = vrot.lane.b32.xlu0 %v1777, 64
  %v1850 = vpop.permute.xlu0 %1849
  %1851 = vrot.lane.b32.xlu0 %v1781, 64
  %v1852 = vpop.permute.xlu0 %1851
  %v1855 = vmul.f32 %v1830, %v1850
  %v1856 = vmul.f32 %v1832, %v1852
  %1859 = vrot.lane.b32.xlu0 %v1855, 64
  %v1860 = vpop.permute.xlu0 %1859
  %1861 = vrot.lane.b32.xlu0 %v1856, 64
  %v1862 = vpop.permute.xlu0 %1861
  %v1865 = vadd.f32 %v1125, %v1860
  %v1866 = vadd.f32 %v1127, %v1862
  %v1867 = vtanh.pop %v1865
  %v1868 = vtanh.pop %v1866
  %v1869 = vsub.f32 1.0, %v1794
  %v1870 = vsub.f32 1.0, %v1796
  %1873 = vrot.lane.b32.xlu0 %v1817, 96
  %v1874 = vpop.permute.xlu0 %1873
  %1875 = vrot.lane.b32.xlu0 %v1818, 96
  %v1876 = vpop.permute.xlu0 %1875
  %v1879 = vmul.f32 %v1869, %v1874
  %v1880 = vmul.f32 %v1870, %v1876
  %1883 = vrot.lane.b32.xlu0 %v1734, 32
  %v1884 = vpop.permute.xlu0 %1883
  %1885 = vrot.lane.b32.xlu0 %v1735, 32
  %v1886 = vpop.permute.xlu0 %1885
  %v1889 = vmul.f32 %v1794, %v1884
  %v1890 = vmul.f32 %v1796, %v1886
  %v1891 = vadd.f32 %v1879, %v1889
  %v1892 = vadd.f32 %v1880, %v1890
  %v1893 = vsel %vm1284, %v1891, %v1884
  %v1894 = vsel %vm1285, %v1892, %v1886
  %v1895 = vsub.f32 1.0, %v1844
  %v1896 = vsub.f32 1.0, %v1846
  %1899 = vrot.lane.b32.xlu0 %v1867, 96
  %v1900 = vpop.permute.xlu0 %1899
  %1901 = vrot.lane.b32.xlu0 %v1868, 96
  %v1902 = vpop.permute.xlu0 %1901
  %v1905 = vmul.f32 %v1895, %v1900
  %v1906 = vmul.f32 %v1896, %v1902
  %1907 = vrot.lane.b32.xlu0 %v1734, 96
  %v1908 = vpop.permute.xlu0 %1907
  %1909 = vrot.lane.b32.xlu0 %v1735, 96
  %v1910 = vpop.permute.xlu0 %1909
  %v1913 = vmul.f32 %v1844, %v1908
  %v1914 = vmul.f32 %v1846, %v1910
  %v1915 = vadd.f32 %v1905, %v1913
  %v1916 = vadd.f32 %v1906, %v1914
  %v1917 = vsel %vm1250, %v1915, %v1908
  %v1918 = vsel %vm1251, %v1916, %v1910
  %1921 = vrot.lane.b32.xlu0 %v1893, 96
  %v1922 = vpop.permute.xlu0 %1921
  %1923 = vrot.lane.b32.xlu0 %v1894, 96
  %v1924 = vpop.permute.xlu0 %1923
  %1929 = vrot.lane.b32.xlu0 %v1917, 32
  %v1930 = vpop.permute.xlu0 %1929
  %1931 = vrot.lane.b32.xlu0 %v1918, 32
  %v1932 = vpop.permute.xlu0 %1931
  %v1935 = vsel %vm387, %v1922, %v1930
  %v1936 = vsel %vm387, %v1924, %v1932
  %v1937 = vpack.c.bf16 %v1936, %v1935
  %v1939 = vsel %vm526, %v1937, 0
  %1941 = vmatprep.subr.bf16.mxu0 %v619
  %1942 = vmatpush1.bf16.msra.mxu0 %v618
  %1943 = vmatprep.subr.bf16.mxu0 %v621
  %1944 = vmatpush1.bf16.msra.mxu0 %v620
  %1945 = vmatprep.subr.bf16.mxu0 %v623
  %1946 = vmatpush1.bf16.msra.mxu0 %v622
  %1947 = vmatprep.subr.bf16.mxu0 %v625
  %1948 = vmatpush1.bf16.msra.mxu0 %v624
  %1949 = vmatprep.subr.bf16.mxu0 0
  %1950 = vmatpush1.bf16.msra.mxu0 0
  %1951 = vmatprep.subr.bf16.mxu0 0
  %1952 = vmatpush1.bf16.msra.mxu0 0
  %1953 = vmatprep.subr.bf16.mxu0 0
  %1954 = vmatpush1.bf16.msra.mxu0 0
  %1955 = vmatprep.subr.bf16.mxu0 0
  %1956 = vmatpush1.bf16.msra.mxu0 0
  %1957 = vmatprep.subr.bf16.mxu0 0
  %1958 = vmatpush1.bf16.msra.mxu0 0
  %1959 = vmatprep.subr.bf16.mxu0 0
  %1960 = vmatpush1.bf16.msra.mxu0 0
  %1961 = vmatprep.subr.bf16.mxu0 0
  %1962 = vmatpush1.bf16.msra.mxu0 0
  %1963 = vmatprep.subr.bf16.mxu0 0
  %1964 = vmatpush1.bf16.msra.mxu0 0
  %1965 = vmatprep.subr.bf16.mxu0 0
  %1966 = vmatpush1.bf16.msra.mxu0 0
  %1967 = vmatprep.subr.bf16.mxu0 0
  %1968 = vmatpush1.bf16.msra.mxu0 0
  %1969 = vmatprep.subr.bf16.mxu0 0
  %1970 = vmatpush1.bf16.msra.mxu0 0
  %1971 = vmatprep.subr.bf16.mxu0 0
  %1972 = vmatpush1.bf16.msra.mxu0 0
  %1973 = vmatprep.mubr.bf16.mxu0 0
  %1974 = vmatmul.mubr.bf16.gmra.mrb[0].mxu0 %v1939
  %v1975 = vpop.f32.mrb[0].mxu0
  %v1976 = vadd.f32 %v587, %v1975
  %v1977 = vpop.f32.mrb[0].mxu0
  %v1978 = vadd.f32 %v591, %v1977
  %v1979 = vpop.f32.mrb[0].mxu0
  %v1980 = vadd.f32 %v587, %v1979
  %v1981 = vpop.f32.mrb[0].mxu0
  %v1982 = vadd.f32 %v591, %v1981
  %1983 = vdwg.mxu0
  %v1984 = vadd.f32 %v899, %v1976
  %v1985 = vadd.f32 %v901, %v1980
  %v1986 = vxor.u32 %v1984, 2147483648
  %v1987 = vxor.u32 %v1985, 2147483648
  %v1988 = vmul.f32 %v1986, 1.442695
  %v1989 = vpow.pop %v1988
  %v1990 = vmul.f32 %v1987, 1.442695
  %v1991 = vpow.pop %v1990
  %v1992 = vadd.f32 %v1989, 1.0
  %v1993 = vadd.f32 %v1991, 1.0
  %v1994 = vrcp.pop %v1992
  %v1995 = vmul.f32 1.0, %v1994
  %v1996 = vrcp.pop %v1993
  %v1997 = vmul.f32 1.0, %v1996
  %2000 = vrot.lane.b32.xlu0 %v1976, 64
  %v2001 = vpop.permute.xlu0 %2000
  %2002 = vrot.lane.b32.xlu0 %v1980, 64
  %v2003 = vpop.permute.xlu0 %2002
  %v2006 = vmul.f32 %v1995, %v2001
  %v2007 = vmul.f32 %v1997, %v2003
  %2010 = vrot.lane.b32.xlu0 %v2006, 64
  %v2011 = vpop.permute.xlu0 %2010
  %2012 = vrot.lane.b32.xlu0 %v2007, 64
  %v2013 = vpop.permute.xlu0 %2012
  %v2016 = vadd.f32 %v899, %v2011
  %v2017 = vadd.f32 %v901, %v2013
  %v2018 = vtanh.pop %v2016
  %v2019 = vtanh.pop %v2017
  %v2020 = vadd.f32 %v895, %v1976
  %v2021 = vadd.f32 %v897, %v1980
  %v2022 = vxor.u32 %v2020, 2147483648
  %v2023 = vxor.u32 %v2021, 2147483648
  %v2024 = vmul.f32 %v2022, 1.442695
  %v2025 = vpow.pop %v2024
  %v2026 = vmul.f32 %v2023, 1.442695
  %v2027 = vpow.pop %v2026
  %v2028 = vadd.f32 %v2025, 1.0
  %v2029 = vadd.f32 %v2027, 1.0
  %v2030 = vrcp.pop %v2028
  %v2031 = vmul.f32 1.0, %v2030
  %v2032 = vrcp.pop %v2029
  %v2033 = vmul.f32 1.0, %v2032
  %v2034 = vadd.f32 %v896, %v1978
  %v2035 = vadd.f32 %v898, %v1982
  %v2036 = vxor.u32 %v2034, 2147483648
  %v2037 = vxor.u32 %v2035, 2147483648
  %v2038 = vmul.f32 %v2036, 1.442695
  %v2039 = vpow.pop %v2038
  %v2040 = vmul.f32 %v2037, 1.442695
  %v2041 = vpow.pop %v2040
  %v2042 = vadd.f32 %v2039, 1.0
  %v2043 = vadd.f32 %v2041, 1.0
  %v2044 = vrcp.pop %v2042
  %v2045 = vmul.f32 1.0, %v2044
  %v2046 = vrcp.pop %v2043
  %v2047 = vmul.f32 1.0, %v2046
  %2050 = vrot.lane.b32.xlu0 %v1978, 64
  %v2051 = vpop.permute.xlu0 %2050
  %2052 = vrot.lane.b32.xlu0 %v1982, 64
  %v2053 = vpop.permute.xlu0 %2052
  %v2056 = vmul.f32 %v2031, %v2051
  %v2057 = vmul.f32 %v2033, %v2053
  %2060 = vrot.lane.b32.xlu0 %v2056, 64
  %v2061 = vpop.permute.xlu0 %2060
  %2062 = vrot.lane.b32.xlu0 %v2057, 64
  %v2063 = vpop.permute.xlu0 %2062
  %v2066 = vadd.f32 %v896, %v2061
  %v2067 = vadd.f32 %v898, %v2063
  %v2068 = vtanh.pop %v2066
  %v2069 = vtanh.pop %v2067
  %v2070 = vsub.f32 1.0, %v1995
  %v2071 = vsub.f32 1.0, %v1997
  %2074 = vrot.lane.b32.xlu0 %v2018, 96
  %v2075 = vpop.permute.xlu0 %2074
  %2076 = vrot.lane.b32.xlu0 %v2019, 96
  %v2077 = vpop.permute.xlu0 %2076
  %v2080 = vmul.f32 %v2070, %v2075
  %v2081 = vmul.f32 %v2071, %v2077
  %2084 = vrot.lane.b32.xlu0 %v1935, 32
  %v2085 = vpop.permute.xlu0 %2084
  %2086 = vrot.lane.b32.xlu0 %v1936, 32
  %v2087 = vpop.permute.xlu0 %2086
  %v2090 = vmul.f32 %v1995, %v2085
  %v2091 = vmul.f32 %v1997, %v2087
  %v2092 = vadd.f32 %v2080, %v2090
  %v2093 = vadd.f32 %v2081, %v2091
  %v2094 = vsel %vm1055, %v2092, %v2085
  %v2095 = vsel %vm1056, %v2093, %v2087
  %v2096 = vsub.f32 1.0, %v2045
  %v2097 = vsub.f32 1.0, %v2047
  %2100 = vrot.lane.b32.xlu0 %v2068, 96
  %v2101 = vpop.permute.xlu0 %2100
  %2102 = vrot.lane.b32.xlu0 %v2069, 96
  %v2103 = vpop.permute.xlu0 %2102
  %v2106 = vmul.f32 %v2096, %v2101
  %v2107 = vmul.f32 %v2097, %v2103
  %2108 = vrot.lane.b32.xlu0 %v1935, 96
  %v2109 = vpop.permute.xlu0 %2108
  %2110 = vrot.lane.b32.xlu0 %v1936, 96
  %v2111 = vpop.permute.xlu0 %2110
  %v2114 = vmul.f32 %v2045, %v2109
  %v2115 = vmul.f32 %v2047, %v2111
  %v2116 = vadd.f32 %v2106, %v2114
  %v2117 = vadd.f32 %v2107, %v2115
  %v2118 = vsel %vm1021, %v2116, %v2109
  %v2119 = vsel %vm1022, %v2117, %v2111
  %2122 = vrot.lane.b32.xlu0 %v2094, 96
  %v2123 = vpop.permute.xlu0 %2122
  %2124 = vrot.lane.b32.xlu0 %v2095, 96
  %v2125 = vpop.permute.xlu0 %2124
  %2130 = vrot.lane.b32.xlu0 %v2118, 32
  %v2131 = vpop.permute.xlu0 %2130
  %2132 = vrot.lane.b32.xlu0 %v2119, 32
  %v2133 = vpop.permute.xlu0 %2132
  %v2136 = vsel %vm387, %v2123, %v2131
  %v2137 = vsel %vm387, %v2125, %v2133
  %v2138 = vpack.c.bf16 %v2137, %v2136
  %v2140 = vsel %vm526, %v2138, 0
  %2142 = vmatprep.subr.bf16.mxu0 %v619
  %2143 = vmatpush1.bf16.msra.mxu0 %v618
  %2144 = vmatprep.subr.bf16.mxu0 %v621
  %2145 = vmatpush1.bf16.msra.mxu0 %v620
  %2146 = vmatprep.subr.bf16.mxu0 %v623
  %2147 = vmatpush1.bf16.msra.mxu0 %v622
  %2148 = vmatprep.subr.bf16.mxu0 %v625
  %2149 = vmatpush1.bf16.msra.mxu0 %v624
  %2150 = vmatprep.subr.bf16.mxu0 0
  %2151 = vmatpush1.bf16.msra.mxu0 0
  %2152 = vmatprep.subr.bf16.mxu0 0
  %2153 = vmatpush1.bf16.msra.mxu0 0
  %2154 = vmatprep.subr.bf16.mxu0 0
  %2155 = vmatpush1.bf16.msra.mxu0 0
  %2156 = vmatprep.subr.bf16.mxu0 0
  %2157 = vmatpush1.bf16.msra.mxu0 0
  %2158 = vmatprep.subr.bf16.mxu0 0
  %2159 = vmatpush1.bf16.msra.mxu0 0
  %2160 = vmatprep.subr.bf16.mxu0 0
  %2161 = vmatpush1.bf16.msra.mxu0 0
  %2162 = vmatprep.subr.bf16.mxu0 0
  %2163 = vmatpush1.bf16.msra.mxu0 0
  %2164 = vmatprep.subr.bf16.mxu0 0
  %2165 = vmatpush1.bf16.msra.mxu0 0
  %2166 = vmatprep.subr.bf16.mxu0 0
  %2167 = vmatpush1.bf16.msra.mxu0 0
  %2168 = vmatprep.subr.bf16.mxu0 0
  %2169 = vmatpush1.bf16.msra.mxu0 0
  %2170 = vmatprep.subr.bf16.mxu0 0
  %2171 = vmatpush1.bf16.msra.mxu0 0
  %2172 = vmatprep.subr.bf16.mxu0 0
  %2173 = vmatpush1.bf16.msra.mxu0 0
  %2174 = vmatprep.mubr.bf16.mxu0 0
  %2175 = vmatmul.mubr.bf16.gmra.mrb[0].mxu0 %v2140
  %v2176 = vpop.f32.mrb[0].mxu0
  %v2177 = vadd.f32 %v587, %v2176
  %v2178 = vpop.f32.mrb[0].mxu0
  %v2179 = vadd.f32 %v591, %v2178
  %v2180 = vpop.f32.mrb[0].mxu0
  %v2181 = vadd.f32 %v587, %v2180
  %v2182 = vpop.f32.mrb[0].mxu0
  %v2183 = vadd.f32 %v591, %v2182
  %2184 = vdwg.mxu0
  %v2185 = vadd.f32 %v684, %v2177
  %v2186 = vadd.f32 %v686, %v2181
  %v2187 = vxor.u32 %v2185, 2147483648
  %v2188 = vxor.u32 %v2186, 2147483648
  %v2189 = vmul.f32 %v2187, 1.442695
  %v2190 = vpow.pop %v2189
  %v2191 = vmul.f32 %v2188, 1.442695
  %v2192 = vpow.pop %v2191
  %v2193 = vadd.f32 %v2190, 1.0
  %v2194 = vadd.f32 %v2192, 1.0
  %v2195 = vrcp.pop %v2193
  %v2196 = vmul.f32 1.0, %v2195
  %v2197 = vrcp.pop %v2194
  %v2198 = vmul.f32 1.0, %v2197
  %2201 = vrot.lane.b32.xlu0 %v2177, 64
  %v2202 = vpop.permute.xlu0 %2201
  %2203 = vrot.lane.b32.xlu0 %v2181, 64
  %v2204 = vpop.permute.xlu0 %2203
  %v2207 = vmul.f32 %v2196, %v2202
  %v2208 = vmul.f32 %v2198, %v2204
  %2211 = vrot.lane.b32.xlu0 %v2207, 64
  %v2212 = vpop.permute.xlu0 %2211
  %2213 = vrot.lane.b32.xlu0 %v2208, 64
  %v2214 = vpop.permute.xlu0 %2213
  %v2217 = vadd.f32 %v684, %v2212
  %v2218 = vadd.f32 %v686, %v2214
  %v2219 = vtanh.pop %v2217
  %v2220 = vtanh.pop %v2218
  %v2221 = vadd.f32 %v680, %v2177
  %v2222 = vadd.f32 %v682, %v2181
  %v2223 = vxor.u32 %v2221, 2147483648
  %v2224 = vxor.u32 %v2222, 2147483648
  %v2225 = vmul.f32 %v2223, 1.442695
  %v2226 = vpow.pop %v2225
  %v2227 = vmul.f32 %v2224, 1.442695
  %v2228 = vpow.pop %v2227
  %v2229 = vadd.f32 %v2226, 1.0
  %v2230 = vadd.f32 %v2228, 1.0
  %v2231 = vrcp.pop %v2229
  %v2232 = vmul.f32 1.0, %v2231
  %v2233 = vrcp.pop %v2230
  %v2234 = vmul.f32 1.0, %v2233
  %v2235 = vadd.f32 %v681, %v2179
  %v2236 = vadd.f32 %v683, %v2183
  %v2237 = vxor.u32 %v2235, 2147483648
  %v2238 = vxor.u32 %v2236, 2147483648
  %v2239 = vmul.f32 %v2237, 1.442695
  %v2240 = vpow.pop %v2239
  %v2241 = vmul.f32 %v2238, 1.442695
  %v2242 = vpow.pop %v2241
  %v2243 = vadd.f32 %v2240, 1.0
  %v2244 = vadd.f32 %v2242, 1.0
  %v2245 = vrcp.pop %v2243
  %v2246 = vmul.f32 1.0, %v2245
  %v2247 = vrcp.pop %v2244
  %v2248 = vmul.f32 1.0, %v2247
  %2251 = vrot.lane.b32.xlu0 %v2179, 64
  %v2252 = vpop.permute.xlu0 %2251
  %2253 = vrot.lane.b32.xlu0 %v2183, 64
  %v2254 = vpop.permute.xlu0 %2253
  %v2257 = vmul.f32 %v2232, %v2252
  %v2258 = vmul.f32 %v2234, %v2254
  %2261 = vrot.lane.b32.xlu0 %v2257, 64
  %v2262 = vpop.permute.xlu0 %2261
  %2263 = vrot.lane.b32.xlu0 %v2258, 64
  %v2264 = vpop.permute.xlu0 %2263
  %v2267 = vadd.f32 %v681, %v2262
  %v2268 = vadd.f32 %v683, %v2264
  %v2269 = vtanh.pop %v2267
  %v2270 = vtanh.pop %v2268
  %v2271 = vsub.f32 1.0, %v2196
  %v2272 = vsub.f32 1.0, %v2198
  %2275 = vrot.lane.b32.xlu0 %v2219, 96
  %v2276 = vpop.permute.xlu0 %2275
  %2277 = vrot.lane.b32.xlu0 %v2220, 96
  %v2278 = vpop.permute.xlu0 %2277
  %v2281 = vmul.f32 %v2271, %v2276
  %v2282 = vmul.f32 %v2272, %v2278
  %2285 = vrot.lane.b32.xlu0 %v2136, 32
  %v2286 = vpop.permute.xlu0 %2285
  %2287 = vrot.lane.b32.xlu0 %v2137, 32
  %v2288 = vpop.permute.xlu0 %2287
  %v2291 = vmul.f32 %v2196, %v2286
  %v2292 = vmul.f32 %v2198, %v2288
  %v2293 = vadd.f32 %v2281, %v2291
  %v2294 = vadd.f32 %v2282, %v2292
  %v2295 = vsel %vm826, %v2293, %v2286
  %v2296 = vsel %vm827, %v2294, %v2288
  %v2297 = vsub.f32 1.0, %v2246
  %v2298 = vsub.f32 1.0, %v2248
  %2301 = vrot.lane.b32.xlu0 %v2269, 96
  %v2302 = vpop.permute.xlu0 %2301
  %2303 = vrot.lane.b32.xlu0 %v2270, 96
  %v2304 = vpop.permute.xlu0 %2303
  %v2307 = vmul.f32 %v2297, %v2302
  %v2308 = vmul.f32 %v2298, %v2304
  %2309 = vrot.lane.b32.xlu0 %v2136, 96
  %v2310 = vpop.permute.xlu0 %2309
  %2311 = vrot.lane.b32.xlu0 %v2137, 96
  %v2312 = vpop.permute.xlu0 %2311
  %v2315 = vmul.f32 %v2246, %v2310
  %v2316 = vmul.f32 %v2248, %v2312
  %v2317 = vadd.f32 %v2307, %v2315
  %v2318 = vadd.f32 %v2308, %v2316
  %v2319 = vsel %vm798, %v2317, %v2310
  %v2320 = vsel %vm799, %v2318, %v2312
  %2323 = vrot.lane.b32.xlu0 %v2295, 96
  %v2324 = vpop.permute.xlu0 %2323
  %2325 = vrot.lane.b32.xlu0 %v2296, 96
  %v2326 = vpop.permute.xlu0 %2325
  %2331 = vrot.lane.b32.xlu0 %v2319, 32
  %v2332 = vpop.permute.xlu0 %2331
  %2333 = vrot.lane.b32.xlu0 %v2320, 32
  %v2334 = vpop.permute.xlu0 %2333
  %v2337 = vsel %vm387, %v2324, %v2332
  %v2338 = vsel %vm387, %v2326, %v2334
  %2341 = vrot.lane.b32.xlu0 %v2337, 96
  %v2342 = vpop.permute.xlu0 %2341
  %2343 = vrot.lane.b32.xlu0 %v2338, 96
  %v2344 = vpop.permute.xlu0 %2343
  %v2347 = vadd.f32 %v2337, %v2342
  %v2348 = vadd.f32 %v2338, %v2344
  %v2349 = vld [vmem:[%s3] sm:$0x1]
  %v2350 = vlaneseq
  %v2351 = vshrl.u32 %v2350, 7
  %v2352 = vadd.s32 %v2351, 8
  %v2353 = vadd.s32 %v2351, 16
  %v2354 = vadd.s32 %v2351, 24
  %v2355 = vlaneseq
  %v2356 = vshrl.u32 %v2355, 7
  %v2357 = vsub.s32 0, %v2356
  %v2358 = vrot.slane %v2349, %v2357
  %vm2359 = vcmp.eq.s32.totalorder %v2351, %v2358
  %vm2360 = vcmp.eq.s32.totalorder %v2352, %v2358
  %vm2361 = vcmp.eq.s32.totalorder %v2353, %v2358
  %vm2362 = vcmp.eq.s32.totalorder %v2354, %v2358
  %v2363 = vsel %vm2359, 1, 0
  %v2364 = vsel %vm2360, 1, 0
  %v2365 = vsel %vm2361, 1, 0
  %v2366 = vsel %vm2362, 1, 0
  %v2367 = vcvt.s32.f32 %v2363
  %v2368 = vcvt.s32.f32 %v2364
  %v2369 = vcvt.s32.f32 %v2365
  %v2370 = vcvt.s32.f32 %v2366
  %v2371 = vpack.c.bf16 %v2368, %v2367
  %v2372 = vpack.c.bf16 %v2370, %v2369
  %v2373 = vpack.c.bf16 %v2348, %v2347
  %vm2374 = vcmask 130048
  %v2376 = vsel %vm2374, %v2371, 0
  %v2379 = vsel %vm2374, %v2372, 0
  %2381 = vmatprep.subr.bf16.mxu0 0
  %2382 = vmatpush1.bf16.msra.mxu0 %v2373
  %2383 = vmatprep.subr.bf16.mxu0 0
  %2384 = vmatpush1.bf16.msra.mxu0 0
  %2385 = vmatprep.subr.bf16.mxu0 0
  %2386 = vmatpush1.bf16.msra.mxu0 0
  %2387 = vmatprep.subr.bf16.mxu0 0
  %2388 = vmatpush1.bf16.msra.mxu0 0
  %2389 = vmatprep.subr.bf16.mxu0 0
  %2390 = vmatpush1.bf16.msra.mxu0 0
  %2391 = vmatprep.subr.bf16.mxu0 0
  %2392 = vmatpush1.bf16.msra.mxu0 0
  %2393 = vmatprep.subr.bf16.mxu0 0
  %2394 = vmatpush1.bf16.msra.mxu0 0
  %2395 = vmatprep.subr.bf16.mxu0 0
  %2396 = vmatpush1.bf16.msra.mxu0 0
  %2397 = vmatprep.subr.bf16.mxu0 0
  %2398 = vmatpush1.bf16.msra.mxu0 0
  %2399 = vmatprep.subr.bf16.mxu0 0
  %2400 = vmatpush1.bf16.msra.mxu0 0
  %2401 = vmatprep.subr.bf16.mxu0 0
  %2402 = vmatpush1.bf16.msra.mxu0 0
  %2403 = vmatprep.subr.bf16.mxu0 0
  %2404 = vmatpush1.bf16.msra.mxu0 0
  %2405 = vmatprep.subr.bf16.mxu0 0
  %2406 = vmatpush1.bf16.msra.mxu0 0
  %2407 = vmatprep.subr.bf16.mxu0 0
  %2408 = vmatpush1.bf16.msra.mxu0 0
  %2409 = vmatprep.subr.bf16.mxu0 0
  %2410 = vmatpush1.bf16.msra.mxu0 0
  %2411 = vmatprep.subr.bf16.mxu0 0
  %2412 = vmatpush1.bf16.msra.mxu0 0
  %2413 = vmatprep.mubr.bf16.mxu0 0
  %2414 = vmatmul.mubr.bf16.gmra.mrb[0].mxu0 %v2376
  %v2415 = vpop.f32.mrb[0].mxu0
  %v2416 = vadd.f32 0.0, %v2415
  %v2417 = vpop.f32.mrb[0].mxu0
  %v2418 = vpop.f32.mrb[0].mxu0
  %v2419 = vadd.f32 0.0, %v2418
  %v2420 = vpop.f32.mrb[0].mxu0
  %2421 = vmatprep.mubr.bf16.mxu0 0
  %2422 = vmatmul.mubr.bf16.gmra.mrb[0].mxu0 %v2379
  %v2423 = vpop.f32.mrb[0].mxu0
  %v2424 = vadd.f32 0.0, %v2423
  %v2425 = vpop.f32.mrb[0].mxu0
  %v2426 = vpop.f32.mrb[0].mxu0
  %v2427 = vadd.f32 0.0, %v2426
  %v2428 = vpop.f32.mrb[0].mxu0
  %2429 = vdwg.mxu0
  %v2430 = vld [vmem:[%s2] sm:$0xff]
  %v2431 = vpack.c.bf16 %v2419, %v2416
  %v2432 = vpack.c.bf16 %v2427, %v2424
  %v2433 = vld [vmem:[%s9] sm:$0xff]
  %v2434 = vld [vmem:[%s9 + $0x8] sm:$0xff]
  %v2435 = vld [vmem:[%s9 + $0x10] sm:$0xff]
  %v2436 = vld [vmem:[%s9 + $0x18] sm:$0xff]
  %v2437 = vld [vmem:[%s11] sm:$0x3]
  %v2439 = vlaneseq
  %v2440 = vshrl.u32 %v2439, 7
  %v2441 = vsub.s32 0, %v2440
  %v2442 = vrot.slane %v2437, %v2441
  %v2443 = vlaneseq
  %v2444 = vshrl.u32 %v2443, 7
  %v2445 = vsub.s32 1, %v2444
  %v2446 = vrot.slane %v2437, %v2445
  %v2453 = vunpack.c.l.b16 %v2433
  %v2454 = vunpack.c.h.b16 %v2433
  %v2455 = vunpack.c.l.b16 %v2434
  %v2456 = vunpack.c.h.b16 %v2434
  %v2457 = vunpack.c.l.b16 %v2435
  %v2458 = vunpack.c.h.b16 %v2435
  %v2459 = vunpack.c.l.b16 %v2436
  %v2460 = vunpack.c.h.b16 %v2436
  %v2461 = vpack.c.b16 %v2455, %v2453
  %v2462 = vpack.c.b16 %v2456, %v2454
  %v2463 = vpack.c.b16 %v2459, %v2457
  %v2464 = vpack.c.b16 %v2460, %v2458
  %v2470 = vsel %vm387, %v2431, 0
  %v2473 = vsel %vm387, %v2432, 0
  %2475 = vmatprep.subr.bf16.mxu0 %v2462
  %2476 = vmatpush1.bf16.msra.mxu0 %v2461
  %2477 = vmatprep.subr.bf16.mxu0 %v2464
  %2478 = vmatpush1.bf16.msra.mxu0 %v2463
  %2479 = vmatprep.subr.bf16.mxu0 0
  %2480 = vmatpush1.bf16.msra.mxu0 0
  %2481 = vmatprep.subr.bf16.mxu0 0
  %2482 = vmatpush1.bf16.msra.mxu0 0
  %2483 = vmatprep.subr.bf16.mxu0 0
  %2484 = vmatpush1.bf16.msra.mxu0 0
  %2485 = vmatprep.subr.bf16.mxu0 0
  %2486 = vmatpush1.bf16.msra.mxu0 0
  %2487 = vmatprep.subr.bf16.mxu0 0
  %2488 = vmatpush1.bf16.msra.mxu0 0
  %2489 = vmatprep.subr.bf16.mxu0 0
  %2490 = vmatpush1.bf16.msra.mxu0 0
  %2491 = vmatprep.subr.bf16.mxu0 0
  %2492 = vmatpush1.bf16.msra.mxu0 0
  %2493 = vmatprep.subr.bf16.mxu0 0
  %2494 = vmatpush1.bf16.msra.mxu0 0
  %2495 = vmatprep.subr.bf16.mxu0 0
  %2496 = vmatpush1.bf16.msra.mxu0 0
  %2497 = vmatprep.subr.bf16.mxu0 0
  %2498 = vmatpush1.bf16.msra.mxu0 0
  %2499 = vmatprep.subr.bf16.mxu0 0
  %2500 = vmatpush1.bf16.msra.mxu0 0
  %2501 = vmatprep.subr.bf16.mxu0 0
  %2502 = vmatpush1.bf16.msra.mxu0 0
  %2503 = vmatprep.subr.bf16.mxu0 0
  %2504 = vmatpush1.bf16.msra.mxu0 0
  %2505 = vmatprep.subr.bf16.mxu0 0
  %2506 = vmatpush1.bf16.msra.mxu0 0
  %2507 = vmatprep.mubr.bf16.mxu0 0
  %2508 = vmatmul.mubr.bf16.gmra.mrb[0].mxu0 %v2470
  %v2509 = vpop.f32.mrb[0].mxu0
  %v2510 = vadd.f32 %v2442, %v2509
  %v2511 = vpop.f32.mrb[0].mxu0
  %v2512 = vadd.f32 %v2446, %v2511
  %v2513 = vpop.f32.mrb[0].mxu0
  %v2514 = vadd.f32 %v2442, %v2513
  %v2515 = vpop.f32.mrb[0].mxu0
  %v2516 = vadd.f32 %v2446, %v2515
  %2517 = vmatprep.mubr.bf16.mxu0 0
  %2518 = vmatmul.mubr.bf16.gmra.mrb[0].mxu0 %v2473
  %v2519 = vpop.f32.mrb[0].mxu0
  %v2520 = vadd.f32 %v2442, %v2519
  %v2521 = vpop.f32.mrb[0].mxu0
  %v2522 = vadd.f32 %v2446, %v2521
  %v2523 = vpop.f32.mrb[0].mxu0
  %v2524 = vadd.f32 %v2442, %v2523
  %v2525 = vpop.f32.mrb[0].mxu0
  %v2526 = vadd.f32 %v2446, %v2525
  %2527 = vdwg.mxu0
  %2528 = vst [vmem:[#allocation3] sm:$0xff] %v2510
  %2529 = vst.msk [vmem:[#allocation3 + $0x8] sm:$0xff] %vm526, %v2512
  %2530 = vst [vmem:[#allocation3 + $0x10] sm:$0xff] %v2514
  %2531 = vst.msk [vmem:[#allocation3 + $0x18] sm:$0xff] %vm526, %v2516
  %2532 = vst [vmem:[#allocation3 + $0x20] sm:$0xff] %v2520
  %2533 = vst.msk [vmem:[#allocation3 + $0x28] sm:$0xff] %vm526, %v2522
  %2534 = vst [vmem:[#allocation3 + $0x30] sm:$0xff] %v2524
  %2535 = vst.msk [vmem:[#allocation3 + $0x38] sm:$0xff] %vm526, %v2526
  %v2536 = vld [vmem:[%s10] sm:$0xff]
  %v2537 = vld [vmem:[%s10 + $0x8] sm:$0xff]
  %v2538 = vld [vmem:[%s10 + $0x10] sm:$0xff]
  %v2539 = vld [vmem:[%s10 + $0x18] sm:$0xff]
  %v2540 = vld [vmem:[%s10 + $0x20] sm:$0xff]
  %v2541 = vld [vmem:[%s10 + $0x28] sm:$0xff]
  %v2542 = vld [vmem:[%s10 + $0x30] sm:$0xff]
  %v2543 = vld [vmem:[%s10 + $0x38] sm:$0xff]
  %v2544 = vld [vmem:[%s12] sm:$0x3]
  %vm2545 = vcmp.gt.s32.totalorder %v2430, 0
  %vm2546 = vcmp.gt.s32.totalorder %v2430, 1
  %vm2547 = vcmp.gt.s32.totalorder %v2430, 2
  %vm2548 = vcmp.gt.s32.totalorder %v2430, 3
  %v2550 = vlaneseq
  %v2551 = vshrl.u32 %v2550, 7
  %v2552 = vsub.s32 0, %v2551
  %v2553 = vrot.slane %v2544, %v2552
  %v2554 = vlaneseq
  %v2555 = vshrl.u32 %v2554, 7
  %v2556 = vsub.s32 1, %v2555
  %v2557 = vrot.slane %v2544, %v2556
  %v2568 = vunpack.c.l.b16 %v2536
  %v2569 = vunpack.c.h.b16 %v2536
  %v2570 = vunpack.c.l.b16 %v2537
  %v2571 = vunpack.c.h.b16 %v2537
  %v2572 = vunpack.c.l.b16 %v2538
  %v2573 = vunpack.c.h.b16 %v2538
  %v2574 = vunpack.c.l.b16 %v2539
  %v2575 = vunpack.c.h.b16 %v2539
  %v2576 = vunpack.c.l.b16 %v2540
  %v2577 = vunpack.c.h.b16 %v2540
  %v2578 = vunpack.c.l.b16 %v2541
  %v2579 = vunpack.c.h.b16 %v2541
  %v2580 = vunpack.c.l.b16 %v2542
  %v2581 = vunpack.c.h.b16 %v2542
  %v2582 = vunpack.c.l.b16 %v2543
  %v2583 = vunpack.c.h.b16 %v2543
  %v2584 = vpack.c.b16 %v2570, %v2568
  %v2585 = vpack.c.b16 %v2571, %v2569
  %v2586 = vpack.c.b16 %v2574, %v2572
  %v2587 = vpack.c.b16 %v2575, %v2573
  %v2588 = vpack.c.b16 %v2578, %v2576
  %v2589 = vpack.c.b16 %v2579, %v2577
  %v2590 = vpack.c.b16 %v2582, %v2580
  %v2591 = vpack.c.b16 %v2583, %v2581
  %2600 = vmatprep.subr.bf16.mxu0 %v2585
  %2601 = vmatpush1.bf16.msra.mxu0 %v2584
  %2602 = vmatprep.subr.bf16.mxu0 %v2587
  %2603 = vmatpush1.bf16.msra.mxu0 %v2586
  %2604 = vmatprep.subr.bf16.mxu0 %v2589
  %2605 = vmatpush1.bf16.msra.mxu0 %v2588
  %2606 = vmatprep.subr.bf16.mxu0 %v2591
  %2607 = vmatpush1.bf16.msra.mxu0 %v2590
  %2608 = vmatprep.subr.bf16.mxu0 0
  %2609 = vmatpush1.bf16.msra.mxu0 0
  %2610 = vmatprep.subr.bf16.mxu0 0
  %2611 = vmatpush1.bf16.msra.mxu0 0
  %2612 = vmatprep.subr.bf16.mxu0 0
  %2613 = vmatpush1.bf16.msra.mxu0 0
  %2614 = vmatprep.subr.bf16.mxu0 0
  %2615 = vmatpush1.bf16.msra.mxu0 0
  %2616 = vmatprep.subr.bf16.mxu0 0
  %2617 = vmatpush1.bf16.msra.mxu0 0
  %2618 = vmatprep.subr.bf16.mxu0 0
  %2619 = vmatpush1.bf16.msra.mxu0 0
  %2620 = vmatprep.subr.bf16.mxu0 0
  %2621 = vmatpush1.bf16.msra.mxu0 0
  %2622 = vmatprep.subr.bf16.mxu0 0
  %2623 = vmatpush1.bf16.msra.mxu0 0
  %2624 = vmatprep.subr.bf16.mxu0 0
  %2625 = vmatpush1.bf16.msra.mxu0 0
  %2626 = vmatprep.subr.bf16.mxu0 0
  %2627 = vmatpush1.bf16.msra.mxu0 0
  %2628 = vmatprep.subr.bf16.mxu0 0
  %2629 = vmatpush1.bf16.msra.mxu0 0
  %2630 = vmatprep.subr.bf16.mxu0 0
  %2631 = vmatpush1.bf16.msra.mxu0 0
  %2632 = vmatprep.mubr.bf16.mxu0 0
  %2633 = vmatmul.mubr.bf16.gmra.mrb[0].mxu0 %v635
  %v2634 = vpop.f32.mrb[0].mxu0
  %v2635 = vadd.f32 %v2553, %v2634
  %v2636 = vpop.f32.mrb[0].mxu0
  %v2637 = vadd.f32 %v2557, %v2636
  %v2638 = vpop.f32.mrb[0].mxu0
  %v2639 = vpop.f32.mrb[0].mxu0
  %2640 = vdwg.mxu0
  %v2641 = vld [vmem:[#allocation3] sm:$0xff]
  %v2642 = vld [vmem:[#allocation3 + $0x8] sm:$0xff]
  %v2643 = vld [vmem:[#allocation3 + $0x30] sm:$0xff]
  %v2644 = vld [vmem:[#allocation3 + $0x38] sm:$0xff]
  %v2645 = vadd.f32 %v2641, %v2635
  %v2646 = vxor.u32 %v2645, 2147483648
  %v2647 = vmul.f32 %v2646, 1.442695
  %v2648 = vpow.pop %v2647
  %v2649 = vadd.f32 %v2648, 1.0
  %v2650 = vrcp.pop %v2649
  %v2651 = vmul.f32 1.0, %v2650
  %2653 = vrot.lane.b32.xlu0 %v2635, 64
  %v2654 = vpop.permute.xlu0 %2653
  %v2656 = vmul.f32 %v2651, %v2654
  %2658 = vrot.lane.b32.xlu0 %v2656, 64
  %v2659 = vpop.permute.xlu0 %2658
  %v2661 = vadd.f32 %v2641, %v2659
  %v2662 = vtanh.pop %v2661
  %v2663 = vadd.f32 %v2643, %v2635
  %v2664 = vxor.u32 %v2663, 2147483648
  %v2665 = vmul.f32 %v2664, 1.442695
  %v2666 = vpow.pop %v2665
  %v2667 = vadd.f32 %v2666, 1.0
  %v2668 = vrcp.pop %v2667
  %v2669 = vmul.f32 1.0, %v2668
  %v2670 = vadd.f32 %v2644, %v2637
  %v2671 = vxor.u32 %v2670, 2147483648
  %v2672 = vmul.f32 %v2671, 1.442695
  %v2673 = vpow.pop %v2672
  %v2674 = vadd.f32 %v2673, 1.0
  %v2675 = vrcp.pop %v2674
  %v2676 = vmul.f32 1.0, %v2675
  %2678 = vrot.lane.b32.xlu0 %v2637, 64
  %v2679 = vpop.permute.xlu0 %2678
  %v2681 = vmul.f32 %v2669, %v2679
  %2683 = vrot.lane.b32.xlu0 %v2681, 64
  %v2684 = vpop.permute.xlu0 %2683
  %v2686 = vadd.f32 %v2644, %v2684
  %v2687 = vtanh.pop %v2686
  %v2688 = vsub.f32 1.0, %v2651
  %2690 = vrot.lane.b32.xlu0 %v2662, 96
  %v2691 = vpop.permute.xlu0 %2690
  %v2693 = vmul.f32 %v2688, %v2691
  %v2694 = vmul.f32 %v2651, 0.0
  %v2695 = vadd.f32 %v2693, %v2694
  %v2696 = vsel %vm2545, 1, 0
  %2697 = vset.pattern.permute.xlu0 0
  %2698 = vperm.xlu0 %2697, %v2696
  %v2699 = vpop.permute.xlu0 %2698
  %vm2700 = vcmp.eq.s32.totalorder %v2699, 1
  %v2701 = vsel %vm2700, %v2695, 0.0
  %v2702 = vsub.f32 1.0, %v2676
  %2704 = vrot.lane.b32.xlu0 %v2687, 96
  %v2705 = vpop.permute.xlu0 %2704
  %v2707 = vmul.f32 %v2702, %v2705
  %v2708 = vmul.f32 %v2676, 0.0
  %v2709 = vadd.f32 %v2707, %v2708
  %v2710 = vsel %vm2548, 1, 0
  %2711 = vset.pattern.permute.xlu0 0
  %2712 = vperm.xlu0 %2711, %v2710
  %v2713 = vpop.permute.xlu0 %2712
  %vm2714 = vcmp.eq.s32.totalorder %v2713, 1
  %v2715 = vsel %vm2714, %v2709, 0.0
  %2717 = vrot.lane.b32.xlu0 %v2701, 96
  %v2718 = vpop.permute.xlu0 %2717
  %2721 = vrot.lane.b32.xlu0 %v2715, 32
  %v2722 = vpop.permute.xlu0 %2721
  %v2724 = vsel %vm387, %v2718, %v2722
  %vm2725 = vcmp.eq.s32.totalorder %v2430, 4
  %v2726 = vsel %vm2725, 1, 0
  %2727 = vset.pattern.permute.xlu0 0
  %2728 = vperm.xlu0 %2727, %v2726
  %v2729 = vpop.permute.xlu0 %2728
  %vm2730 = vcmp.eq.s32.totalorder %v2729, 1
  %v2731 = vsel %vm2730, %v2715, 0.0
  %v2732 = vpack.c.bf16 %v2724, %v2724
  %v2734 = vsel %vm526, %v2732, 0
  %2736 = vmatprep.subr.bf16.mxu0 %v2585
  %2737 = vmatpush1.bf16.msra.mxu0 %v2584
  %2738 = vmatprep.subr.bf16.mxu0 %v2587
  %2739 = vmatpush1.bf16.msra.mxu0 %v2586
  %2740 = vmatprep.subr.bf16.mxu0 %v2589
  %2741 = vmatpush1.bf16.msra.mxu0 %v2588
  %2742 = vmatprep.subr.bf16.mxu0 %v2591
  %2743 = vmatpush1.bf16.msra.mxu0 %v2590
  %2744 = vmatprep.subr.bf16.mxu0 0
  %2745 = vmatpush1.bf16.msra.mxu0 0
  %2746 = vmatprep.subr.bf16.mxu0 0
  %2747 = vmatpush1.bf16.msra.mxu0 0
  %2748 = vmatprep.subr.bf16.mxu0 0
  %2749 = vmatpush1.bf16.msra.mxu0 0
  %2750 = vmatprep.subr.bf16.mxu0 0
  %2751 = vmatpush1.bf16.msra.mxu0 0
  %2752 = vmatprep.subr.bf16.mxu0 0
  %2753 = vmatpush1.bf16.msra.mxu0 0
  %2754 = vmatprep.subr.bf16.mxu0 0
  %2755 = vmatpush1.bf16.msra.mxu0 0
  %2756 = vmatprep.subr.bf16.mxu0 0
  %2757 = vmatpush1.bf16.msra.mxu0 0
  %2758 = vmatprep.subr.bf16.mxu0 0
  %2759 = vmatpush1.bf16.msra.mxu0 0
  %2760 = vmatprep.subr.bf16.mxu0 0
  %2761 = vmatpush1.bf16.msra.mxu0 0
  %2762 = vmatprep.subr.bf16.mxu0 0
  %2763 = vmatpush1.bf16.msra.mxu0 0
  %2764 = vmatprep.subr.bf16.mxu0 0
  %2765 = vmatpush1.bf16.msra.mxu0 0
  %2766 = vmatprep.subr.bf16.mxu0 0
  %2767 = vmatpush1.bf16.msra.mxu0 0
  %2768 = vmatprep.mubr.bf16.mxu0 0
  %2769 = vmatmul.mubr.bf16.gmra.mrb[0].mxu0 %v2734
  %v2770 = vpop.f32.mrb[0].mxu0
  %v2771 = vadd.f32 %v2553, %v2770
  %v2772 = vpop.f32.mrb[0].mxu0
  %v2773 = vadd.f32 %v2557, %v2772
  %v2774 = vpop.f32.mrb[0].mxu0
  %v2775 = vpop.f32.mrb[0].mxu0
  %2776 = vdwg.mxu0
  %v2777 = vld [vmem:[#allocation3 + $0x10] sm:$0xff]
  %v2778 = vld [vmem:[#allocation3 + $0x18] sm:$0xff]
  %v2779 = vld [vmem:[#allocation3 + $0x20] sm:$0xff]
  %v2780 = vld [vmem:[#allocation3 + $0x28] sm:$0xff]
  %v2781 = vadd.f32 %v2777, %v2771
  %v2782 = vxor.u32 %v2781, 2147483648
  %v2783 = vmul.f32 %v2782, 1.442695
  %v2784 = vpow.pop %v2783
  %v2785 = vadd.f32 %v2784, 1.0
  %v2786 = vrcp.pop %v2785
  %v2787 = vmul.f32 1.0, %v2786
  %2789 = vrot.lane.b32.xlu0 %v2771, 64
  %v2790 = vpop.permute.xlu0 %2789
  %v2792 = vmul.f32 %v2787, %v2790
  %2794 = vrot.lane.b32.xlu0 %v2792, 64
  %v2795 = vpop.permute.xlu0 %2794
  %v2797 = vadd.f32 %v2777, %v2795
  %v2798 = vtanh.pop %v2797
  %v2799 = vadd.f32 %v2779, %v2771
  %v2800 = vxor.u32 %v2799, 2147483648
  %v2801 = vmul.f32 %v2800, 1.442695
  %v2802 = vpow.pop %v2801
  %v2803 = vadd.f32 %v2802, 1.0
  %v2804 = vrcp.pop %v2803
  %v2805 = vmul.f32 1.0, %v2804
  %v2806 = vadd.f32 %v2780, %v2773
  %v2807 = vxor.u32 %v2806, 2147483648
  %v2808 = vmul.f32 %v2807, 1.442695
  %v2809 = vpow.pop %v2808
  %v2810 = vadd.f32 %v2809, 1.0
  %v2811 = vrcp.pop %v2810
  %v2812 = vmul.f32 1.0, %v2811
  %2814 = vrot.lane.b32.xlu0 %v2773, 64
  %v2815 = vpop.permute.xlu0 %2814
  %v2817 = vmul.f32 %v2805, %v2815
  %2819 = vrot.lane.b32.xlu0 %v2817, 64
  %v2820 = vpop.permute.xlu0 %2819
  %v2822 = vadd.f32 %v2780, %v2820
  %v2823 = vtanh.pop %v2822
  %v2824 = vsub.f32 1.0, %v2787
  %2826 = vrot.lane.b32.xlu0 %v2798, 96
  %v2827 = vpop.permute.xlu0 %2826
  %v2829 = vmul.f32 %v2824, %v2827
  %2831 = vrot.lane.b32.xlu0 %v2724, 32
  %v2832 = vpop.permute.xlu0 %2831
  %v2834 = vmul.f32 %v2787, %v2832
  %v2835 = vadd.f32 %v2829, %v2834
  %v2836 = vsel %vm2546, 1, 0
  %2837 = vset.pattern.permute.xlu0 0
  %2838 = vperm.xlu0 %2837, %v2836
  %v2839 = vpop.permute.xlu0 %2838
  %vm2840 = vcmp.eq.s32.totalorder %v2839, 1
  %v2841 = vsel %vm2840, %v2835, %v2832
  %v2842 = vsub.f32 1.0, %v2812
  %2844 = vrot.lane.b32.xlu0 %v2823, 96
  %v2845 = vpop.permute.xlu0 %2844
  %v2847 = vmul.f32 %v2842, %v2845
  %2848 = vrot.lane.b32.xlu0 %v2724, 96
  %v2849 = vpop.permute.xlu0 %2848
  %v2851 = vmul.f32 %v2812, %v2849
  %v2852 = vadd.f32 %v2847, %v2851
  %v2853 = vsel %vm2547, 1, 0
  %2854 = vset.pattern.permute.xlu0 0
  %2855 = vperm.xlu0 %2854, %v2853
  %v2856 = vpop.permute.xlu0 %2855
  %vm2857 = vcmp.eq.s32.totalorder %v2856, 1
  %v2858 = vsel %vm2857, %v2852, %v2849
  %2860 = vrot.lane.b32.xlu0 %v2841, 96
  %v2861 = vpop.permute.xlu0 %2860
  %2864 = vrot.lane.b32.xlu0 %v2858, 32
  %v2865 = vpop.permute.xlu0 %2864
  %v2867 = vsel %vm387, %v2861, %v2865
  %vm2868 = vcmp.eq.s32.totalorder %v2430, 3
  %v2869 = vsel %vm2868, 1, 0
  %2870 = vset.pattern.permute.xlu0 0
  %2871 = vperm.xlu0 %2870, %v2869
  %v2872 = vpop.permute.xlu0 %2871
  %vm2873 = vcmp.eq.s32.totalorder %v2872, 1
  %v2874 = vsel %vm2873, %v2858, %v2731
  %v2875 = vpack.c.bf16 %v2867, %v2867
  %v2877 = vsel %vm526, %v2875, 0
  %2879 = vmatprep.subr.bf16.mxu0 %v2585
  %2880 = vmatpush1.bf16.msra.mxu0 %v2584
  %2881 = vmatprep.subr.bf16.mxu0 %v2587
  %2882 = vmatpush1.bf16.msra.mxu0 %v2586
  %2883 = vmatprep.subr.bf16.mxu0 %v2589
  %2884 = vmatpush1.bf16.msra.mxu0 %v2588
  %2885 = vmatprep.subr.bf16.mxu0 %v2591
  %2886 = vmatpush1.bf16.msra.mxu0 %v2590
  %2887 = vmatprep.subr.bf16.mxu0 0
  %2888 = vmatpush1.bf16.msra.mxu0 0
  %2889 = vmatprep.subr.bf16.mxu0 0
  %2890 = vmatpush1.bf16.msra.mxu0 0
  %2891 = vmatprep.subr.bf16.mxu0 0
  %2892 = vmatpush1.bf16.msra.mxu0 0
  %2893 = vmatprep.subr.bf16.mxu0 0
  %2894 = vmatpush1.bf16.msra.mxu0 0
  %2895 = vmatprep.subr.bf16.mxu0 0
  %2896 = vmatpush1.bf16.msra.mxu0 0
  %2897 = vmatprep.subr.bf16.mxu0 0
  %2898 = vmatpush1.bf16.msra.mxu0 0
  %2899 = vmatprep.subr.bf16.mxu0 0
  %2900 = vmatpush1.bf16.msra.mxu0 0
  %2901 = vmatprep.subr.bf16.mxu0 0
  %2902 = vmatpush1.bf16.msra.mxu0 0
  %2903 = vmatprep.subr.bf16.mxu0 0
  %2904 = vmatpush1.bf16.msra.mxu0 0
  %2905 = vmatprep.subr.bf16.mxu0 0
  %2906 = vmatpush1.bf16.msra.mxu0 0
  %2907 = vmatprep.subr.bf16.mxu0 0
  %2908 = vmatpush1.bf16.msra.mxu0 0
  %2909 = vmatprep.subr.bf16.mxu0 0
  %2910 = vmatpush1.bf16.msra.mxu0 0
  %2911 = vmatprep.mubr.bf16.mxu0 0
  %2912 = vmatmul.mubr.bf16.gmra.mrb[0].mxu0 %v2877
  %v2913 = vpop.f32.mrb[0].mxu0
  %v2914 = vadd.f32 %v2553, %v2913
  %v2915 = vpop.f32.mrb[0].mxu0
  %v2916 = vadd.f32 %v2557, %v2915
  %v2917 = vpop.f32.mrb[0].mxu0
  %v2918 = vpop.f32.mrb[0].mxu0
  %2919 = vdwg.mxu0
  %v2920 = vadd.f32 %v2779, %v2914
  %v2921 = vxor.u32 %v2920, 2147483648
  %v2922 = vmul.f32 %v2921, 1.442695
  %v2923 = vpow.pop %v2922
  %v2924 = vadd.f32 %v2923, 1.0
  %v2925 = vrcp.pop %v2924
  %v2926 = vmul.f32 1.0, %v2925
  %2928 = vrot.lane.b32.xlu0 %v2914, 64
  %v2929 = vpop.permute.xlu0 %2928
  %v2931 = vmul.f32 %v2926, %v2929
  %2933 = vrot.lane.b32.xlu0 %v2931, 64
  %v2934 = vpop.permute.xlu0 %2933
  %v2936 = vadd.f32 %v2779, %v2934
  %v2937 = vtanh.pop %v2936
  %v2938 = vadd.f32 %v2777, %v2914
  %v2939 = vxor.u32 %v2938, 2147483648
  %v2940 = vmul.f32 %v2939, 1.442695
  %v2941 = vpow.pop %v2940
  %v2942 = vadd.f32 %v2941, 1.0
  %v2943 = vrcp.pop %v2942
  %v2944 = vmul.f32 1.0, %v2943
  %v2945 = vadd.f32 %v2778, %v2916
  %v2946 = vxor.u32 %v2945, 2147483648
  %v2947 = vmul.f32 %v2946, 1.442695
  %v2948 = vpow.pop %v2947
  %v2949 = vadd.f32 %v2948, 1.0
  %v2950 = vrcp.pop %v2949
  %v2951 = vmul.f32 1.0, %v2950
  %2953 = vrot.lane.b32.xlu0 %v2916, 64
  %v2954 = vpop.permute.xlu0 %2953
  %v2956 = vmul.f32 %v2944, %v2954
  %2958 = vrot.lane.b32.xlu0 %v2956, 64
  %v2959 = vpop.permute.xlu0 %2958
  %v2961 = vadd.f32 %v2778, %v2959
  %v2962 = vtanh.pop %v2961
  %v2963 = vsub.f32 1.0, %v2926
  %2965 = vrot.lane.b32.xlu0 %v2937, 96
  %v2966 = vpop.permute.xlu0 %2965
  %v2968 = vmul.f32 %v2963, %v2966
  %2970 = vrot.lane.b32.xlu0 %v2867, 32
  %v2971 = vpop.permute.xlu0 %2970
  %v2973 = vmul.f32 %v2926, %v2971
  %v2974 = vadd.f32 %v2968, %v2973
  %v2975 = vsel %vm2857, %v2974, %v2971
  %v2976 = vsub.f32 1.0, %v2951
  %2978 = vrot.lane.b32.xlu0 %v2962, 96
  %v2979 = vpop.permute.xlu0 %2978
  %v2981 = vmul.f32 %v2976, %v2979
  %2982 = vrot.lane.b32.xlu0 %v2867, 96
  %v2983 = vpop.permute.xlu0 %2982
  %v2985 = vmul.f32 %v2951, %v2983
  %v2986 = vadd.f32 %v2981, %v2985
  %v2987 = vsel %vm2840, %v2986, %v2983
  %2989 = vrot.lane.b32.xlu0 %v2975, 96
  %v2990 = vpop.permute.xlu0 %2989
  %2993 = vrot.lane.b32.xlu0 %v2987, 32
  %v2994 = vpop.permute.xlu0 %2993
  %v2996 = vsel %vm387, %v2990, %v2994
  %vm2997 = vcmp.eq.s32.totalorder %v2430, 2
  %v2998 = vsel %vm2997, 1, 0
  %2999 = vset.pattern.permute.xlu0 0
  %3000 = vperm.xlu0 %2999, %v2998
  %v3001 = vpop.permute.xlu0 %3000
  %vm3002 = vcmp.eq.s32.totalorder %v3001, 1
  %v3003 = vsel %vm3002, %v2987, %v2874
  %v3004 = vpack.c.bf16 %v2996, %v2996
  %v3006 = vsel %vm526, %v3004, 0
  %3008 = vmatprep.subr.bf16.mxu0 %v2585
  %3009 = vmatpush1.bf16.msra.mxu0 %v2584
  %3010 = vmatprep.subr.bf16.mxu0 %v2587
  %3011 = vmatpush1.bf16.msra.mxu0 %v2586
  %3012 = vmatprep.subr.bf16.mxu0 %v2589
  %3013 = vmatpush1.bf16.msra.mxu0 %v2588
  %3014 = vmatprep.subr.bf16.mxu0 %v2591
  %3015 = vmatpush1.bf16.msra.mxu0 %v2590
  %3016 = vmatprep.subr.bf16.mxu0 0
  %3017 = vmatpush1.bf16.msra.mxu0 0
  %3018 = vmatprep.subr.bf16.mxu0 0
  %3019 = vmatpush1.bf16.msra.mxu0 0
  %3020 = vmatprep.subr.bf16.mxu0 0
  %3021 = vmatpush1.bf16.msra.mxu0 0
  %3022 = vmatprep.subr.bf16.mxu0 0
  %3023 = vmatpush1.bf16.msra.mxu0 0
  %3024 = vmatprep.subr.bf16.mxu0 0
  %3025 = vmatpush1.bf16.msra.mxu0 0
  %3026 = vmatprep.subr.bf16.mxu0 0
  %3027 = vmatpush1.bf16.msra.mxu0 0
  %3028 = vmatprep.subr.bf16.mxu0 0
  %3029 = vmatpush1.bf16.msra.mxu0 0
  %3030 = vmatprep.subr.bf16.mxu0 0
  %3031 = vmatpush1.bf16.msra.mxu0 0
  %3032 = vmatprep.subr.bf16.mxu0 0
  %3033 = vmatpush1.bf16.msra.mxu0 0
  %3034 = vmatprep.subr.bf16.mxu0 0
  %3035 = vmatpush1.bf16.msra.mxu0 0
  %3036 = vmatprep.subr.bf16.mxu0 0
  %3037 = vmatpush1.bf16.msra.mxu0 0
  %3038 = vmatprep.subr.bf16.mxu0 0
  %3039 = vmatpush1.bf16.msra.mxu0 0
  %3040 = vmatprep.mubr.bf16.mxu0 0
  %3041 = vmatmul.mubr.bf16.gmra.mrb[0].mxu0 %v3006
  %v3042 = vpop.f32.mrb[0].mxu0
  %v3043 = vadd.f32 %v2553, %v3042
  %v3044 = vpop.f32.mrb[0].mxu0
  %v3045 = vadd.f32 %v2557, %v3044
  %v3046 = vpop.f32.mrb[0].mxu0
  %v3047 = vpop.f32.mrb[0].mxu0
  %3048 = vdwg.mxu0
  %v3049 = vadd.f32 %v2643, %v3043
  %v3050 = vxor.u32 %v3049, 2147483648
  %v3051 = vmul.f32 %v3050, 1.442695
  %v3052 = vpow.pop %v3051
  %v3053 = vadd.f32 %v3052, 1.0
  %v3054 = vrcp.pop %v3053
  %v3055 = vmul.f32 1.0, %v3054
  %3057 = vrot.lane.b32.xlu0 %v3043, 64
  %v3058 = vpop.permute.xlu0 %3057
  %v3060 = vmul.f32 %v3055, %v3058
  %3062 = vrot.lane.b32.xlu0 %v3060, 64
  %v3063 = vpop.permute.xlu0 %3062
  %v3065 = vadd.f32 %v2643, %v3063
  %v3066 = vtanh.pop %v3065
  %v3067 = vadd.f32 %v2641, %v3043
  %v3068 = vxor.u32 %v3067, 2147483648
  %v3069 = vmul.f32 %v3068, 1.442695
  %v3070 = vpow.pop %v3069
  %v3071 = vadd.f32 %v3070, 1.0
  %v3072 = vrcp.pop %v3071
  %v3073 = vmul.f32 1.0, %v3072
  %v3074 = vadd.f32 %v2642, %v3045
  %v3075 = vxor.u32 %v3074, 2147483648
  %v3076 = vmul.f32 %v3075, 1.442695
  %v3077 = vpow.pop %v3076
  %v3078 = vadd.f32 %v3077, 1.0
  %v3079 = vrcp.pop %v3078
  %v3080 = vmul.f32 1.0, %v3079
  %3082 = vrot.lane.b32.xlu0 %v3045, 64
  %v3083 = vpop.permute.xlu0 %3082
  %v3085 = vmul.f32 %v3073, %v3083
  %3087 = vrot.lane.b32.xlu0 %v3085, 64
  %v3088 = vpop.permute.xlu0 %3087
  %v3090 = vadd.f32 %v2642, %v3088
  %v3091 = vtanh.pop %v3090
  %v3092 = vsub.f32 1.0, %v3055
  %3094 = vrot.lane.b32.xlu0 %v3066, 96
  %v3095 = vpop.permute.xlu0 %3094
  %v3097 = vmul.f32 %v3092, %v3095
  %3099 = vrot.lane.b32.xlu0 %v2996, 32
  %v3100 = vpop.permute.xlu0 %3099
  %v3102 = vmul.f32 %v3055, %v3100
  %v3103 = vadd.f32 %v3097, %v3102
  %v3104 = vsel %vm2714, %v3103, %v3100
  %v3105 = vsub.f32 1.0, %v3080
  %3107 = vrot.lane.b32.xlu0 %v3091, 96
  %v3108 = vpop.permute.xlu0 %3107
  %v3110 = vmul.f32 %v3105, %v3108
  %3111 = vrot.lane.b32.xlu0 %v2996, 96
  %v3112 = vpop.permute.xlu0 %3111
  %v3114 = vmul.f32 %v3080, %v3112
  %v3115 = vadd.f32 %v3110, %v3114
  %v3116 = vsel %vm2700, %v3115, %v3112
  %3118 = vrot.lane.b32.xlu0 %v3104, 96
  %v3119 = vpop.permute.xlu0 %3118
  %3122 = vrot.lane.b32.xlu0 %v3116, 32
  %v3123 = vpop.permute.xlu0 %3122
  %v3125 = vsel %vm387, %v3119, %v3123
  %vm3126 = vcmp.eq.s32.totalorder %v2430, 1
  %v3127 = vsel %vm3126, 1, 0
  %3128 = vset.pattern.permute.xlu0 0
  %3129 = vperm.xlu0 %3128, %v3127
  %v3130 = vpop.permute.xlu0 %3129
  %vm3131 = vcmp.eq.s32.totalorder %v3130, 1
  %v3132 = vsel %vm3131, %v3116, %v3003
  %v3133 = vadd.f32 %v3125, %v3132
  %v3134 = vpack.c.bf16 %v3133, %v3133
  %v3135 = vld [vmem:[%s13] sm:$0xf]
  %v3136 = vld [vmem:[%s13 + $0x4] sm:$0xf]
  %v3137 = vld [vmem:[%s13 + $0x8] sm:$0xf]
  %v3138 = vld [vmem:[%s13 + $0xc] sm:$0xf]
  %v3139 = vld [vmem:[%s14] sm:$0x1]
  %v3141 = vlaneseq
  %v3142 = vshrl.u32 %v3141, 7
  %v3143 = vsub.s32 0, %v3142
  %v3144 = vrot.slane %v3139, %v3143
  %v3150 = vunpack.c.l.b16 %v3135
  %v3151 = vunpack.c.l.b16 %v3136
  %v3152 = vunpack.c.l.b16 %v3137
  %v3153 = vunpack.c.l.b16 %v3138
  %v3154 = vpack.c.b16 %v3151, %v3150
  %v3155 = vpack.c.b16 %v3153, %v3152
  %v3159 = vsel %vm387, %v3134, 0
  %3161 = vmatprep.subr.bf16.mxu0 0
  %3162 = vmatpush1.bf16.msra.mxu0 %v3154
  %3163 = vmatprep.subr.bf16.mxu0 0
  %3164 = vmatpush1.bf16.msra.mxu0 %v3155
  %3165 = vmatprep.subr.bf16.mxu0 0
  %3166 = vmatpush1.bf16.msra.mxu0 0
  %3167 = vmatprep.subr.bf16.mxu0 0
  %3168 = vmatpush1.bf16.msra.mxu0 0
  %3169 = vmatprep.subr.bf16.mxu0 0
  %3170 = vmatpush1.bf16.msra.mxu0 0
  %3171 = vmatprep.subr.bf16.mxu0 0
  %3172 = vmatpush1.bf16.msra.mxu0 0
  %3173 = vmatprep.subr.bf16.mxu0 0
  %3174 = vmatpush1.bf16.msra.mxu0 0
  %3175 = vmatprep.subr.bf16.mxu0 0
  %3176 = vmatpush1.bf16.msra.mxu0 0
  %3177 = vmatprep.subr.bf16.mxu0 0
  %3178 = vmatpush1.bf16.msra.mxu0 0
  %3179 = vmatprep.subr.bf16.mxu0 0
  %3180 = vmatpush1.bf16.msra.mxu0 0
  %3181 = vmatprep.subr.bf16.mxu0 0
  %3182 = vmatpush1.bf16.msra.mxu0 0
  %3183 = vmatprep.subr.bf16.mxu0 0
  %3184 = vmatpush1.bf16.msra.mxu0 0
  %3185 = vmatprep.subr.bf16.mxu0 0
  %3186 = vmatpush1.bf16.msra.mxu0 0
  %3187 = vmatprep.subr.bf16.mxu0 0
  %3188 = vmatpush1.bf16.msra.mxu0 0
  %3189 = vmatprep.subr.bf16.mxu0 0
  %3190 = vmatpush1.bf16.msra.mxu0 0
  %3191 = vmatprep.subr.bf16.mxu0 0
  %3192 = vmatpush1.bf16.msra.mxu0 0
  %3193 = vmatprep.mubr.bf16.mxu0 0
  %3194 = vmatmul.mubr.bf16.gmra.mrb[0].mxu0 %v3159
  %v3195 = vpop.f32.mrb[0].mxu0
  %v3196 = vadd.f32 %v3144, %v3195
  %v3197 = vpop.f32.mrb[0].mxu0
  %v3198 = vpop.f32.mrb[0].mxu0
  %v3199 = vpop.f32.mrb[0].mxu0
  %3200 = vdwg.mxu0
  %vm3201 = vcmp.gt.f32.partialorder %v3196, 0.0
  %v3202 = vmul.f32 %v3196, 0.01
  %v3203 = vsel %vm3201, %v3196, %v3202
  %v3204 = vpack.c.bf16 %v3203, %v3203
  %v3205 = vld [vmem:[%s15] sm:$0xf]
  %v3206 = vld [vmem:[%s15 + $0x4] sm:$0xf]
  %v3207 = vld [vmem:[%s15 + $0x8] sm:$0xf]
  %v3208 = vld [vmem:[%s15 + $0xc] sm:$0xf]
  %v3209 = vld [vmem:[%s16] sm:$0x1]
  %v3211 = vlaneseq
  %v3212 = vshrl.u32 %v3211, 7
  %v3213 = vsub.s32 0, %v3212
  %v3214 = vrot.slane %v3209, %v3213
  %v3220 = vunpack.c.l.b16 %v3205
  %v3221 = vunpack.c.l.b16 %v3206
  %v3222 = vunpack.c.l.b16 %v3207
  %v3223 = vunpack.c.l.b16 %v3208
  %v3224 = vpack.c.b16 %v3221, %v3220
  %v3225 = vpack.c.b16 %v3223, %v3222
  %v3229 = vsel %vm387, %v3204, 0
  %3231 = vmatprep.subr.bf16.mxu0 0
  %3232 = vmatpush1.bf16.msra.mxu0 %v3224
  %3233 = vmatprep.subr.bf16.mxu0 0
  %3234 = vmatpush1.bf16.msra.mxu0 %v3225
  %3235 = vmatprep.subr.bf16.mxu0 0
  %3236 = vmatpush1.bf16.msra.mxu0 0
  %3237 = vmatprep.subr.bf16.mxu0 0
  %3238 = vmatpush1.bf16.msra.mxu0 0
  %3239 = vmatprep.subr.bf16.mxu0 0
  %3240 = vmatpush1.bf16.msra.mxu0 0
  %3241 = vmatprep.subr.bf16.mxu0 0
  %3242 = vmatpush1.bf16.msra.mxu0 0
  %3243 = vmatprep.subr.bf16.mxu0 0
  %3244 = vmatpush1.bf16.msra.mxu0 0
  %3245 = vmatprep.subr.bf16.mxu0 0
  %3246 = vmatpush1.bf16.msra.mxu0 0
  %3247 = vmatprep.subr.bf16.mxu0 0
  %3248 = vmatpush1.bf16.msra.mxu0 0
  %3249 = vmatprep.subr.bf16.mxu0 0
  %3250 = vmatpush1.bf16.msra.mxu0 0
  %3251 = vmatprep.subr.bf16.mxu0 0
  %3252 = vmatpush1.bf16.msra.mxu0 0
  %3253 = vmatprep.subr.bf16.mxu0 0
  %3254 = vmatpush1.bf16.msra.mxu0 0
  %3255 = vmatprep.subr.bf16.mxu0 0
  %3256 = vmatpush1.bf16.msra.mxu0 0
  %3257 = vmatprep.subr.bf16.mxu0 0
  %3258 = vmatpush1.bf16.msra.mxu0 0
  %3259 = vmatprep.subr.bf16.mxu0 0
  %3260 = vmatpush1.bf16.msra.mxu0 0
  %3261 = vmatprep.subr.bf16.mxu0 0
  %3262 = vmatpush1.bf16.msra.mxu0 0
  %3263 = vmatprep.mubr.bf16.mxu0 0
  %3264 = vmatmul.mubr.bf16.gmra.mrb[0].mxu0 %v3229
  %v3265 = vpop.f32.mrb[0].mxu0
  %v3266 = vadd.f32 %v3214, %v3265
  %v3267 = vpop.f32.mrb[0].mxu0
  %v3268 = vpop.f32.mrb[0].mxu0
  %v3269 = vpop.f32.mrb[0].mxu0
  %3270 = vdwg.mxu0
  %vm3271 = vcmp.gt.f32.partialorder %v3266, 0.0
  %v3272 = vmul.f32 %v3266, 0.01
  %v3273 = vsel %vm3271, %v3266, %v3272
  %v3274 = vpack.c.bf16 %v3273, %v3273
  %v3275 = vld [vmem:[%s17] sm:$0xf]
  %v3276 = vld [vmem:[%s17 + $0x4] sm:$0xf]
  %v3277 = vld [vmem:[#allocation4] sm:$0x1]
  %v3279 = vlaneseq
  %v3280 = vshrl.u32 %v3279, 7
  %v3281 = vsub.s32 0, %v3280
  %v3282 = vrot.slane %v3277, %v3281
  %v3286 = vunpack.c.l.b16 %v3275
  %v3287 = vunpack.c.l.b16 %v3276
  %v3288 = vpack.c.b16 %v3287, %v3286
  %v3291 = vsel %vm2374, %v3274, 0
  %3293 = vmatprep.subr.bf16.mxu0 0
  %3294 = vmatpush1.bf16.msra.mxu0 %v3288
  %3295 = vmatprep.subr.bf16.mxu0 0
  %3296 = vmatpush1.bf16.msra.mxu0 0
  %3297 = vmatprep.subr.bf16.mxu0 0
  %3298 = vmatpush1.bf16.msra.mxu0 0
  %3299 = vmatprep.subr.bf16.mxu0 0
  %3300 = vmatpush1.bf16.msra.mxu0 0
  %3301 = vmatprep.subr.bf16.mxu0 0
  %3302 = vmatpush1.bf16.msra.mxu0 0
  %3303 = vmatprep.subr.bf16.mxu0 0
  %3304 = vmatpush1.bf16.msra.mxu0 0
  %3305 = vmatprep.subr.bf16.mxu0 0
  %3306 = vmatpush1.bf16.msra.mxu0 0
  %3307 = vmatprep.subr.bf16.mxu0 0
  %3308 = vmatpush1.bf16.msra.mxu0 0
  %3309 = vmatprep.subr.bf16.mxu0 0
  %3310 = vmatpush1.bf16.msra.mxu0 0
  %3311 = vmatprep.subr.bf16.mxu0 0
  %3312 = vmatpush1.bf16.msra.mxu0 0
  %3313 = vmatprep.subr.bf16.mxu0 0
  %3314 = vmatpush1.bf16.msra.mxu0 0
  %3315 = vmatprep.subr.bf16.mxu0 0
  %3316 = vmatpush1.bf16.msra.mxu0 0
  %3317 = vmatprep.subr.bf16.mxu0 0
  %3318 = vmatpush1.bf16.msra.mxu0 0
  %3319 = vmatprep.subr.bf16.mxu0 0
  %3320 = vmatpush1.bf16.msra.mxu0 0
  %3321 = vmatprep.subr.bf16.mxu0 0
  %3322 = vmatpush1.bf16.msra.mxu0 0
  %3323 = vmatprep.subr.bf16.mxu0 0
  %3324 = vmatpush1.bf16.msra.mxu0 0
  %3325 = vmatprep.mubr.bf16.mxu0 0
  %3326 = vmatmul.mubr.bf16.gmra.mrb[0].mxu0 %v3291
  %v3327 = vpop.f32.mrb[0].mxu0
  %v3328 = vadd.f32 %v3282, %v3327
  %v3329 = vpop.f32.mrb[0].mxu0
  %v3330 = vpop.f32.mrb[0].mxu0
  %v3331 = vpop.f32.mrb[0].mxu0
  %3332 = vdwg.mxu0
  %v3333 = vxor.u32 %v3328, 2147483648
  %v3334 = vmul.f32 %v3333, 1.442695
  %v3335 = vpow.pop %v3334
  %v3336 = vadd.f32 %v3335, 1.0
  %v3337 = vrcp.pop %v3336
  %v3338 = vmul.f32 1.0, %v3337
  %vm3339 = vcmask 7168
  %3340 = vst.msk [vmem:[%s19] sm:$0xff] %vm3339, %v3338
  // Predicated region
  $region78: #{predictor_forward.1} parent=0 // pred_check
    _
  $region79: #{predictor_forward.1} parent=0 // pred_check_branch
    %3342 = sbr.rel (0) target = $region81
  $region80: #{predictor_forward.1} parent=0 // pred_region
    _
  $region81: #{predictor_forward.1} parent=0 // pred_fallthru
    _
  // Predicated region
  $region82: #{predictor_forward.1} parent=0 // pred_check
    _
  $region83: #{predictor_forward.1} parent=0 // pred_check_branch
    %3344 = sbr.rel (0) target = $region85
  $region84: #{predictor_forward.1} parent=0 // pred_region
    _
  $region85: #{predictor_forward.1} parent=0 // pred_fallthru
    _

</llo_original>
